<compile_context>
chip_gen: v5e
topology: v5e:2x2
jax: 0.10.0
libtpu: 0.0.40
codegen_flags: <defaults>
</compile_context>

<pallas_src>
import functools
import math

import jax
import jax.numpy as jnp
from jax.experimental import pallas as pl
from jax.experimental.pallas import tpu as pltpu

_LANE = 128


def _round_up(x, m):
    return (x + m - 1) // m * m


@functools.lru_cache(maxsize=1)
def _vmem_budget_bytes():
    """Generation-aware scoped-VMEM budget (v5e/v6e: 128 MiB, v7x: 64 MiB/TC)."""
    cap = 64 * 1024 * 1024                      # conservative fallback (v7x/TC)
    try:
        info = pltpu.get_tpu_info()
        cap = int(getattr(info, "vmem_capacity_bytes", cap)) or cap
    except Exception:
        pass
    # Leave headroom for compiler-internal scratch; never request > 100 MiB.
    return max(16 * 1024 * 1024, min(cap * 3 // 4, 100 * 1024 * 1024))


def _masked_layer_norm(h, gamma, beta, f_valid, eps):
    """LayerNorm over the first `f_valid` lanes of a lane-padded f32 array."""
    lane = jax.lax.broadcasted_iota(jnp.int32, h.shape, h.ndim - 1)
    valid = lane < f_valid
    inv_f = 1.0 / float(f_valid)
    mean = jnp.sum(jnp.where(valid, h, 0.0), axis=-1, keepdims=True) * inv_f
    centered = jnp.where(valid, h - mean, 0.0)
    var = jnp.sum(centered * centered, axis=-1, keepdims=True) * inv_f
    return centered * jax.lax.rsqrt(var + eps) * gamma + beta


# ------------------------- fused single-call kernel -------------------------

def _fused_gcn_kernel(*refs, num_layers, lay_norm, eps, f_valid):
    """Whole forward in one grid step: A_hat, weights and activations resident."""
    x_ref, a_ref = refs[0], refs[1]
    w_refs = refs[2:2 + num_layers]
    b_refs = refs[2 + num_layers:2 + 2 * num_layers]
    g_ref = refs[2 + 2 * num_layers]
    bt_ref = refs[3 + 2 * num_layers]
    o_ref = refs[4 + 2 * num_layers]

    a = a_ref[...]
    xw = jnp.dot(x_ref[...], w_refs[0][...],
                 preferred_element_type=jnp.float32).astype(jnp.bfloat16)
    for l in range(num_layers - 1):
        h = jnp.maximum(
            jnp.dot(a, xw, preferred_element_type=jnp.float32) + b_refs[l][...],
            0.0)
        xw = jnp.dot(h.astype(jnp.bfloat16), w_refs[l + 1][...],
                     preferred_element_type=jnp.float32).astype(jnp.bfloat16)
    h = jnp.dot(a, xw, preferred_element_type=jnp.float32) + b_refs[-1][...]
    if lay_norm:
        h = _masked_layer_norm(h, g_ref[...], bt_ref[...], f_valid, eps)
    o_ref[...] = h.astype(o_ref.dtype)


def _fused_forward(x_p, a_p, wps, bps, gamma_p, beta_p, *, lay_norm, eps,
                   out_valid):
    n_pad = a_p.shape[0]
    f_out_pad = wps[-1].shape[1]
    num_layers = len(wps)
    operands = [x_p, a_p, *wps, *bps, gamma_p, beta_p]
    in_specs = [pl.BlockSpec(op.shape, lambda i: (0, 0)) for op in operands]

    flops = 2 * n_pad * x_p.shape[1] * wps[0].shape[1]
    for l in range(num_layers - 1):
        flops += 2 * n_pad * n_pad * wps[l].shape[1]
        flops += 2 * n_pad * wps[l + 1].shape[0] * wps[l + 1].shape[1]
    flops += 2 * n_pad * n_pad * f_out_pad
    bytes_accessed = sum(int(op.size) * op.dtype.itemsize for op in operands)
    bytes_accessed += n_pad * f_out_pad * 4

    kernel = functools.partial(_fused_gcn_kernel, num_layers=num_layers,
                               lay_norm=lay_norm, eps=eps, f_valid=out_valid)
    return pl.pallas_call(
        kernel,
        out_shape=jax.ShapeDtypeStruct((n_pad, f_out_pad), jnp.float32),
        grid=(1,),
        in_specs=in_specs,
        out_specs=pl.BlockSpec((n_pad, f_out_pad), lambda i: (0, 0)),
        compiler_params=pltpu.CompilerParams(
            dimension_semantics=("arbitrary",),
            vmem_limit_bytes=_vmem_budget_bytes()),
        cost_estimate=pl.CostEstimate(flops=int(flops), transcendentals=0,
                                      bytes_accessed=int(bytes_accessed)),
    )(*operands)


# ----------------------------- tiled-path kernels ----------------------------

def _project_kernel(x_ref, w_ref, o_ref):
    """XW_0 = X @ W_0 (hoisted out of the A-tile reduction)."""
    o_ref[...] = jnp.dot(x_ref[...], w_ref[...],
                         preferred_element_type=jnp.float32).astype(o_ref.dtype)


def _xw_block(xw_ref, tile_k, xw_resident):
    if xw_resident:
        start = pl.multiple_of(pl.program_id(1) * tile_k, tile_k)
        return xw_ref[pl.ds(start, tile_k), :]
    return xw_ref[...]


def _agg_relu_project_kernel(a_ref, xw_ref, b_ref, wn_ref, o_ref, acc_ref, *,
                             tile_k, xw_resident):
    """acc += A_tile @ XW_k ; at k==last: out = relu(acc + b) @ W_next."""
    @pl.when(pl.program_id(1) == 0)
    def _():
        acc_ref[...] = jnp.zeros_like(acc_ref)

    acc_ref[...] += jnp.dot(a_ref[...], _xw_block(xw_ref, tile_k, xw_resident),
                            preferred_element_type=jnp.float32)

    @pl.when(pl.program_id(1) == pl.num_programs(1) - 1)
    def _():
        h = jnp.maximum(acc_ref[...] + b_ref[...], 0.0)
        o_ref[...] = jnp.dot(h.astype(wn_ref.dtype), wn_ref[...],
                             preferred_element_type=jnp.float32).astype(o_ref.dtype)


def _agg_final_kernel(a_ref, xw_ref, b_ref, g_ref, bt_ref, o_ref, acc_ref, *,
                      tile_k, xw_resident, lay_norm, eps, f_valid):
    """acc += A_tile @ XW_k ; at k==last: out = LayerNorm(acc + b)."""
    @pl.when(pl.program_id(1) == 0)
    def _():
        acc_ref[...] = jnp.zeros_like(acc_ref)

    acc_ref[...] += jnp.dot(a_ref[...], _xw_block(xw_ref, tile_k, xw_resident),
                            preferred_element_type=jnp.float32)

    @pl.when(pl.program_id(1) == pl.num_programs(1) - 1)
    def _():
        h = acc_ref[...] + b_ref[...]
        if lay_norm:
            h = _masked_layer_norm(h, g_ref[...], bt_ref[...], f_valid, eps)
        o_ref[...] = h.astype(o_ref.dtype)


# --------------------------- pallas_call wrappers ---------------------------

def _xw_fits_resident(n_pad, f_pad):
    # Resident XW is still double-buffered; only keep it fully in VMEM when it
    # uses a small fraction of the budget (rest goes to A/W tiles + scratch).
    return 2 * n_pad * f_pad * 2 <= _vmem_budget_bytes() // 4


def _project(x_p, w_p, *, tile_m):
    n_pad, f_in_pad = x_p.shape
    f_out_pad = w_p.shape[1]
    return pl.pallas_call(
        _project_kernel,
        out_shape=jax.ShapeDtypeStruct((n_pad, f_out_pad), jnp.bfloat16),
        grid=(n_pad // tile_m,),
        in_specs=[pl.BlockSpec((tile_m, f_in_pad), lambda i: (i, 0)),
                  pl.BlockSpec((f_in_pad, f_out_pad), lambda i: (0, 0))],
        out_specs=pl.BlockSpec((tile_m, f_out_pad), lambda i: (i, 0)),
        compiler_params=pltpu.CompilerParams(
            dimension_semantics=("parallel",),
            vmem_limit_bytes=_vmem_budget_bytes()),
        cost_estimate=pl.CostEstimate(
            flops=2 * n_pad * f_in_pad * f_out_pad,
            transcendentals=0,
            bytes_accessed=int(x_p.size * 2 + w_p.size * 2
                               + n_pad * f_out_pad * 2)),
    )(x_p, w_p)


def _aggregate_relu_project(a_p, xw, b_p, w_next, *, tile_m, tile_k):
    n_pad = a_p.shape[0]
    f_pad = xw.shape[1]
    f_next = w_next.shape[1]
    resident = _xw_fits_resident(n_pad, f_pad)
    xw_spec = (pl.BlockSpec((n_pad, f_pad), lambda i, k: (0, 0)) if resident
               else pl.BlockSpec((tile_k, f_pad), lambda i, k: (k, 0)))
    kernel = functools.partial(_agg_relu_project_kernel, tile_k=tile_k,
                               xw_resident=resident)
    grid = (n_pad // tile_m, n_pad // tile_k)   # rows parallel, reduction last
    return pl.pallas_call(
        kernel,
        out_shape=jax.ShapeDtypeStruct((n_pad, f_next), jnp.bfloat16),
        grid=grid,
        in_specs=[pl.BlockSpec((tile_m, tile_k), lambda i, k: (i, k)),   # A tile
                  xw_spec,                                               # XW
                  pl.BlockSpec((1, f_pad), lambda i, k: (0, 0)),         # bias
                  pl.BlockSpec((f_pad, f_next), lambda i, k: (0, 0))],   # W_next
        out_specs=pl.BlockSpec((tile_m, f_next), lambda i, k: (i, 0)),
        scratch_shapes=[pltpu.VMEM((tile_m, f_pad), jnp.float32)],
        compiler_params=pltpu.CompilerParams(
            dimension_semantics=("parallel", "arbitrary"),
            vmem_limit_bytes=_vmem_budget_bytes()),
        cost_estimate=pl.CostEstimate(
            flops=2 * n_pad * n_pad * f_pad + 2 * n_pad * f_pad * f_next,
            transcendentals=0,
            bytes_accessed=int(a_p.size * 2
                               + (1 if resident else n_pad // tile_m) * xw.size * 2
                               + b_p.size * 4 + w_next.size * 2
                               + n_pad * f_next * 2)),
    )(a_p, xw, b_p, w_next)


def _aggregate_final(a_p, xw, b_p, gamma_p, beta_p, *, tile_m, tile_k,
                     lay_norm, eps, out_valid):
    n_pad = a_p.shape[0]
    f_pad = xw.shape[1]
    resident = _xw_fits_resident(n_pad, f_pad)
    xw_spec = (pl.BlockSpec((n_pad, f_pad), lambda i, k: (0, 0)) if resident
               else pl.BlockSpec((tile_k, f_pad), lambda i, k: (k, 0)))
    kernel = functools.partial(_agg_final_kernel, tile_k=tile_k,
                               xw_resident=resident, lay_norm=lay_norm,
                               eps=eps, f_valid=out_valid)
    grid = (n_pad // tile_m, n_pad // tile_k)
    return pl.pallas_call(
        kernel,
        out_shape=jax.ShapeDtypeStruct((n_pad, f_pad), jnp.float32),
        grid=grid,
        in_specs=[pl.BlockSpec((tile_m, tile_k), lambda i, k: (i, k)),
                  xw_spec,
                  pl.BlockSpec((1, f_pad), lambda i, k: (0, 0)),
                  pl.BlockSpec((1, f_pad), lambda i, k: (0, 0)),
                  pl.BlockSpec((1, f_pad), lambda i, k: (0, 0))],
        out_specs=pl.BlockSpec((tile_m, f_pad), lambda i, k: (i, 0)),
        scratch_shapes=[pltpu.VMEM((tile_m, f_pad), jnp.float32)],
        compiler_params=pltpu.CompilerParams(
            dimension_semantics=("parallel", "arbitrary"),
            vmem_limit_bytes=_vmem_budget_bytes()),
        cost_estimate=pl.CostEstimate(
            flops=2 * n_pad * n_pad * f_pad,
            transcendentals=0,
            bytes_accessed=int(a_p.size * 2
                               + (1 if resident else n_pad // tile_m) * xw.size * 2
                               + n_pad * f_pad * 4)),
    )(a_p, xw, b_p, gamma_p, beta_p)


# ------------------------------- Forward pass -------------------------------

def _fused_fits_vmem(x_p, a_p, wps, bps):
    n_pad = a_p.shape[0]
    f_max = max(max(w.shape) for w in wps)
    operand_bytes = sum(int(o.size) * o.dtype.itemsize
                        for o in (x_p, a_p, *wps, *bps))
    out_bytes = n_pad * wps[-1].shape[1] * 4
    interm_bytes = 4 * n_pad * f_max * 4          # a handful of f32 temporaries
    need = 2 * (operand_bytes + out_bytes) + interm_bytes
    return need <= _vmem_budget_bytes() // 2


def gcn_forward(x_p, a_p, wps, bps, gamma_p, beta_p, *, num_nodes, out_size,
                lay_norm=True, eps=1e-5, tile_m=128, tile_k=256,
                force_tiled=False):
    """h_{l+1} = relu(A_hat @ (h_l @ W_l) + b_l); last layer no relu; LayerNorm."""
    if (not force_tiled) and _fused_fits_vmem(x_p, a_p, wps, bps):
        out = _fused_forward(x_p, a_p, wps, bps, gamma_p, beta_p,
                             lay_norm=lay_norm, eps=eps, out_valid=out_size)
    else:
        num_layers = len(wps)
        xw = _project(x_p, wps[0], tile_m=tile_m)             # X @ W_0 (once)
        for l in range(num_layers - 1):
            xw = _aggregate_relu_project(a_p, xw, bps[l], wps[l + 1],
                                         tile_m=tile_m, tile_k=tile_k)
        out = _aggregate_final(a_p, xw, bps[-1], gamma_p, beta_p,
                               tile_m=tile_m, tile_k=tile_k, lay_norm=lay_norm,
                               eps=eps, out_valid=out_size)
    return out[:num_nodes, :out_size]


# ------------------------------ Plain-JAX glue ------------------------------

def normalized_adjacency(edge_index, num_nodes, n_pad, dtype=jnp.bfloat16):
    """Dense D^-1/2 (A + I) D^-1/2 with A[dst, src] = edge multiplicity (PyG
    GCNConv convention), built scatter-free via one-hot matmuls, zero-padded
    to (n_pad, n_pad).  Built once outside jit and reused across layers."""
    src, dst = edge_index[0], edge_index[1]
    src_oh = jax.nn.one_hot(src, num_nodes, dtype=jnp.float32)     # [E, N]
    dst_oh = jax.nn.one_hot(dst, num_nodes, dtype=jnp.float32)     # [E, N]
    adj = jnp.dot(dst_oh.T, src_oh) + jnp.eye(num_nodes, dtype=jnp.float32)
    deg = jnp.sum(adj, axis=1)
    dis = jnp.where(deg > 0, jax.lax.rsqrt(deg), 0.0)
    a_hat = dis[:, None] * adj * dis[None, :]
    pad = n_pad - num_nodes
    return jnp.pad(a_hat, ((0, pad), (0, pad))).astype(dtype)


def init_gcn_params(key, in_size, hidden_size, out_size, num_layers):
    """Glorot-ish weights, zero biases (GCNConv defaults), LayerNorm affine."""
    dims = [in_size, hidden_size]
    for _ in range(max(num_layers - 2, 0)):
        dims.append(hidden_size)
    dims.append(out_size)
    params = []
    for i in range(len(dims) - 1):
        key, sub = jax.random.split(key)
        fan_in, fan_out = dims[i], dims[i + 1]
        scale = jnp.sqrt(6.0 / (fan_in + fan_out))
        w = jax.random.uniform(sub, (fan_in, fan_out), jnp.float32, -scale, scale)
        b = jnp.zeros((1, fan_out), jnp.float32)
        params.append((w, b))
    gamma = jnp.ones((1, out_size), jnp.float32)
    beta = jnp.zeros((1, out_size), jnp.float32)
    return params, gamma, beta


def pad_params(params, gamma, beta):
    """Zero-pad every feature dim to a multiple of 128 lanes; weights in bf16."""
    wps, bps = [], []
    for w, b in params:
        fi, fo = w.shape
        fip, fop = _round_up(fi, _LANE), _round_up(fo, _LANE)
        wps.append(jnp.pad(w, ((0, fip - fi), (0, fop - fo))).astype(jnp.bfloat16))
        bps.append(jnp.pad(b, ((0, 0), (0, fop - fo))).astype(jnp.float32))
    fo = params[-1][0].shape[1]
    fop = _round_up(fo, _LANE)
    gamma_p = jnp.pad(gamma, ((0, 0), (0, fop - fo))).astype(jnp.float32)
    beta_p = jnp.pad(beta, ((0, 0), (0, fop - fo))).astype(jnp.float32)
    return wps, bps, gamma_p, beta_p


def pad_nodes(x, n_pad):
    n, f = x.shape
    f_pad = _round_up(f, _LANE)
    return jnp.pad(x, ((0, n_pad - n), (0, f_pad - f))).astype(jnp.bfloat16)


def reference_forward(x_p, a_p, wps, bps, gamma_p, beta_p, num_nodes, out_size,
                      lay_norm=True, eps=1e-5):
    """Pure-JAX reference using the same bf16-rounded operands as the kernels."""
    a = a_p.astype(jnp.float32)
    xw = jnp.dot(x_p.astype(jnp.float32),
                 wps[0].astype(jnp.float32)).astype(jnp.bfloat16)
    num_layers = len(wps)
    for l in range(num_layers - 1):
        h = jnp.maximum(jnp.dot(a, xw.astype(jnp.float32)) + bps[l], 0.0)
        xw = jnp.dot(h.astype(jnp.bfloat16).astype(jnp.float32),
                     wps[l + 1].astype(jnp.float32)).astype(jnp.bfloat16)
    h = jnp.dot(a, xw.astype(jnp.float32)) + bps[-1]
    if lay_norm:
        h = _masked_layer_norm(h, gamma_p, beta_p, out_size, eps)
    return h[:num_nodes, :out_size]


# --------------------------------- Driver ---------------------------------

if __name__ == "__main__":
    key = jax.random.PRNGKey(0)

    num_nodes = 500
    num_edges = 2000
    in_size, hidden_size, out_size = 8, 32, 16
    num_layers = 3   # GCN(in->h)+ReLU, GCN(h->h)+ReLU, GCN(h->out), LayerNorm
    tile_m, tile_k = 128, 256   # tiled-path row tile / reduction block

    k_x, k_e, k_p = jax.random.split(key, 3)
    x = jax.random.normal(k_x, (num_nodes, in_size), jnp.float32)
    edge_index = jax.random.randint(k_e, (2, num_edges), 0, num_nodes, jnp.int32)
    params, gamma, beta = init_gcn_params(k_p, in_size, hidden_size, out_size,
                                          num_layers)

    lcm = tile_m * tile_k // math.gcd(tile_m, tile_k)
    n_pad = _round_up(num_nodes, lcm)
    a_p = normalized_adjacency(edge_index, num_nodes, n_pad)   # built once
    x_p = pad_nodes(x, n_pad)
    wps, bps, gamma_p, beta_p = pad_params(params, gamma, beta)

    ref = reference_forward(x_p, a_p, wps, bps, gamma_p, beta_p,
                            num_nodes, out_size)

    # 1) Fused single-call path (auto-selected: whole forward fits VMEM here).
    fwd_fused = jax.jit(functools.partial(
        gcn_forward, num_nodes=num_nodes, out_size=out_size, lay_norm=True,
        tile_m=tile_m, tile_k=tile_k, force_tiled=False))
    out_fused = jax.block_until_ready(
        fwd_fused(x_p, a_p, wps, bps, gamma_p, beta_p))
    assert out_fused.shape == (num_nodes, out_size)
    assert bool(jnp.all(jnp.isfinite(out_fused)))
    err = float(jnp.max(jnp.abs(out_fused - ref)))
    assert err < 5e-2, f"fused path max abs error vs reference: {err}"

    # 2) Tiled multi-call path (used when the working set exceeds VMEM).
    fwd_tiled = jax.jit(functools.partial(
        gcn_forward, num_nodes=num_nodes, out_size=out_size, lay_norm=True,
        tile_m=tile_m, tile_k=tile_k, force_tiled=True))
    out_tiled = jax.block_until_ready(
        fwd_tiled(x_p, a_p, wps, bps, gamma_p, beta_p))
    assert out_tiled.shape == (num_nodes, out_size)
    err = float(jnp.max(jnp.abs(out_tiled - ref)))
    assert err < 5e-2, f"tiled path max abs error vs reference: {err}"

    print("KERNEL_OK")
</pallas_src>

<mosaic_0001>
module attributes {stable_mosaic.version = 11 : i64} {
  func.func @_fused_gcn_kernel(%arg0: i32, %arg1: memref<512x128xbf16, #tpu.memory_space<vmem>>, %arg2: memref<512x512xbf16, #tpu.memory_space<vmem>>, %arg3: memref<128x128xbf16, #tpu.memory_space<vmem>>, %arg4: memref<128x128xbf16, #tpu.memory_space<vmem>>, %arg5: memref<128x128xbf16, #tpu.memory_space<vmem>>, %arg6: memref<1x128xf32, #tpu.memory_space<vmem>>, %arg7: memref<1x128xf32, #tpu.memory_space<vmem>>, %arg8: memref<1x128xf32, #tpu.memory_space<vmem>>, %arg9: memref<1x128xf32, #tpu.memory_space<vmem>>, %arg10: memref<1x128xf32, #tpu.memory_space<vmem>>, %arg11: memref<512x128xf32, #tpu.memory_space<vmem>>) attributes {dimension_semantics = [#tpu.dimension_semantics<arbitrary>], iteration_bounds = array<i64: 1>, scalar_prefetch = 0 : i64, scratch_operands = 0 : i64, tpu.core_type = #tpu.core_type<tc>, window_params = [{pipeline_mode = #tpu.pipeline_mode<synchronous>, transform_indices = @transform_0, window_bounds = array<i64: 512, 128>}, {pipeline_mode = #tpu.pipeline_mode<synchronous>, transform_indices = @transform_1, window_bounds = array<i64: 512, 512>}, {pipeline_mode = #tpu.pipeline_mode<synchronous>, transform_indices = @transform_2, window_bounds = array<i64: 128, 128>}, {pipeline_mode = #tpu.pipeline_mode<synchronous>, transform_indices = @transform_3, window_bounds = array<i64: 128, 128>}, {pipeline_mode = #tpu.pipeline_mode<synchronous>, transform_indices = @transform_4, window_bounds = array<i64: 128, 128>}, {pipeline_mode = #tpu.pipeline_mode<synchronous>, transform_indices = @transform_5, window_bounds = array<i64: 1, 128>}, {pipeline_mode = #tpu.pipeline_mode<synchronous>, transform_indices = @transform_6, window_bounds = array<i64: 1, 128>}, {pipeline_mode = #tpu.pipeline_mode<synchronous>, transform_indices = @transform_7, window_bounds = array<i64: 1, 128>}, {pipeline_mode = #tpu.pipeline_mode<synchronous>, transform_indices = @transform_8, window_bounds = array<i64: 1, 128>}, {pipeline_mode = #tpu.pipeline_mode<synchronous>, transform_indices = @transform_9, window_bounds = array<i64: 1, 128>}, {pipeline_mode = #tpu.pipeline_mode<synchronous>, transform_indices = @transform_10, window_bounds = array<i64: 512, 128>}]} {
    %c0 = arith.constant 0 : index
    %c0_0 = arith.constant 0 : index
    %0 = vector.load %arg2[%c0, %c0_0] : memref<512x512xbf16, #tpu.memory_space<vmem>>, vector<512x512xbf16>
    %c0_1 = arith.constant 0 : index
    %c0_2 = arith.constant 0 : index
    %1 = vector.load %arg1[%c0_1, %c0_2] : memref<512x128xbf16, #tpu.memory_space<vmem>>, vector<512x128xbf16>
    %c0_3 = arith.constant 0 : index
    %c0_4 = arith.constant 0 : index
    %2 = vector.load %arg3[%c0_3, %c0_4] : memref<128x128xbf16, #tpu.memory_space<vmem>>, vector<128x128xbf16>
    %cst = arith.constant dense<0.000000e+00> : vector<512x128xf32>
    %3 = tpu.matmul %1, %2, %cst {dimension_numbers = #tpu.dot_dimension_numbers<[1], [0], [0], [1], [0, 0, 1, 1], [], []>} : vector<512x128xbf16>, vector<128x128xbf16>, vector<512x128xf32> -> vector<512x128xf32>
    %4 = arith.truncf %3 : vector<512x128xf32> to vector<512x128xbf16>
    %cst_5 = arith.constant dense<0.000000e+00> : vector<512x128xf32>
    %5 = tpu.matmul %0, %4, %cst_5 {dimension_numbers = #tpu.dot_dimension_numbers<[1], [0], [0], [1], [0, 0, 1, 1], [], []>} : vector<512x512xbf16>, vector<512x128xbf16>, vector<512x128xf32> -> vector<512x128xf32>
    %c0_6 = arith.constant 0 : index
    %c0_7 = arith.constant 0 : index
    %6 = vector.load %arg6[%c0_6, %c0_7] : memref<1x128xf32, #tpu.memory_space<vmem>>, vector<1x128xf32>
    %7 = vector.broadcast %6 : vector<1x128xf32> to vector<512x128xf32>
    %8 = arith.addf %5, %7 : vector<512x128xf32>
    %cst_8 = arith.constant 0.000000e+00 : f32
    %9 = vector.broadcast %cst_8 : f32 to vector<512x128xf32>
    %10 = arith.maximumf %8, %9 : vector<512x128xf32>
    %11 = arith.truncf %10 : vector<512x128xf32> to vector<512x128xbf16>
    %c0_9 = arith.constant 0 : index
    %c0_10 = arith.constant 0 : index
    %12 = vector.load %arg4[%c0_9, %c0_10] : memref<128x128xbf16, #tpu.memory_space<vmem>>, vector<128x128xbf16>
    %cst_11 = arith.constant dense<0.000000e+00> : vector<512x128xf32>
    %13 = tpu.matmul %11, %12, %cst_11 {dimension_numbers = #tpu.dot_dimension_numbers<[1], [0], [0], [1], [0, 0, 1, 1], [], []>} : vector<512x128xbf16>, vector<128x128xbf16>, vector<512x128xf32> -> vector<512x128xf32>
    %14 = arith.truncf %13 : vector<512x128xf32> to vector<512x128xbf16>
    %cst_12 = arith.constant dense<0.000000e+00> : vector<512x128xf32>
    %15 = tpu.matmul %0, %14, %cst_12 {dimension_numbers = #tpu.dot_dimension_numbers<[1], [0], [0], [1], [0, 0, 1, 1], [], []>} : vector<512x512xbf16>, vector<512x128xbf16>, vector<512x128xf32> -> vector<512x128xf32>
    %c0_13 = arith.constant 0 : index
    %c0_14 = arith.constant 0 : index
    %16 = vector.load %arg7[%c0_13, %c0_14] : memref<1x128xf32, #tpu.memory_space<vmem>>, vector<1x128xf32>
    %17 = vector.broadcast %16 : vector<1x128xf32> to vector<512x128xf32>
    %18 = arith.addf %15, %17 : vector<512x128xf32>
    %cst_15 = arith.constant 0.000000e+00 : f32
    %19 = vector.broadcast %cst_15 : f32 to vector<512x128xf32>
    %20 = arith.maximumf %18, %19 : vector<512x128xf32>
    %21 = arith.truncf %20 : vector<512x128xf32> to vector<512x128xbf16>
    %c0_16 = arith.constant 0 : index
    %c0_17 = arith.constant 0 : index
    %22 = vector.load %arg5[%c0_16, %c0_17] : memref<128x128xbf16, #tpu.memory_space<vmem>>, vector<128x128xbf16>
    %cst_18 = arith.constant dense<0.000000e+00> : vector<512x128xf32>
    %23 = tpu.matmul %21, %22, %cst_18 {dimension_numbers = #tpu.dot_dimension_numbers<[1], [0], [0], [1], [0, 0, 1, 1], [], []>} : vector<512x128xbf16>, vector<128x128xbf16>, vector<512x128xf32> -> vector<512x128xf32>
    %24 = arith.truncf %23 : vector<512x128xf32> to vector<512x128xbf16>
    %cst_19 = arith.constant dense<0.000000e+00> : vector<512x128xf32>
    %25 = tpu.matmul %0, %24, %cst_19 {dimension_numbers = #tpu.dot_dimension_numbers<[1], [0], [0], [1], [0, 0, 1, 1], [], []>} : vector<512x512xbf16>, vector<512x128xbf16>, vector<512x128xf32> -> vector<512x128xf32>
    %c0_20 = arith.constant 0 : index
    %c0_21 = arith.constant 0 : index
    %26 = vector.load %arg8[%c0_20, %c0_21] : memref<1x128xf32, #tpu.memory_space<vmem>>, vector<1x128xf32>
    %27 = vector.broadcast %26 : vector<1x128xf32> to vector<512x128xf32>
    %28 = arith.addf %25, %27 : vector<512x128xf32>
    %c0_22 = arith.constant 0 : index
    %c0_23 = arith.constant 0 : index
    %29 = vector.load %arg9[%c0_22, %c0_23] : memref<1x128xf32, #tpu.memory_space<vmem>>, vector<1x128xf32>
    %c0_24 = arith.constant 0 : index
    %c0_25 = arith.constant 0 : index
    %30 = vector.load %arg10[%c0_24, %c0_25] : memref<1x128xf32, #tpu.memory_space<vmem>>, vector<1x128xf32>
    %31 = tpu.iota {dimensions = array<i32: 1>} : vector<512x128xi32>
    %c16_i32 = arith.constant 16 : i32
    %32 = vector.broadcast %c16_i32 : i32 to vector<512x128xi32>
    %33 = arith.cmpi slt, %31, %32 : vector<512x128xi32>
    %cst_26 = arith.constant 0.000000e+00 : f32
    %34 = vector.broadcast %cst_26 : f32 to vector<512x128xf32>
    %35 = arith.select %33, %28, %34 : vector<512x128xi1>, vector<512x128xf32>
    %cst_27 = arith.constant dense<0.000000e+00> : vector<512xf32>
    %36 = vector.multi_reduction <add>, %35, %cst_27 [1] : vector<512x128xf32> to vector<512xf32>
    %37 = vector.shape_cast %36 : vector<512xf32> to vector<512x1xf32>
    %cst_28 = arith.constant 6.250000e-02 : f32
    %38 = vector.broadcast %cst_28 : f32 to vector<512x1xf32>
    %39 = arith.mulf %37, %38 : vector<512x1xf32>
    %40 = vector.broadcast %39 : vector<512x1xf32> to vector<512x128xf32>
    %41 = arith.subf %28, %40 : vector<512x128xf32>
    %cst_29 = arith.constant 0.000000e+00 : f32
    %42 = vector.broadcast %cst_29 : f32 to vector<512x128xf32>
    %43 = arith.select %33, %41, %42 : vector<512x128xi1>, vector<512x128xf32>
    %44 = arith.mulf %43, %43 : vector<512x128xf32>
    %cst_30 = arith.constant dense<0.000000e+00> : vector<512xf32>
    %45 = vector.multi_reduction <add>, %44, %cst_30 [1] : vector<512x128xf32> to vector<512xf32>
    %46 = vector.shape_cast %45 : vector<512xf32> to vector<512x1xf32>
    %cst_31 = arith.constant 6.250000e-02 : f32
    %47 = vector.broadcast %cst_31 : f32 to vector<512x1xf32>
    %48 = arith.mulf %46, %47 : vector<512x1xf32>
    %cst_32 = arith.constant 9.99999974E-6 : f32
    %49 = vector.broadcast %cst_32 : f32 to vector<512x1xf32>
    %50 = arith.addf %48, %49 : vector<512x1xf32>
    %51 = math.rsqrt %50 : vector<512x1xf32>
    %52 = vector.broadcast %51 : vector<512x1xf32> to vector<512x128xf32>
    %53 = arith.mulf %43, %52 : vector<512x128xf32>
    %54 = vector.broadcast %29 : vector<1x128xf32> to vector<512x128xf32>
    %55 = arith.mulf %53, %54 : vector<512x128xf32>
    %56 = vector.broadcast %30 : vector<1x128xf32> to vector<512x128xf32>
    %57 = arith.addf %55, %56 : vector<512x128xf32>
    %c0_33 = arith.constant 0 : index
    %c0_34 = arith.constant 0 : index
    %58 = vector.load %arg11[%c0_33, %c0_34] : memref<512x128xf32, #tpu.memory_space<vmem>>, vector<512x128xf32>
    tpu.vector_store %arg11[%c0_33, %c0_34], %57 {strides = array<i32>} : memref<512x128xf32, #tpu.memory_space<vmem>>, vector<512x128xf32>,
    return
  }
  func.func @transform_0(%arg0: i32) -> (i32, i32) {
    %c0_i32 = arith.constant 0 : i32
    %c0_i32_0 = arith.constant 0 : i32
    %c0_i32_1 = arith.constant 0 : i32
    return %c0_i32, %c0_i32_0 : i32, i32
  }
  func.func @transform_1(%arg0: i32) -> (i32, i32) {
    %c0_i32 = arith.constant 0 : i32
    %c0_i32_0 = arith.constant 0 : i32
    %c0_i32_1 = arith.constant 0 : i32
    return %c0_i32, %c0_i32_0 : i32, i32
  }
  func.func @transform_2(%arg0: i32) -> (i32, i32) {
    %c0_i32 = arith.constant 0 : i32
    %c0_i32_0 = arith.constant 0 : i32
    %c0_i32_1 = arith.constant 0 : i32
    return %c0_i32, %c0_i32_0 : i32, i32
  }
  func.func @transform_3(%arg0: i32) -> (i32, i32) {
    %c0_i32 = arith.constant 0 : i32
    %c0_i32_0 = arith.constant 0 : i32
    %c0_i32_1 = arith.constant 0 : i32
    return %c0_i32, %c0_i32_0 : i32, i32
  }
  func.func @transform_4(%arg0: i32) -> (i32, i32) {
    %c0_i32 = arith.constant 0 : i32
    %c0_i32_0 = arith.constant 0 : i32
    %c0_i32_1 = arith.constant 0 : i32
    return %c0_i32, %c0_i32_0 : i32, i32
  }
  func.func @transform_5(%arg0: i32) -> (i32, i32) {
    %c0_i32 = arith.constant 0 : i32
    %c0_i32_0 = arith.constant 0 : i32
    %c0_i32_1 = arith.constant 0 : i32
    return %c0_i32, %c0_i32_0 : i32, i32
  }
  func.func @transform_6(%arg0: i32) -> (i32, i32) {
    %c0_i32 = arith.constant 0 : i32
    %c0_i32_0 = arith.constant 0 : i32
    %c0_i32_1 = arith.constant 0 : i32
    return %c0_i32, %c0_i32_0 : i32, i32
  }
  func.func @transform_7(%arg0: i32) -> (i32, i32) {
    %c0_i32 = arith.constant 0 : i32
    %c0_i32_0 = arith.constant 0 : i32
    %c0_i32_1 = arith.constant 0 : i32
    return %c0_i32, %c0_i32_0 : i32, i32
  }
  func.func @transform_8(%arg0: i32) -> (i32, i32) {
    %c0_i32 = arith.constant 0 : i32
    %c0_i32_0 = arith.constant 0 : i32
    %c0_i32_1 = arith.constant 0 : i32
    return %c0_i32, %c0_i32_0 : i32, i32
  }
  func.func @transform_9(%arg0: i32) -> (i32, i32) {
    %c0_i32 = arith.constant 0 : i32
    %c0_i32_0 = arith.constant 0 : i32
    %c0_i32_1 = arith.constant 0 : i32
    return %c0_i32, %c0_i32_0 : i32, i32
  }
  func.func @transform_10(%arg0: i32) -> (i32, i32) {
    %c0_i32 = arith.constant 0 : i32
    %c0_i32_0 = arith.constant 0 : i32
    %c0_i32_1 = arith.constant 0 : i32
    return %c0_i32, %c0_i32_0 : i32, i32
  }
}

</mosaic_0001>

<llo_original>
// kernel: gcn_forward.1
$region0: #{gcn_forward.1}
  #allocation0 [shape = 'u32[]', space=smem, size = 0x4, offset = 0x4, fixed_abs, tag = 'smem constant byte address 0x4 - core index']
  #allocation1 [shape = 'u32[72,128]{1,0:T(1,128)}', space=vmem, size = 0x9000, scoped, tag = 'internal scratch']
  %s0 = inlined_call_operand.hbm [shape: bf16[512,128], index: 0, kind: input, shape index: {}]
  %s1 = inlined_call_operand.hbm [shape: bf16[512,512], index: 1, kind: input, shape index: {}]
  %s2 = inlined_call_operand.hbm [shape: bf16[128,128], index: 2, kind: input, shape index: {}]
  %s3 = inlined_call_operand.hbm [shape: bf16[128,128], index: 3, kind: input, shape index: {}]
  %s4 = inlined_call_operand.hbm [shape: bf16[128,128], index: 4, kind: input, shape index: {}]
  %s5 = inlined_call_operand.vmem [shape: f32[1,128], index: 5, kind: input, shape index: {}]
  %s6 = inlined_call_operand.vmem [shape: f32[1,128], index: 6, kind: input, shape index: {}]
  %s7 = inlined_call_operand.vmem [shape: f32[1,128], index: 7, kind: input, shape index: {}]
  %s8 = inlined_call_operand.vmem [shape: f32[1,128], index: 8, kind: input, shape index: {}]
  %s9 = inlined_call_operand.vmem [shape: f32[1,128], index: 9, kind: input, shape index: {}]
  %s10 = inlined_call_operand.vmem [shape: f32[512,128], index: 10, kind: output, shape index: {}]
  %s11 = sld [smem:[#allocation0]]
  $region70: #{gcn_forward.1} parent=0
    _
  %s13 = ssub.s32 1, %s11
  %s14 = scalar_select 0, %s13, %s11
  $region1: #{gcn_forward.1} parent=0
    #allocation2 [shape = 'u8[131072]{0}', space=vmem, size = 0x20000, scoped, tag = 'input window, operand 0, single buffered']
    #allocation3 [shape = 's32[1]{0}', space=sflag, size = 0x4, scoped, tag = 'scoped memory for gcn_forward.1']
    #allocation4 [shape = 'u8[524288]{0}', space=vmem, size = 0x80000, scoped, tag = 'input window, operand 1, single buffered']
    #allocation5 [shape = 's32[1]{0}', space=sflag, size = 0x4, scoped, tag = 'scoped memory for gcn_forward.1']
    #allocation6 [shape = 'u8[32768]{0}', space=vmem, size = 0x8000, scoped, tag = 'input window, operand 2, single buffered']
    #allocation7 [shape = 'u8[32768]{0}', space=vmem, size = 0x8000, scoped, tag = 'input window, operand 3, single buffered']
    #allocation8 [shape = 's32[1]{0}', space=sflag, size = 0x4, scoped, tag = 'scoped memory for gcn_forward.1']
    #allocation9 [shape = 'u8[32768]{0}', space=vmem, size = 0x8000, scoped, tag = 'input window, operand 4, single buffered']
    %15 = vsyncpa [#allocation3], 0
    %16 = vsyncpa [#allocation5], 0
    %17 = vsyncpa [#allocation8], 0
    // Predicated region
    $region2: #{gcn_forward.1} parent=1 // pred_check
      _
    $region3: #{gcn_forward.1} parent=1 // pred_check_branch
      %19 = sbr.rel (0) target = $region5
    $region4: #{gcn_forward.1} parent=1 // pred_region
      %21 = vsyncadd [#allocation3], 0
      %s22 = sshll.u32 %s0, 4
      %s23 = int_to_ptr.hbm [resolvable:$true] %s22
      %s24 = sshll.u32 [#allocation2], 4
      %s25 = int_to_ptr.vmem [resolvable:$true] %s24
      %30 = dma.hbm_to_vmem [thread:$0]  %s23, 4096, %s25, [#allocation3], 64, 64, 4
    $region5: #{gcn_forward.1} parent=1 // pred_fallthru
      _
    // Predicated region
    $region6: #{gcn_forward.1} parent=1 // pred_check
      _
    $region7: #{gcn_forward.1} parent=1 // pred_check_branch
      %32 = sbr.rel (0) target = $region9
    $region8: #{gcn_forward.1} parent=1 // pred_region
      %34 = vsyncadd [#allocation5], 0
      %s35 = sshll.u32 %s1, 4
      %s36 = int_to_ptr.hbm [resolvable:$true] %s35
      %s37 = sshll.u32 [#allocation4], 4
      %s38 = int_to_ptr.vmem [resolvable:$true] %s37
      %43 = dma.hbm_to_vmem [thread:$0]  %s36, 16384, %s38, [#allocation5], 256, 256, 16
    $region9: #{gcn_forward.1} parent=1 // pred_fallthru
      _
    // Predicated region
    $region10: #{gcn_forward.1} parent=1 // pred_check
      _
    $region11: #{gcn_forward.1} parent=1 // pred_check_branch
      %45 = sbr.rel (0) target = $region13
    $region12: #{gcn_forward.1} parent=1 // pred_region
      %47 = vsyncadd [#allocation5], 0
      %s48 = sshll.u32 %s2, 4
      %s49 = int_to_ptr.hbm [resolvable:$true] %s48
      %s50 = sshll.u32 [#allocation6], 4
      %s51 = int_to_ptr.vmem [resolvable:$true] %s50
      %56 = dma.hbm_to_vmem [thread:$0]  %s49, 1024, %s51, [#allocation5], 64, 64, 4
    $region13: #{gcn_forward.1} parent=1 // pred_fallthru
      _
    // Predicated region
    $region14: #{gcn_forward.1} parent=1 // pred_check
      _
    $region15: #{gcn_forward.1} parent=1 // pred_check_branch
      %58 = sbr.rel (0) target = $region17
    $region16: #{gcn_forward.1} parent=1 // pred_region
      %60 = vsyncadd [#allocation8], 0
      %s61 = sshll.u32 %s3, 4
      %s62 = int_to_ptr.hbm [resolvable:$true] %s61
      %s63 = sshll.u32 [#allocation7], 4
      %s64 = int_to_ptr.vmem [resolvable:$true] %s63
      %69 = dma.hbm_to_vmem [thread:$0]  %s62, 1024, %s64, [#allocation8], 64, 64, 4
    $region17: #{gcn_forward.1} parent=1 // pred_fallthru
      _
    // Predicated region
    $region18: #{gcn_forward.1} parent=1 // pred_check
      _
    $region19: #{gcn_forward.1} parent=1 // pred_check_branch
      %71 = sbr.rel (0) target = $region21
    $region20: #{gcn_forward.1} parent=1 // pred_region
      %73 = vsyncadd [#allocation8], 0
      %s74 = sshll.u32 %s4, 4
      %s75 = int_to_ptr.hbm [resolvable:$true] %s74
      %s76 = sshll.u32 [#allocation9], 4
      %s77 = int_to_ptr.vmem [resolvable:$true] %s76
      %82 = dma.hbm_to_vmem [thread:$0]  %s75, 1024, %s77, [#allocation8], 64, 64, 4
    $region21: #{gcn_forward.1} parent=1 // pred_fallthru
      _
    // Predicated region
    $region22: #{gcn_forward.1} parent=1 // pred_check
      _
    $region23: #{gcn_forward.1} parent=1 // pred_check_branch
      %84 = sbr.rel (0) target = $region25
    $region24: #{gcn_forward.1} parent=1 // pred_region
      _
    $region25: #{gcn_forward.1} parent=1 // pred_fallthru
      _
    // Predicated region
    $region26: #{gcn_forward.1} parent=1 // pred_check
      _
    $region27: #{gcn_forward.1} parent=1 // pred_check_branch
      %86 = sbr.rel (0) target = $region29
    $region28: #{gcn_forward.1} parent=1 // pred_region
      _
    $region29: #{gcn_forward.1} parent=1 // pred_fallthru
      _
    // Predicated region
    $region30: #{gcn_forward.1} parent=1 // pred_check
      _
    $region31: #{gcn_forward.1} parent=1 // pred_check_branch
      %88 = sbr.rel (0) target = $region33
    $region32: #{gcn_forward.1} parent=1 // pred_region
      _
    $region33: #{gcn_forward.1} parent=1 // pred_fallthru
      _
    // Predicated region
    $region34: #{gcn_forward.1} parent=1 // pred_check
      _
    $region35: #{gcn_forward.1} parent=1 // pred_check_branch
      %90 = sbr.rel (0) target = $region37
    $region36: #{gcn_forward.1} parent=1 // pred_region
      _
    $region37: #{gcn_forward.1} parent=1 // pred_fallthru
      _
    // Predicated region
    $region38: #{gcn_forward.1} parent=1 // pred_check
      _
    $region39: #{gcn_forward.1} parent=1 // pred_check_branch
      %92 = sbr.rel (0) target = $region41
    $region40: #{gcn_forward.1} parent=1 // pred_region
      _
    $region41: #{gcn_forward.1} parent=1 // pred_fallthru
      _
    // Predicated region
    $region42: #{gcn_forward.1} parent=1 // pred_check
      _
    $region43: #{gcn_forward.1} parent=1 // pred_check_branch
      %94 = sbr.rel (0) target = $region45
    $region44: #{gcn_forward.1} parent=1 // pred_region
      %96 = dma.done [#allocation3], 4096
    $region45: #{gcn_forward.1} parent=1 // pred_fallthru
      _
    // Predicated region
    $region46: #{gcn_forward.1} parent=1 // pred_check
      _
    $region47: #{gcn_forward.1} parent=1 // pred_check_branch
      %98 = sbr.rel (0) target = $region49
    $region48: #{gcn_forward.1} parent=1 // pred_region
      %100 = dma.done [#allocation5], 16384
    $region49: #{gcn_forward.1} parent=1 // pred_fallthru
      _
    // Predicated region
    $region50: #{gcn_forward.1} parent=1 // pred_check
      _
    $region51: #{gcn_forward.1} parent=1 // pred_check_branch
      %102 = sbr.rel (0) target = $region53
    $region52: #{gcn_forward.1} parent=1 // pred_region
      %104 = dma.done [#allocation5], 1024
    $region53: #{gcn_forward.1} parent=1 // pred_fallthru
      _
    // Predicated region
    $region54: #{gcn_forward.1} parent=1 // pred_check
      _
    $region55: #{gcn_forward.1} parent=1 // pred_check_branch
      %106 = sbr.rel (0) target = $region57
    $region56: #{gcn_forward.1} parent=1 // pred_region
      %108 = dma.done [#allocation8], 1024
    $region57: #{gcn_forward.1} parent=1 // pred_fallthru
      _
    // Predicated region
    $region58: #{gcn_forward.1} parent=1 // pred_check
      _
    $region59: #{gcn_forward.1} parent=1 // pred_check_branch
      %110 = sbr.rel (0) target = $region61
    $region60: #{gcn_forward.1} parent=1 // pred_region
      %112 = dma.done [#allocation8], 1024
    $region61: #{gcn_forward.1} parent=1 // pred_fallthru
      _
    %v113 = vld [vmem:[#allocation4] sm:$0xff]
    %v114 = vld [vmem:[#allocation4 + $0x8] sm:$0xff]
    %v115 = vld [vmem:[#allocation4 + $0x10] sm:$0xff]
    %v116 = vld [vmem:[#allocation4 + $0x18] sm:$0xff]
    %v117 = vld [vmem:[#allocation4 + $0x20] sm:$0xff]
    %v118 = vld [vmem:[#allocation4 + $0x28] sm:$0xff]
    %v119 = vld [vmem:[#allocation4 + $0x30] sm:$0xff]
    %v120 = vld [vmem:[#allocation4 + $0x38] sm:$0xff]
    %v121 = vld [vmem:[#allocation4 + $0x40] sm:$0xff]
    %v122 = vld [vmem:[#allocation4 + $0x48] sm:$0xff]
    %v123 = vld [vmem:[#allocation4 + $0x50] sm:$0xff]
    %v124 = vld [vmem:[#allocation4 + $0x58] sm:$0xff]
    %v125 = vld [vmem:[#allocation4 + $0x60] sm:$0xff]
    %v126 = vld [vmem:[#allocation4 + $0x68] sm:$0xff]
    %v127 = vld [vmem:[#allocation4 + $0x70] sm:$0xff]
    %v128 = vld [vmem:[#allocation4 + $0x78] sm:$0xff]
    %v129 = vld [vmem:[#allocation4 + $0x80] sm:$0xff]
    %v130 = vld [vmem:[#allocation4 + $0x88] sm:$0xff]
    %v131 = vld [vmem:[#allocation4 + $0x90] sm:$0xff]
    %v132 = vld [vmem:[#allocation4 + $0x98] sm:$0xff]
    %v133 = vld [vmem:[#allocation4 + $0xa0] sm:$0xff]
    %v134 = vld [vmem:[#allocation4 + $0xa8] sm:$0xff]
    %v135 = vld [vmem:[#allocation4 + $0xb0] sm:$0xff]
    %v136 = vld [vmem:[#allocation4 + $0xb8] sm:$0xff]
    %v137 = vld [vmem:[#allocation4 + $0xc0] sm:$0xff]
    %v138 = vld [vmem:[#allocation4 + $0xc8] sm:$0xff]
    %v139 = vld [vmem:[#allocation4 + $0xd0] sm:$0xff]
    %v140 = vld [vmem:[#allocation4 + $0xd8] sm:$0xff]
    %v141 = vld [vmem:[#allocation4 + $0xe0] sm:$0xff]
    %v142 = vld [vmem:[#allocation4 + $0xe8] sm:$0xff]
    %v143 = vld [vmem:[#allocation4 + $0xf0] sm:$0xff]
    %v144 = vld [vmem:[#allocation4 + $0xf8] sm:$0xff]
    %v145 = vld [vmem:[#allocation4 + $0x100] sm:$0xff]
    %v146 = vld [vmem:[#allocation4 + $0x108] sm:$0xff]
    %v147 = vld [vmem:[#allocation4 + $0x110] sm:$0xff]
    %v148 = vld [vmem:[#allocation4 + $0x118] sm:$0xff]
    %v149 = vld [vmem:[#allocation4 + $0x120] sm:$0xff]
    %v150 = vld [vmem:[#allocation4 + $0x128] sm:$0xff]
    %v151 = vld [vmem:[#allocation4 + $0x130] sm:$0xff]
    %v152 = vld [vmem:[#allocation4 + $0x138] sm:$0xff]
    %v153 = vld [vmem:[#allocation4 + $0x140] sm:$0xff]
    %v154 = vld [vmem:[#allocation4 + $0x148] sm:$0xff]
    %v155 = vld [vmem:[#allocation4 + $0x150] sm:$0xff]
    %v156 = vld [vmem:[#allocation4 + $0x158] sm:$0xff]
    %v157 = vld [vmem:[#allocation4 + $0x160] sm:$0xff]
    %v158 = vld [vmem:[#allocation4 + $0x168] sm:$0xff]
    %v159 = vld [vmem:[#allocation4 + $0x170] sm:$0xff]
    %v160 = vld [vmem:[#allocation4 + $0x178] sm:$0xff]
    %v161 = vld [vmem:[#allocation4 + $0x180] sm:$0xff]
    %v162 = vld [vmem:[#allocation4 + $0x188] sm:$0xff]
    %v163 = vld [vmem:[#allocation4 + $0x190] sm:$0xff]
    %v164 = vld [vmem:[#allocation4 + $0x198] sm:$0xff]
    %v165 = vld [vmem:[#allocation4 + $0x1a0] sm:$0xff]
    %v166 = vld [vmem:[#allocation4 + $0x1a8] sm:$0xff]
    %v167 = vld [vmem:[#allocation4 + $0x1b0] sm:$0xff]
    %v168 = vld [vmem:[#allocation4 + $0x1b8] sm:$0xff]
    %v169 = vld [vmem:[#allocation4 + $0x1c0] sm:$0xff]
    %v170 = vld [vmem:[#allocation4 + $0x1c8] sm:$0xff]
    %v171 = vld [vmem:[#allocation4 + $0x1d0] sm:$0xff]
    %v172 = vld [vmem:[#allocation4 + $0x1d8] sm:$0xff]
    %v173 = vld [vmem:[#allocation4 + $0x1e0] sm:$0xff]
    %v174 = vld [vmem:[#allocation4 + $0x1e8] sm:$0xff]
    %v175 = vld [vmem:[#allocation4 + $0x1f0] sm:$0xff]
    %v176 = vld [vmem:[#allocation4 + $0x1f8] sm:$0xff]
    %v177 = vld [vmem:[#allocation4 + $0x200] sm:$0xff]
    %v178 = vld [vmem:[#allocation4 + $0x208] sm:$0xff]
    %v179 = vld [vmem:[#allocation4 + $0x210] sm:$0xff]
    %v180 = vld [vmem:[#allocation4 + $0x218] sm:$0xff]
    %v181 = vld [vmem:[#allocation4 + $0x220] sm:$0xff]
    %v182 = vld [vmem:[#allocation4 + $0x228] sm:$0xff]
    %v183 = vld [vmem:[#allocation4 + $0x230] sm:$0xff]
    %v184 = vld [vmem:[#allocation4 + $0x238] sm:$0xff]
    %v185 = vld [vmem:[#allocation4 + $0x240] sm:$0xff]
    %v186 = vld [vmem:[#allocation4 + $0x248] sm:$0xff]
    %v187 = vld [vmem:[#allocation4 + $0x250] sm:$0xff]
    %v188 = vld [vmem:[#allocation4 + $0x258] sm:$0xff]
    %v189 = vld [vmem:[#allocation4 + $0x260] sm:$0xff]
    %v190 = vld [vmem:[#allocation4 + $0x268] sm:$0xff]
    %v191 = vld [vmem:[#allocation4 + $0x270] sm:$0xff]
    %v192 = vld [vmem:[#allocation4 + $0x278] sm:$0xff]
    %v193 = vld [vmem:[#allocation4 + $0x280] sm:$0xff]
    %v194 = vld [vmem:[#allocation4 + $0x288] sm:$0xff]
    %v195 = vld [vmem:[#allocation4 + $0x290] sm:$0xff]
    %v196 = vld [vmem:[#allocation4 + $0x298] sm:$0xff]
    %v197 = vld [vmem:[#allocation4 + $0x2a0] sm:$0xff]
    %v198 = vld [vmem:[#allocation4 + $0x2a8] sm:$0xff]
    %v199 = vld [vmem:[#allocation4 + $0x2b0] sm:$0xff]
    %v200 = vld [vmem:[#allocation4 + $0x2b8] sm:$0xff]
    %v201 = vld [vmem:[#allocation4 + $0x2c0] sm:$0xff]
    %v202 = vld [vmem:[#allocation4 + $0x2c8] sm:$0xff]
    %v203 = vld [vmem:[#allocation4 + $0x2d0] sm:$0xff]
    %v204 = vld [vmem:[#allocation4 + $0x2d8] sm:$0xff]
    %v205 = vld [vmem:[#allocation4 + $0x2e0] sm:$0xff]
    %v206 = vld [vmem:[#allocation4 + $0x2e8] sm:$0xff]
    %v207 = vld [vmem:[#allocation4 + $0x2f0] sm:$0xff]
    %v208 = vld [vmem:[#allocation4 + $0x2f8] sm:$0xff]
    %v209 = vld [vmem:[#allocation4 + $0x300] sm:$0xff]
    %v210 = vld [vmem:[#allocation4 + $0x308] sm:$0xff]
    %v211 = vld [vmem:[#allocation4 + $0x310] sm:$0xff]
    %v212 = vld [vmem:[#allocation4 + $0x318] sm:$0xff]
    %v213 = vld [vmem:[#allocation4 + $0x320] sm:$0xff]
    %v214 = vld [vmem:[#allocation4 + $0x328] sm:$0xff]
    %v215 = vld [vmem:[#allocation4 + $0x330] sm:$0xff]
    %v216 = vld [vmem:[#allocation4 + $0x338] sm:$0xff]
    %v217 = vld [vmem:[#allocation4 + $0x340] sm:$0xff]
    %v218 = vld [vmem:[#allocation4 + $0x348] sm:$0xff]
    %v219 = vld [vmem:[#allocation4 + $0x350] sm:$0xff]
    %v220 = vld [vmem:[#allocation4 + $0x358] sm:$0xff]
    %v221 = vld [vmem:[#allocation4 + $0x360] sm:$0xff]
    %v222 = vld [vmem:[#allocation4 + $0x368] sm:$0xff]
    %v223 = vld [vmem:[#allocation4 + $0x370] sm:$0xff]
    %v224 = vld [vmem:[#allocation4 + $0x378] sm:$0xff]
    %v225 = vld [vmem:[#allocation4 + $0x380] sm:$0xff]
    %v226 = vld [vmem:[#allocation4 + $0x388] sm:$0xff]
    %v227 = vld [vmem:[#allocation4 + $0x390] sm:$0xff]
    %v228 = vld [vmem:[#allocation4 + $0x398] sm:$0xff]
    %v229 = vld [vmem:[#allocation4 + $0x3a0] sm:$0xff]
    %v230 = vld [vmem:[#allocation4 + $0x3a8] sm:$0xff]
    %v231 = vld [vmem:[#allocation4 + $0x3b0] sm:$0xff]
    %v232 = vld [vmem:[#allocation4 + $0x3b8] sm:$0xff]
    %v233 = vld [vmem:[#allocation4 + $0x3c0] sm:$0xff]
    %v234 = vld [vmem:[#allocation4 + $0x3c8] sm:$0xff]
    %v235 = vld [vmem:[#allocation4 + $0x3d0] sm:$0xff]
    %v236 = vld [vmem:[#allocation4 + $0x3d8] sm:$0xff]
    %v237 = vld [vmem:[#allocation4 + $0x3e0] sm:$0xff]
    %v238 = vld [vmem:[#allocation4 + $0x3e8] sm:$0xff]
    %v239 = vld [vmem:[#allocation4 + $0x3f0] sm:$0xff]
    %v240 = vld [vmem:[#allocation4 + $0x3f8] sm:$0xff]
    %v241 = vld [vmem:[#allocation2] sm:$0xf]
    %v242 = vld [vmem:[#allocation2 + $0x4] sm:$0xf]
    %v243 = vld [vmem:[#allocation2 + $0x8] sm:$0xf]
    %v244 = vld [vmem:[#allocation2 + $0xc] sm:$0xf]
    %v245 = vld [vmem:[#allocation2 + $0x10] sm:$0xf]
    %v246 = vld [vmem:[#allocation2 + $0x14] sm:$0xf]
    %v247 = vld [vmem:[#allocation2 + $0x18] sm:$0xf]
    %v248 = vld [vmem:[#allocation2 + $0x1c] sm:$0xf]
    %v249 = vld [vmem:[#allocation2 + $0x20] sm:$0xf]
    %v250 = vld [vmem:[#allocation2 + $0x24] sm:$0xf]
    %v251 = vld [vmem:[#allocation2 + $0x28] sm:$0xf]
    %v252 = vld [vmem:[#allocation2 + $0x2c] sm:$0xf]
    %v253 = vld [vmem:[#allocation2 + $0x30] sm:$0xf]
    %v254 = vld [vmem:[#allocation2 + $0x34] sm:$0xf]
    %v255 = vld [vmem:[#allocation2 + $0x38] sm:$0xf]
    %v256 = vld [vmem:[#allocation2 + $0x3c] sm:$0xf]
    %v257 = vld [vmem:[#allocation2 + $0x40] sm:$0xf]
    %v258 = vld [vmem:[#allocation2 + $0x44] sm:$0xf]
    %v259 = vld [vmem:[#allocation2 + $0x48] sm:$0xf]
    %v260 = vld [vmem:[#allocation2 + $0x4c] sm:$0xf]
    %v261 = vld [vmem:[#allocation2 + $0x50] sm:$0xf]
    %v262 = vld [vmem:[#allocation2 + $0x54] sm:$0xf]
    %v263 = vld [vmem:[#allocation2 + $0x58] sm:$0xf]
    %v264 = vld [vmem:[#allocation2 + $0x5c] sm:$0xf]
    %v265 = vld [vmem:[#allocation2 + $0x60] sm:$0xf]
    %v266 = vld [vmem:[#allocation2 + $0x64] sm:$0xf]
    %v267 = vld [vmem:[#allocation2 + $0x68] sm:$0xf]
    %v268 = vld [vmem:[#allocation2 + $0x6c] sm:$0xf]
    %v269 = vld [vmem:[#allocation2 + $0x70] sm:$0xf]
    %v270 = vld [vmem:[#allocation2 + $0x74] sm:$0xf]
    %v271 = vld [vmem:[#allocation2 + $0x78] sm:$0xf]
    %v272 = vld [vmem:[#allocation2 + $0x7c] sm:$0xf]
    %v273 = vld [vmem:[#allocation2 + $0x80] sm:$0xf]
    %v274 = vld [vmem:[#allocation2 + $0x84] sm:$0xf]
    %v275 = vld [vmem:[#allocation2 + $0x88] sm:$0xf]
    %v276 = vld [vmem:[#allocation2 + $0x8c] sm:$0xf]
    %v277 = vld [vmem:[#allocation2 + $0x90] sm:$0xf]
    %v278 = vld [vmem:[#allocation2 + $0x94] sm:$0xf]
    %v279 = vld [vmem:[#allocation2 + $0x98] sm:$0xf]
    %v280 = vld [vmem:[#allocation2 + $0x9c] sm:$0xf]
    %v281 = vld [vmem:[#allocation2 + $0xa0] sm:$0xf]
    %v282 = vld [vmem:[#allocation2 + $0xa4] sm:$0xf]
    %v283 = vld [vmem:[#allocation2 + $0xa8] sm:$0xf]
    %v284 = vld [vmem:[#allocation2 + $0xac] sm:$0xf]
    %v285 = vld [vmem:[#allocation2 + $0xb0] sm:$0xf]
    %v286 = vld [vmem:[#allocation2 + $0xb4] sm:$0xf]
    %v287 = vld [vmem:[#allocation2 + $0xb8] sm:$0xf]
    %v288 = vld [vmem:[#allocation2 + $0xbc] sm:$0xf]
    %v289 = vld [vmem:[#allocation2 + $0xc0] sm:$0xf]
    %v290 = vld [vmem:[#allocation2 + $0xc4] sm:$0xf]
    %v291 = vld [vmem:[#allocation2 + $0xc8] sm:$0xf]
    %v292 = vld [vmem:[#allocation2 + $0xcc] sm:$0xf]
    %v293 = vld [vmem:[#allocation2 + $0xd0] sm:$0xf]
    %v294 = vld [vmem:[#allocation2 + $0xd4] sm:$0xf]
    %v295 = vld [vmem:[#allocation2 + $0xd8] sm:$0xf]
    %v296 = vld [vmem:[#allocation2 + $0xdc] sm:$0xf]
    %v297 = vld [vmem:[#allocation2 + $0xe0] sm:$0xf]
    %v298 = vld [vmem:[#allocation2 + $0xe4] sm:$0xf]
    %v299 = vld [vmem:[#allocation2 + $0xe8] sm:$0xf]
    %v300 = vld [vmem:[#allocation2 + $0xec] sm:$0xf]
    %v301 = vld [vmem:[#allocation2 + $0xf0] sm:$0xf]
    %v302 = vld [vmem:[#allocation2 + $0xf4] sm:$0xf]
    %v303 = vld [vmem:[#allocation2 + $0xf8] sm:$0xf]
    %v304 = vld [vmem:[#allocation2 + $0xfc] sm:$0xf]
    %v305 = vld [vmem:[#allocation6] sm:$0xf]
    %v306 = vld [vmem:[#allocation6 + $0x4] sm:$0xf]
    %v307 = vld [vmem:[#allocation6 + $0x8] sm:$0xf]
    %v308 = vld [vmem:[#allocation6 + $0xc] sm:$0xf]
    %v309 = vld [vmem:[#allocation6 + $0x10] sm:$0xf]
    %v310 = vld [vmem:[#allocation6 + $0x14] sm:$0xf]
    %v311 = vld [vmem:[#allocation6 + $0x18] sm:$0xf]
    %v312 = vld [vmem:[#allocation6 + $0x1c] sm:$0xf]
    %v313 = vld [vmem:[#allocation6 + $0x20] sm:$0xf]
    %v314 = vld [vmem:[#allocation6 + $0x24] sm:$0xf]
    %v315 = vld [vmem:[#allocation6 + $0x28] sm:$0xf]
    %v316 = vld [vmem:[#allocation6 + $0x2c] sm:$0xf]
    %v317 = vld [vmem:[#allocation6 + $0x30] sm:$0xf]
    %v318 = vld [vmem:[#allocation6 + $0x34] sm:$0xf]
    %v319 = vld [vmem:[#allocation6 + $0x38] sm:$0xf]
    %v320 = vld [vmem:[#allocation6 + $0x3c] sm:$0xf]
    %v385 = vunpack.c.l.b16 %v241
    %v386 = vunpack.c.l.b16 %v242
    %v387 = vunpack.c.l.b16 %v243
    %v388 = vunpack.c.l.b16 %v244
    %v389 = vunpack.c.l.b16 %v245
    %v390 = vunpack.c.l.b16 %v246
    %v391 = vunpack.c.l.b16 %v247
    %v392 = vunpack.c.l.b16 %v248
    %v393 = vunpack.c.l.b16 %v249
    %v394 = vunpack.c.l.b16 %v250
    %v395 = vunpack.c.l.b16 %v251
    %v396 = vunpack.c.l.b16 %v252
    %v397 = vunpack.c.l.b16 %v253
    %v398 = vunpack.c.l.b16 %v254
    %v399 = vunpack.c.l.b16 %v255
    %v400 = vunpack.c.l.b16 %v256
    %v401 = vunpack.c.l.b16 %v257
    %v402 = vunpack.c.l.b16 %v258
    %v403 = vunpack.c.l.b16 %v259
    %v404 = vunpack.c.l.b16 %v260
    %v405 = vunpack.c.l.b16 %v261
    %v406 = vunpack.c.l.b16 %v262
    %v407 = vunpack.c.l.b16 %v263
    %v408 = vunpack.c.l.b16 %v264
    %v409 = vunpack.c.l.b16 %v265
    %v410 = vunpack.c.l.b16 %v266
    %v411 = vunpack.c.l.b16 %v267
    %v412 = vunpack.c.l.b16 %v268
    %v413 = vunpack.c.l.b16 %v269
    %v414 = vunpack.c.l.b16 %v270
    %v415 = vunpack.c.l.b16 %v271
    %v416 = vunpack.c.l.b16 %v272
    %v417 = vunpack.c.l.b16 %v273
    %v418 = vunpack.c.l.b16 %v274
    %v419 = vunpack.c.l.b16 %v275
    %v420 = vunpack.c.l.b16 %v276
    %v421 = vunpack.c.l.b16 %v277
    %v422 = vunpack.c.l.b16 %v278
    %v423 = vunpack.c.l.b16 %v279
    %v424 = vunpack.c.l.b16 %v280
    %v425 = vunpack.c.l.b16 %v281
    %v426 = vunpack.c.l.b16 %v282
    %v427 = vunpack.c.l.b16 %v283
    %v428 = vunpack.c.l.b16 %v284
    %v429 = vunpack.c.l.b16 %v285
    %v430 = vunpack.c.l.b16 %v286
    %v431 = vunpack.c.l.b16 %v287
    %v432 = vunpack.c.l.b16 %v288
    %v433 = vunpack.c.l.b16 %v289
    %v434 = vunpack.c.l.b16 %v290
    %v435 = vunpack.c.l.b16 %v291
    %v436 = vunpack.c.l.b16 %v292
    %v437 = vunpack.c.l.b16 %v293
    %v438 = vunpack.c.l.b16 %v294
    %v439 = vunpack.c.l.b16 %v295
    %v440 = vunpack.c.l.b16 %v296
    %v441 = vunpack.c.l.b16 %v297
    %v442 = vunpack.c.l.b16 %v298
    %v443 = vunpack.c.l.b16 %v299
    %v444 = vunpack.c.l.b16 %v300
    %v445 = vunpack.c.l.b16 %v301
    %v446 = vunpack.c.l.b16 %v302
    %v447 = vunpack.c.l.b16 %v303
    %v448 = vunpack.c.l.b16 %v304
    %v449 = vpack.c.b16 %v386, %v385
    %v450 = vpack.c.b16 %v388, %v387
    %v451 = vpack.c.b16 %v390, %v389
    %v452 = vpack.c.b16 %v392, %v391
    %v453 = vpack.c.b16 %v394, %v393
    %v454 = vpack.c.b16 %v396, %v395
    %v455 = vpack.c.b16 %v398, %v397
    %v456 = vpack.c.b16 %v400, %v399
    %v457 = vpack.c.b16 %v402, %v401
    %v458 = vpack.c.b16 %v404, %v403
    %v459 = vpack.c.b16 %v406, %v405
    %v460 = vpack.c.b16 %v408, %v407
    %v461 = vpack.c.b16 %v410, %v409
    %v462 = vpack.c.b16 %v412, %v411
    %v463 = vpack.c.b16 %v414, %v413
    %v464 = vpack.c.b16 %v416, %v415
    %v465 = vpack.c.b16 %v418, %v417
    %v466 = vpack.c.b16 %v420, %v419
    %v467 = vpack.c.b16 %v422, %v421
    %v468 = vpack.c.b16 %v424, %v423
    %v469 = vpack.c.b16 %v426, %v425
    %v470 = vpack.c.b16 %v428, %v427
    %v471 = vpack.c.b16 %v430, %v429
    %v472 = vpack.c.b16 %v432, %v431
    %v473 = vpack.c.b16 %v434, %v433
    %v474 = vpack.c.b16 %v436, %v435
    %v475 = vpack.c.b16 %v438, %v437
    %v476 = vpack.c.b16 %v440, %v439
    %v477 = vpack.c.b16 %v442, %v441
    %v478 = vpack.c.b16 %v444, %v443
    %v479 = vpack.c.b16 %v446, %v445
    %v480 = vpack.c.b16 %v448, %v447
    %v529 = vunpack.c.l.b16 %v305
    %v530 = vunpack.c.l.b16 %v306
    %v531 = vunpack.c.l.b16 %v307
    %v532 = vunpack.c.l.b16 %v308
    %v533 = vunpack.c.l.b16 %v309
    %v534 = vunpack.c.l.b16 %v310
    %v535 = vunpack.c.l.b16 %v311
    %v536 = vunpack.c.l.b16 %v312
    %v537 = vunpack.c.l.b16 %v313
    %v538 = vunpack.c.l.b16 %v314
    %v539 = vunpack.c.l.b16 %v315
    %v540 = vunpack.c.l.b16 %v316
    %v541 = vunpack.c.l.b16 %v317
    %v542 = vunpack.c.l.b16 %v318
    %v543 = vunpack.c.l.b16 %v319
    %v544 = vunpack.c.l.b16 %v320
    %v545 = vpack.c.b16 %v530, %v529
    %v546 = vpack.c.b16 %v532, %v531
    %v547 = vpack.c.b16 %v534, %v533
    %v548 = vpack.c.b16 %v536, %v535
    %v549 = vpack.c.b16 %v538, %v537
    %v550 = vpack.c.b16 %v540, %v539
    %v551 = vpack.c.b16 %v542, %v541
    %v552 = vpack.c.b16 %v544, %v543
    %561 = vmatpush.bf16.msra.mxu0 %v552
    %562 = vmatpush.bf16.msra.mxu0 %v551
    %563 = vmatpush.bf16.msra.mxu0 %v550
    %564 = vmatpush.bf16.msra.mxu0 %v549
    %565 = vmatpush.bf16.msra.mxu0 %v548
    %566 = vmatpush.bf16.msra.mxu0 %v547
    %567 = vmatpush.bf16.msra.mxu0 %v546
    %568 = vmatpush.bf16.msra.mxu0 %v545
    %569 = vmatmul.bf16.gmra.mxu0 %v449
    %v570 = vpop.f32.mrf.mxu0
    %v571 = vadd.f32 0.0, %v570
    %v572 = vpop.f32.mrf.mxu0
    %v573 = vadd.f32 0.0, %v572
    %574 = vmatmul.bf16.gmra.mxu0 %v450
    %v575 = vpop.f32.mrf.mxu0
    %v576 = vadd.f32 0.0, %v575
    %v577 = vpop.f32.mrf.mxu0
    %v578 = vadd.f32 0.0, %v577
    %579 = vmatmul.bf16.gmra.mxu0 %v451
    %v580 = vpop.f32.mrf.mxu0
    %v581 = vadd.f32 0.0, %v580
    %v582 = vpop.f32.mrf.mxu0
    %v583 = vadd.f32 0.0, %v582
    %584 = vmatmul.bf16.gmra.mxu0 %v452
    %v585 = vpop.f32.mrf.mxu0
    %v586 = vadd.f32 0.0, %v585
    %v587 = vpop.f32.mrf.mxu0
    %v588 = vadd.f32 0.0, %v587
    %589 = vmatmul.bf16.gmra.mxu0 %v453
    %v590 = vpop.f32.mrf.mxu0
    %v591 = vadd.f32 0.0, %v590
    %v592 = vpop.f32.mrf.mxu0
    %v593 = vadd.f32 0.0, %v592
    %594 = vmatmul.bf16.gmra.mxu0 %v454
    %v595 = vpop.f32.mrf.mxu0
    %v596 = vadd.f32 0.0, %v595
    %v597 = vpop.f32.mrf.mxu0
    %v598 = vadd.f32 0.0, %v597
    %599 = vmatmul.bf16.gmra.mxu0 %v455
    %v600 = vpop.f32.mrf.mxu0
    %v601 = vadd.f32 0.0, %v600
    %v602 = vpop.f32.mrf.mxu0
    %v603 = vadd.f32 0.0, %v602
    %604 = vmatmul.bf16.gmra.mxu0 %v456
    %v605 = vpop.f32.mrf.mxu0
    %v606 = vadd.f32 0.0, %v605
    %v607 = vpop.f32.mrf.mxu0
    %v608 = vadd.f32 0.0, %v607
    %609 = vmatmul.bf16.gmra.mxu0 %v457
    %v610 = vpop.f32.mrf.mxu0
    %v611 = vadd.f32 0.0, %v610
    %v612 = vpop.f32.mrf.mxu0
    %v613 = vadd.f32 0.0, %v612
    %614 = vmatmul.bf16.gmra.mxu0 %v458
    %v615 = vpop.f32.mrf.mxu0
    %v616 = vadd.f32 0.0, %v615
    %v617 = vpop.f32.mrf.mxu0
    %v618 = vadd.f32 0.0, %v617
    %619 = vmatmul.bf16.gmra.mxu0 %v459
    %v620 = vpop.f32.mrf.mxu0
    %v621 = vadd.f32 0.0, %v620
    %v622 = vpop.f32.mrf.mxu0
    %v623 = vadd.f32 0.0, %v622
    %624 = vmatmul.bf16.gmra.mxu0 %v460
    %v625 = vpop.f32.mrf.mxu0
    %v626 = vadd.f32 0.0, %v625
    %v627 = vpop.f32.mrf.mxu0
    %v628 = vadd.f32 0.0, %v627
    %629 = vmatmul.bf16.gmra.mxu0 %v461
    %v630 = vpop.f32.mrf.mxu0
    %v631 = vadd.f32 0.0, %v630
    %v632 = vpop.f32.mrf.mxu0
    %v633 = vadd.f32 0.0, %v632
    %634 = vmatmul.bf16.gmra.mxu0 %v462
    %v635 = vpop.f32.mrf.mxu0
    %v636 = vadd.f32 0.0, %v635
    %v637 = vpop.f32.mrf.mxu0
    %v638 = vadd.f32 0.0, %v637
    %639 = vmatmul.bf16.gmra.mxu0 %v463
    %v640 = vpop.f32.mrf.mxu0
    %v641 = vadd.f32 0.0, %v640
    %v642 = vpop.f32.mrf.mxu0
    %v643 = vadd.f32 0.0, %v642
    %644 = vmatmul.bf16.gmra.mxu0 %v464
    %v645 = vpop.f32.mrf.mxu0
    %v646 = vadd.f32 0.0, %v645
    %v647 = vpop.f32.mrf.mxu0
    %v648 = vadd.f32 0.0, %v647
    %649 = vmatmul.bf16.gmra.mxu0 %v465
    %v650 = vpop.f32.mrf.mxu0
    %v651 = vadd.f32 0.0, %v650
    %v652 = vpop.f32.mrf.mxu0
    %v653 = vadd.f32 0.0, %v652
    %654 = vmatmul.bf16.gmra.mxu0 %v466
    %v655 = vpop.f32.mrf.mxu0
    %v656 = vadd.f32 0.0, %v655
    %v657 = vpop.f32.mrf.mxu0
    %v658 = vadd.f32 0.0, %v657
    %659 = vmatmul.bf16.gmra.mxu0 %v467
    %v660 = vpop.f32.mrf.mxu0
    %v661 = vadd.f32 0.0, %v660
    %v662 = vpop.f32.mrf.mxu0
    %v663 = vadd.f32 0.0, %v662
    %664 = vmatmul.bf16.gmra.mxu0 %v468
    %v665 = vpop.f32.mrf.mxu0
    %v666 = vadd.f32 0.0, %v665
    %v667 = vpop.f32.mrf.mxu0
    %v668 = vadd.f32 0.0, %v667
    %669 = vmatmul.bf16.gmra.mxu0 %v469
    %v670 = vpop.f32.mrf.mxu0
    %v671 = vadd.f32 0.0, %v670
    %v672 = vpop.f32.mrf.mxu0
    %v673 = vadd.f32 0.0, %v672
    %674 = vmatmul.bf16.gmra.mxu0 %v470
    %v675 = vpop.f32.mrf.mxu0
    %v676 = vadd.f32 0.0, %v675
    %v677 = vpop.f32.mrf.mxu0
    %v678 = vadd.f32 0.0, %v677
    %679 = vmatmul.bf16.gmra.mxu0 %v471
    %v680 = vpop.f32.mrf.mxu0
    %v681 = vadd.f32 0.0, %v680
    %v682 = vpop.f32.mrf.mxu0
    %v683 = vadd.f32 0.0, %v682
    %684 = vmatmul.bf16.gmra.mxu0 %v472
    %v685 = vpop.f32.mrf.mxu0
    %v686 = vadd.f32 0.0, %v685
    %v687 = vpop.f32.mrf.mxu0
    %v688 = vadd.f32 0.0, %v687
    %689 = vmatmul.bf16.gmra.mxu0 %v473
    %v690 = vpop.f32.mrf.mxu0
    %v691 = vadd.f32 0.0, %v690
    %v692 = vpop.f32.mrf.mxu0
    %v693 = vadd.f32 0.0, %v692
    %694 = vmatmul.bf16.gmra.mxu0 %v474
    %v695 = vpop.f32.mrf.mxu0
    %v696 = vadd.f32 0.0, %v695
    %v697 = vpop.f32.mrf.mxu0
    %v698 = vadd.f32 0.0, %v697
    %699 = vmatmul.bf16.gmra.mxu0 %v475
    %v700 = vpop.f32.mrf.mxu0
    %v701 = vadd.f32 0.0, %v700
    %v702 = vpop.f32.mrf.mxu0
    %v703 = vadd.f32 0.0, %v702
    %704 = vmatmul.bf16.gmra.mxu0 %v476
    %v705 = vpop.f32.mrf.mxu0
    %v706 = vadd.f32 0.0, %v705
    %v707 = vpop.f32.mrf.mxu0
    %v708 = vadd.f32 0.0, %v707
    %709 = vmatmul.bf16.gmra.mxu0 %v477
    %v710 = vpop.f32.mrf.mxu0
    %v711 = vadd.f32 0.0, %v710
    %v712 = vpop.f32.mrf.mxu0
    %v713 = vadd.f32 0.0, %v712
    %714 = vmatmul.bf16.gmra.mxu0 %v478
    %v715 = vpop.f32.mrf.mxu0
    %v716 = vadd.f32 0.0, %v715
    %v717 = vpop.f32.mrf.mxu0
    %v718 = vadd.f32 0.0, %v717
    %719 = vmatmul.bf16.gmra.mxu0 %v479
    %v720 = vpop.f32.mrf.mxu0
    %v721 = vadd.f32 0.0, %v720
    %v722 = vpop.f32.mrf.mxu0
    %v723 = vadd.f32 0.0, %v722
    %724 = vmatmul.bf16.gmra.mxu0 %v480
    %v725 = vpop.f32.mrf.mxu0
    %v726 = vadd.f32 0.0, %v725
    %v727 = vpop.f32.mrf.mxu0
    %v728 = vadd.f32 0.0, %v727
    %729 = vdwg.mxu0
    %v730 = vpack.c.bf16 %v573, %v571
    %v731 = vpack.c.bf16 %v578, %v576
    %v732 = vpack.c.bf16 %v583, %v581
    %v733 = vpack.c.bf16 %v588, %v586
    %v734 = vpack.c.bf16 %v593, %v591
    %v735 = vpack.c.bf16 %v598, %v596
    %v736 = vpack.c.bf16 %v603, %v601
    %v737 = vpack.c.bf16 %v608, %v606
    %v738 = vpack.c.bf16 %v613, %v611
    %v739 = vpack.c.bf16 %v618, %v616
    %v740 = vpack.c.bf16 %v623, %v621
    %v741 = vpack.c.bf16 %v628, %v626
    %v742 = vpack.c.bf16 %v633, %v631
    %v743 = vpack.c.bf16 %v638, %v636
    %v744 = vpack.c.bf16 %v643, %v641
    %v745 = vpack.c.bf16 %v648, %v646
    %v746 = vpack.c.bf16 %v653, %v651
    %v747 = vpack.c.bf16 %v658, %v656
    %v748 = vpack.c.bf16 %v663, %v661
    %v749 = vpack.c.bf16 %v668, %v666
    %v750 = vpack.c.bf16 %v673, %v671
    %v751 = vpack.c.bf16 %v678, %v676
    %v752 = vpack.c.bf16 %v683, %v681
    %v753 = vpack.c.bf16 %v688, %v686
    %v754 = vpack.c.bf16 %v693, %v691
    %v755 = vpack.c.bf16 %v698, %v696
    %v756 = vpack.c.bf16 %v703, %v701
    %v757 = vpack.c.bf16 %v708, %v706
    %v758 = vpack.c.bf16 %v713, %v711
    %v759 = vpack.c.bf16 %v718, %v716
    %v760 = vpack.c.bf16 %v723, %v721
    %v761 = vpack.c.bf16 %v728, %v726
    %v762 = vld [vmem:[%s5] sm:$0x1]
    %v764 = vperm.slane %v762, 0
    %v894 = vunpack.c.l.b16 %v113
    %v895 = vunpack.c.h.b16 %v113
    %v896 = vunpack.c.l.b16 %v114
    %v897 = vunpack.c.h.b16 %v114
    %v898 = vunpack.c.l.b16 %v115
    %v899 = vunpack.c.h.b16 %v115
    %v900 = vunpack.c.l.b16 %v116
    %v901 = vunpack.c.h.b16 %v116
    %v902 = vunpack.c.l.b16 %v117
    %v903 = vunpack.c.h.b16 %v117
    %v904 = vunpack.c.l.b16 %v118
    %v905 = vunpack.c.h.b16 %v118
    %v906 = vunpack.c.l.b16 %v119
    %v907 = vunpack.c.h.b16 %v119
    %v908 = vunpack.c.l.b16 %v120
    %v909 = vunpack.c.h.b16 %v120
    %v910 = vunpack.c.l.b16 %v121
    %v911 = vunpack.c.h.b16 %v121
    %v912 = vunpack.c.l.b16 %v122
    %v913 = vunpack.c.h.b16 %v122
    %v914 = vunpack.c.l.b16 %v123
    %v915 = vunpack.c.h.b16 %v123
    %v916 = vunpack.c.l.b16 %v124
    %v917 = vunpack.c.h.b16 %v124
    %v918 = vunpack.c.l.b16 %v125
    %v919 = vunpack.c.h.b16 %v125
    %v920 = vunpack.c.l.b16 %v126
    %v921 = vunpack.c.h.b16 %v126
    %v922 = vunpack.c.l.b16 %v127
    %v923 = vunpack.c.h.b16 %v127
    %v924 = vunpack.c.l.b16 %v128
    %v925 = vunpack.c.h.b16 %v128
    %v926 = vunpack.c.l.b16 %v129
    %v927 = vunpack.c.h.b16 %v129
    %v928 = vunpack.c.l.b16 %v130
    %v929 = vunpack.c.h.b16 %v130
    %v930 = vunpack.c.l.b16 %v131
    %v931 = vunpack.c.h.b16 %v131
    %v932 = vunpack.c.l.b16 %v132
    %v933 = vunpack.c.h.b16 %v132
    %v934 = vunpack.c.l.b16 %v133
    %v935 = vunpack.c.h.b16 %v133
    %v936 = vunpack.c.l.b16 %v134
    %v937 = vunpack.c.h.b16 %v134
    %v938 = vunpack.c.l.b16 %v135
    %v939 = vunpack.c.h.b16 %v135
    %v940 = vunpack.c.l.b16 %v136
    %v941 = vunpack.c.h.b16 %v136
    %v942 = vunpack.c.l.b16 %v137
    %v943 = vunpack.c.h.b16 %v137
    %v944 = vunpack.c.l.b16 %v138
    %v945 = vunpack.c.h.b16 %v138
    %v946 = vunpack.c.l.b16 %v139
    %v947 = vunpack.c.h.b16 %v139
    %v948 = vunpack.c.l.b16 %v140
    %v949 = vunpack.c.h.b16 %v140
    %v950 = vunpack.c.l.b16 %v141
    %v951 = vunpack.c.h.b16 %v141
    %v952 = vunpack.c.l.b16 %v142
    %v953 = vunpack.c.h.b16 %v142
    %v954 = vunpack.c.l.b16 %v143
    %v955 = vunpack.c.h.b16 %v143
    %v956 = vunpack.c.l.b16 %v144
    %v957 = vunpack.c.h.b16 %v144
    %v958 = vunpack.c.l.b16 %v145
    %v959 = vunpack.c.h.b16 %v145
    %v960 = vunpack.c.l.b16 %v146
    %v961 = vunpack.c.h.b16 %v146
    %v962 = vunpack.c.l.b16 %v147
    %v963 = vunpack.c.h.b16 %v147
    %v964 = vunpack.c.l.b16 %v148
    %v965 = vunpack.c.h.b16 %v148
    %v966 = vunpack.c.l.b16 %v149
    %v967 = vunpack.c.h.b16 %v149
    %v968 = vunpack.c.l.b16 %v150
    %v969 = vunpack.c.h.b16 %v150
    %v970 = vunpack.c.l.b16 %v151
    %v971 = vunpack.c.h.b16 %v151
    %v972 = vunpack.c.l.b16 %v152
    %v973 = vunpack.c.h.b16 %v152
    %v974 = vunpack.c.l.b16 %v153
    %v975 = vunpack.c.h.b16 %v153
    %v976 = vunpack.c.l.b16 %v154
    %v977 = vunpack.c.h.b16 %v154
    %v978 = vunpack.c.l.b16 %v155
    %v979 = vunpack.c.h.b16 %v155
    %v980 = vunpack.c.l.b16 %v156
    %v981 = vunpack.c.h.b16 %v156
    %v982 = vunpack.c.l.b16 %v157
    %v983 = vunpack.c.h.b16 %v157
    %v984 = vunpack.c.l.b16 %v158
    %v985 = vunpack.c.h.b16 %v158
    %v986 = vunpack.c.l.b16 %v159
    %v987 = vunpack.c.h.b16 %v159
    %v988 = vunpack.c.l.b16 %v160
    %v989 = vunpack.c.h.b16 %v160
    %v990 = vunpack.c.l.b16 %v161
    %v991 = vunpack.c.h.b16 %v161
    %v992 = vunpack.c.l.b16 %v162
    %v993 = vunpack.c.h.b16 %v162
    %v994 = vunpack.c.l.b16 %v163
    %v995 = vunpack.c.h.b16 %v163
    %v996 = vunpack.c.l.b16 %v164
    %v997 = vunpack.c.h.b16 %v164
    %v998 = vunpack.c.l.b16 %v165
    %v999 = vunpack.c.h.b16 %v165
    %v1000 = vunpack.c.l.b16 %v166
    %v1001 = vunpack.c.h.b16 %v166
    %v1002 = vunpack.c.l.b16 %v167
    %v1003 = vunpack.c.h.b16 %v167
    %v1004 = vunpack.c.l.b16 %v168
    %v1005 = vunpack.c.h.b16 %v168
    %v1006 = vunpack.c.l.b16 %v169
    %v1007 = vunpack.c.h.b16 %v169
    %v1008 = vunpack.c.l.b16 %v170
    %v1009 = vunpack.c.h.b16 %v170
    %v1010 = vunpack.c.l.b16 %v171
    %v1011 = vunpack.c.h.b16 %v171
    %v1012 = vunpack.c.l.b16 %v172
    %v1013 = vunpack.c.h.b16 %v172
    %v1014 = vunpack.c.l.b16 %v173
    %v1015 = vunpack.c.h.b16 %v173
    %v1016 = vunpack.c.l.b16 %v174
    %v1017 = vunpack.c.h.b16 %v174
    %v1018 = vunpack.c.l.b16 %v175
    %v1019 = vunpack.c.h.b16 %v175
    %v1020 = vunpack.c.l.b16 %v176
    %v1021 = vunpack.c.h.b16 %v176
    %v1022 = vunpack.c.l.b16 %v177
    %v1023 = vunpack.c.h.b16 %v177
    %v1024 = vunpack.c.l.b16 %v178
    %v1025 = vunpack.c.h.b16 %v178
    %v1026 = vunpack.c.l.b16 %v179
    %v1027 = vunpack.c.h.b16 %v179
    %v1028 = vunpack.c.l.b16 %v180
    %v1029 = vunpack.c.h.b16 %v180
    %v1030 = vunpack.c.l.b16 %v181
    %v1031 = vunpack.c.h.b16 %v181
    %v1032 = vunpack.c.l.b16 %v182
    %v1033 = vunpack.c.h.b16 %v182
    %v1034 = vunpack.c.l.b16 %v183
    %v1035 = vunpack.c.h.b16 %v183
    %v1036 = vunpack.c.l.b16 %v184
    %v1037 = vunpack.c.h.b16 %v184
    %v1038 = vunpack.c.l.b16 %v185
    %v1039 = vunpack.c.h.b16 %v185
    %v1040 = vunpack.c.l.b16 %v186
    %v1041 = vunpack.c.h.b16 %v186
    %v1042 = vunpack.c.l.b16 %v187
    %v1043 = vunpack.c.h.b16 %v187
    %v1044 = vunpack.c.l.b16 %v188
    %v1045 = vunpack.c.h.b16 %v188
    %v1046 = vunpack.c.l.b16 %v189
    %v1047 = vunpack.c.h.b16 %v189
    %v1048 = vunpack.c.l.b16 %v190
    %v1049 = vunpack.c.h.b16 %v190
    %v1050 = vunpack.c.l.b16 %v191
    %v1051 = vunpack.c.h.b16 %v191
    %v1052 = vunpack.c.l.b16 %v192
    %v1053 = vunpack.c.h.b16 %v192
    %v1054 = vunpack.c.l.b16 %v193
    %v1055 = vunpack.c.h.b16 %v193
    %v1056 = vunpack.c.l.b16 %v194
    %v1057 = vunpack.c.h.b16 %v194
    %v1058 = vunpack.c.l.b16 %v195
    %v1059 = vunpack.c.h.b16 %v195
    %v1060 = vunpack.c.l.b16 %v196
    %v1061 = vunpack.c.h.b16 %v196
    %v1062 = vunpack.c.l.b16 %v197
    %v1063 = vunpack.c.h.b16 %v197
    %v1064 = vunpack.c.l.b16 %v198
    %v1065 = vunpack.c.h.b16 %v198
    %v1066 = vunpack.c.l.b16 %v199
    %v1067 = vunpack.c.h.b16 %v199
    %v1068 = vunpack.c.l.b16 %v200
    %v1069 = vunpack.c.h.b16 %v200
    %v1070 = vunpack.c.l.b16 %v201
    %v1071 = vunpack.c.h.b16 %v201
    %v1072 = vunpack.c.l.b16 %v202
    %v1073 = vunpack.c.h.b16 %v202
    %v1074 = vunpack.c.l.b16 %v203
    %v1075 = vunpack.c.h.b16 %v203
    %v1076 = vunpack.c.l.b16 %v204
    %v1077 = vunpack.c.h.b16 %v204
    %v1078 = vunpack.c.l.b16 %v205
    %v1079 = vunpack.c.h.b16 %v205
    %v1080 = vunpack.c.l.b16 %v206
    %v1081 = vunpack.c.h.b16 %v206
    %v1082 = vunpack.c.l.b16 %v207
    %v1083 = vunpack.c.h.b16 %v207
    %v1084 = vunpack.c.l.b16 %v208
    %v1085 = vunpack.c.h.b16 %v208
    %v1086 = vunpack.c.l.b16 %v209
    %v1087 = vunpack.c.h.b16 %v209
    %v1088 = vunpack.c.l.b16 %v210
    %v1089 = vunpack.c.h.b16 %v210
    %v1090 = vunpack.c.l.b16 %v211
    %v1091 = vunpack.c.h.b16 %v211
    %v1092 = vunpack.c.l.b16 %v212
    %v1093 = vunpack.c.h.b16 %v212
    %v1094 = vunpack.c.l.b16 %v213
    %v1095 = vunpack.c.h.b16 %v213
    %v1096 = vunpack.c.l.b16 %v214
    %v1097 = vunpack.c.h.b16 %v214
    %v1098 = vunpack.c.l.b16 %v215
    %v1099 = vunpack.c.h.b16 %v215
    %v1100 = vunpack.c.l.b16 %v216
    %v1101 = vunpack.c.h.b16 %v216
    %v1102 = vunpack.c.l.b16 %v217
    %v1103 = vunpack.c.h.b16 %v217
    %v1104 = vunpack.c.l.b16 %v218
    %v1105 = vunpack.c.h.b16 %v218
    %v1106 = vunpack.c.l.b16 %v219
    %v1107 = vunpack.c.h.b16 %v219
    %v1108 = vunpack.c.l.b16 %v220
    %v1109 = vunpack.c.h.b16 %v220
    %v1110 = vunpack.c.l.b16 %v221
    %v1111 = vunpack.c.h.b16 %v221
    %v1112 = vunpack.c.l.b16 %v222
    %v1113 = vunpack.c.h.b16 %v222
    %v1114 = vunpack.c.l.b16 %v223
    %v1115 = vunpack.c.h.b16 %v223
    %v1116 = vunpack.c.l.b16 %v224
    %v1117 = vunpack.c.h.b16 %v224
    %v1118 = vunpack.c.l.b16 %v225
    %v1119 = vunpack.c.h.b16 %v225
    %v1120 = vunpack.c.l.b16 %v226
    %v1121 = vunpack.c.h.b16 %v226
    %v1122 = vunpack.c.l.b16 %v227
    %v1123 = vunpack.c.h.b16 %v227
    %v1124 = vunpack.c.l.b16 %v228
    %v1125 = vunpack.c.h.b16 %v228
    %v1126 = vunpack.c.l.b16 %v229
    %v1127 = vunpack.c.h.b16 %v229
    %v1128 = vunpack.c.l.b16 %v230
    %v1129 = vunpack.c.h.b16 %v230
    %v1130 = vunpack.c.l.b16 %v231
    %v1131 = vunpack.c.h.b16 %v231
    %v1132 = vunpack.c.l.b16 %v232
    %v1133 = vunpack.c.h.b16 %v232
    %v1134 = vunpack.c.l.b16 %v233
    %v1135 = vunpack.c.h.b16 %v233
    %v1136 = vunpack.c.l.b16 %v234
    %v1137 = vunpack.c.h.b16 %v234
    %v1138 = vunpack.c.l.b16 %v235
    %v1139 = vunpack.c.h.b16 %v235
    %v1140 = vunpack.c.l.b16 %v236
    %v1141 = vunpack.c.h.b16 %v236
    %v1142 = vunpack.c.l.b16 %v237
    %v1143 = vunpack.c.h.b16 %v237
    %v1144 = vunpack.c.l.b16 %v238
    %v1145 = vunpack.c.h.b16 %v238
    %v1146 = vunpack.c.l.b16 %v239
    %v1147 = vunpack.c.h.b16 %v239
    %v1148 = vunpack.c.l.b16 %v240
    %v1149 = vunpack.c.h.b16 %v240
    %v1150 = vpack.c.b16 %v898, %v894
    %v1151 = vpack.c.b16 %v899, %v895
    %v1152 = vpack.c.b16 %v900, %v896
    %v1153 = vpack.c.b16 %v901, %v897
    %v1154 = vpack.c.b16 %v906, %v902
    %v1155 = vpack.c.b16 %v907, %v903
    %v1156 = vpack.c.b16 %v908, %v904
    %v1157 = vpack.c.b16 %v909, %v905
    %v1158 = vpack.c.b16 %v914, %v910
    %v1159 = vpack.c.b16 %v915, %v911
    %v1160 = vpack.c.b16 %v916, %v912
    %v1161 = vpack.c.b16 %v917, %v913
    %v1162 = vpack.c.b16 %v922, %v918
    %v1163 = vpack.c.b16 %v923, %v919
    %v1164 = vpack.c.b16 %v924, %v920
    %v1165 = vpack.c.b16 %v925, %v921
    %v1166 = vpack.c.b16 %v930, %v926
    %v1167 = vpack.c.b16 %v931, %v927
    %v1168 = vpack.c.b16 %v932, %v928
    %v1169 = vpack.c.b16 %v933, %v929
    %v1170 = vpack.c.b16 %v938, %v934
    %v1171 = vpack.c.b16 %v939, %v935
    %v1172 = vpack.c.b16 %v940, %v936
    %v1173 = vpack.c.b16 %v941, %v937
    %v1174 = vpack.c.b16 %v946, %v942
    %v1175 = vpack.c.b16 %v947, %v943
    %v1176 = vpack.c.b16 %v948, %v944
    %v1177 = vpack.c.b16 %v949, %v945
    %v1178 = vpack.c.b16 %v954, %v950
    %v1179 = vpack.c.b16 %v955, %v951
    %v1180 = vpack.c.b16 %v956, %v952
    %v1181 = vpack.c.b16 %v957, %v953
    %v1182 = vpack.c.b16 %v962, %v958
    %v1183 = vpack.c.b16 %v963, %v959
    %v1184 = vpack.c.b16 %v964, %v960
    %v1185 = vpack.c.b16 %v965, %v961
    %v1186 = vpack.c.b16 %v970, %v966
    %v1187 = vpack.c.b16 %v971, %v967
    %v1188 = vpack.c.b16 %v972, %v968
    %v1189 = vpack.c.b16 %v973, %v969
    %v1190 = vpack.c.b16 %v978, %v974
    %v1191 = vpack.c.b16 %v979, %v975
    %v1192 = vpack.c.b16 %v980, %v976
    %v1193 = vpack.c.b16 %v981, %v977
    %v1194 = vpack.c.b16 %v986, %v982
    %v1195 = vpack.c.b16 %v987, %v983
    %v1196 = vpack.c.b16 %v988, %v984
    %v1197 = vpack.c.b16 %v989, %v985
    %v1198 = vpack.c.b16 %v994, %v990
    %v1199 = vpack.c.b16 %v995, %v991
    %v1200 = vpack.c.b16 %v996, %v992
    %v1201 = vpack.c.b16 %v997, %v993
    %v1202 = vpack.c.b16 %v1002, %v998
    %v1203 = vpack.c.b16 %v1003, %v999
    %v1204 = vpack.c.b16 %v1004, %v1000
    %v1205 = vpack.c.b16 %v1005, %v1001
    %v1206 = vpack.c.b16 %v1010, %v1006
    %v1207 = vpack.c.b16 %v1011, %v1007
    %v1208 = vpack.c.b16 %v1012, %v1008
    %v1209 = vpack.c.b16 %v1013, %v1009
    %v1210 = vpack.c.b16 %v1018, %v1014
    %v1211 = vpack.c.b16 %v1019, %v1015
    %v1212 = vpack.c.b16 %v1020, %v1016
    %v1213 = vpack.c.b16 %v1021, %v1017
    %v1214 = vpack.c.b16 %v1026, %v1022
    %v1215 = vpack.c.b16 %v1027, %v1023
    %v1216 = vpack.c.b16 %v1028, %v1024
    %v1217 = vpack.c.b16 %v1029, %v1025
    %v1218 = vpack.c.b16 %v1034, %v1030
    %v1219 = vpack.c.b16 %v1035, %v1031
    %v1220 = vpack.c.b16 %v1036, %v1032
    %v1221 = vpack.c.b16 %v1037, %v1033
    %v1222 = vpack.c.b16 %v1042, %v1038
    %v1223 = vpack.c.b16 %v1043, %v1039
    %v1224 = vpack.c.b16 %v1044, %v1040
    %v1225 = vpack.c.b16 %v1045, %v1041
    %v1226 = vpack.c.b16 %v1050, %v1046
    %v1227 = vpack.c.b16 %v1051, %v1047
    %v1228 = vpack.c.b16 %v1052, %v1048
    %v1229 = vpack.c.b16 %v1053, %v1049
    %v1230 = vpack.c.b16 %v1058, %v1054
    %v1231 = vpack.c.b16 %v1059, %v1055
    %v1232 = vpack.c.b16 %v1060, %v1056
    %v1233 = vpack.c.b16 %v1061, %v1057
    %v1234 = vpack.c.b16 %v1066, %v1062
    %v1235 = vpack.c.b16 %v1067, %v1063
    %v1236 = vpack.c.b16 %v1068, %v1064
    %v1237 = vpack.c.b16 %v1069, %v1065
    %v1238 = vpack.c.b16 %v1074, %v1070
    %v1239 = vpack.c.b16 %v1075, %v1071
    %v1240 = vpack.c.b16 %v1076, %v1072
    %v1241 = vpack.c.b16 %v1077, %v1073
    %v1242 = vpack.c.b16 %v1082, %v1078
    %v1243 = vpack.c.b16 %v1083, %v1079
    %v1244 = vpack.c.b16 %v1084, %v1080
    %v1245 = vpack.c.b16 %v1085, %v1081
    %v1246 = vpack.c.b16 %v1090, %v1086
    %v1247 = vpack.c.b16 %v1091, %v1087
    %v1248 = vpack.c.b16 %v1092, %v1088
    %v1249 = vpack.c.b16 %v1093, %v1089
    %v1250 = vpack.c.b16 %v1098, %v1094
    %v1251 = vpack.c.b16 %v1099, %v1095
    %v1252 = vpack.c.b16 %v1100, %v1096
    %v1253 = vpack.c.b16 %v1101, %v1097
    %v1254 = vpack.c.b16 %v1106, %v1102
    %v1255 = vpack.c.b16 %v1107, %v1103
    %v1256 = vpack.c.b16 %v1108, %v1104
    %v1257 = vpack.c.b16 %v1109, %v1105
    %v1258 = vpack.c.b16 %v1114, %v1110
    %v1259 = vpack.c.b16 %v1115, %v1111
    %v1260 = vpack.c.b16 %v1116, %v1112
    %v1261 = vpack.c.b16 %v1117, %v1113
    %v1262 = vpack.c.b16 %v1122, %v1118
    %v1263 = vpack.c.b16 %v1123, %v1119
    %v1264 = vpack.c.b16 %v1124, %v1120
    %v1265 = vpack.c.b16 %v1125, %v1121
    %v1266 = vpack.c.b16 %v1130, %v1126
    %v1267 = vpack.c.b16 %v1131, %v1127
    %v1268 = vpack.c.b16 %v1132, %v1128
    %v1269 = vpack.c.b16 %v1133, %v1129
    %v1270 = vpack.c.b16 %v1138, %v1134
    %v1271 = vpack.c.b16 %v1139, %v1135
    %v1272 = vpack.c.b16 %v1140, %v1136
    %v1273 = vpack.c.b16 %v1141, %v1137
    %v1274 = vpack.c.b16 %v1146, %v1142
    %v1275 = vpack.c.b16 %v1147, %v1143
    %v1276 = vpack.c.b16 %v1148, %v1144
    %v1277 = vpack.c.b16 %v1149, %v1145
    %1406 = vmatpush.bf16.msra.mxu0 %v737
    %1407 = vmatpush.bf16.msra.mxu0 %v736
    %1408 = vmatpush.bf16.msra.mxu0 %v735
    %1409 = vmatpush.bf16.msra.mxu0 %v734
    %1410 = vmatpush.bf16.msra.mxu0 %v733
    %1411 = vmatpush.bf16.msra.mxu0 %v732
    %1412 = vmatpush.bf16.msra.mxu0 %v731
    %1413 = vmatpush.bf16.msra.mxu0 %v730
    %1414 = vmatmul.bf16.gmra.mxu0 %v1150
    %v1415 = vpop.f32.mrf.mxu0
    %v1416 = vadd.f32 %v764, %v1415
    %v1417 = vpop.f32.mrf.mxu0
    %v1418 = vadd.f32 %v764, %v1417
    %1419 = vmatmul.bf16.gmra.mxu0 %v1154
    %v1420 = vpop.f32.mrf.mxu0
    %v1421 = vadd.f32 %v764, %v1420
    %v1422 = vpop.f32.mrf.mxu0
    %v1423 = vadd.f32 %v764, %v1422
    %1424 = vmatmul.bf16.gmra.mxu0 %v1158
    %v1425 = vpop.f32.mrf.mxu0
    %v1426 = vadd.f32 %v764, %v1425
    %v1427 = vpop.f32.mrf.mxu0
    %v1428 = vadd.f32 %v764, %v1427
    %1429 = vmatmul.bf16.gmra.mxu0 %v1162
    %v1430 = vpop.f32.mrf.mxu0
    %v1431 = vadd.f32 %v764, %v1430
    %v1432 = vpop.f32.mrf.mxu0
    %v1433 = vadd.f32 %v764, %v1432
    %1434 = vmatmul.bf16.gmra.mxu0 %v1166
    %v1435 = vpop.f32.mrf.mxu0
    %v1436 = vadd.f32 %v764, %v1435
    %v1437 = vpop.f32.mrf.mxu0
    %v1438 = vadd.f32 %v764, %v1437
    %1439 = vmatmul.bf16.gmra.mxu0 %v1170
    %v1440 = vpop.f32.mrf.mxu0
    %v1441 = vadd.f32 %v764, %v1440
    %v1442 = vpop.f32.mrf.mxu0
    %v1443 = vadd.f32 %v764, %v1442
    %1444 = vmatmul.bf16.gmra.mxu0 %v1174
    %v1445 = vpop.f32.mrf.mxu0
    %v1446 = vadd.f32 %v764, %v1445
    %v1447 = vpop.f32.mrf.mxu0
    %v1448 = vadd.f32 %v764, %v1447
    %1449 = vmatmul.bf16.gmra.mxu0 %v1178
    %v1450 = vpop.f32.mrf.mxu0
    %v1451 = vadd.f32 %v764, %v1450
    %v1452 = vpop.f32.mrf.mxu0
    %v1453 = vadd.f32 %v764, %v1452
    %1454 = vmatmul.bf16.gmra.mxu0 %v1182
    %v1455 = vpop.f32.mrf.mxu0
    %v1456 = vadd.f32 %v764, %v1455
    %v1457 = vpop.f32.mrf.mxu0
    %v1458 = vadd.f32 %v764, %v1457
    %1459 = vmatmul.bf16.gmra.mxu0 %v1186
    %v1460 = vpop.f32.mrf.mxu0
    %v1461 = vadd.f32 %v764, %v1460
    %v1462 = vpop.f32.mrf.mxu0
    %v1463 = vadd.f32 %v764, %v1462
    %1464 = vmatmul.bf16.gmra.mxu0 %v1190
    %v1465 = vpop.f32.mrf.mxu0
    %v1466 = vadd.f32 %v764, %v1465
    %v1467 = vpop.f32.mrf.mxu0
    %v1468 = vadd.f32 %v764, %v1467
    %1469 = vmatmul.bf16.gmra.mxu0 %v1194
    %v1470 = vpop.f32.mrf.mxu0
    %v1471 = vadd.f32 %v764, %v1470
    %v1472 = vpop.f32.mrf.mxu0
    %v1473 = vadd.f32 %v764, %v1472
    %1474 = vmatmul.bf16.gmra.mxu0 %v1198
    %v1475 = vpop.f32.mrf.mxu0
    %v1476 = vadd.f32 %v764, %v1475
    %v1477 = vpop.f32.mrf.mxu0
    %v1478 = vadd.f32 %v764, %v1477
    %1479 = vmatmul.bf16.gmra.mxu0 %v1202
    %v1480 = vpop.f32.mrf.mxu0
    %v1481 = vadd.f32 %v764, %v1480
    %v1482 = vpop.f32.mrf.mxu0
    %v1483 = vadd.f32 %v764, %v1482
    %1484 = vmatmul.bf16.gmra.mxu0 %v1206
    %v1485 = vpop.f32.mrf.mxu0
    %v1486 = vadd.f32 %v764, %v1485
    %v1487 = vpop.f32.mrf.mxu0
    %v1488 = vadd.f32 %v764, %v1487
    %1489 = vmatmul.bf16.gmra.mxu0 %v1210
    %v1490 = vpop.f32.mrf.mxu0
    %v1491 = vadd.f32 %v764, %v1490
    %v1492 = vpop.f32.mrf.mxu0
    %v1493 = vadd.f32 %v764, %v1492
    %1494 = vmatmul.bf16.gmra.mxu0 %v1214
    %v1495 = vpop.f32.mrf.mxu0
    %v1496 = vadd.f32 %v764, %v1495
    %v1497 = vpop.f32.mrf.mxu0
    %v1498 = vadd.f32 %v764, %v1497
    %1499 = vmatmul.bf16.gmra.mxu0 %v1218
    %v1500 = vpop.f32.mrf.mxu0
    %v1501 = vadd.f32 %v764, %v1500
    %v1502 = vpop.f32.mrf.mxu0
    %v1503 = vadd.f32 %v764, %v1502
    %1504 = vmatmul.bf16.gmra.mxu0 %v1222
    %v1505 = vpop.f32.mrf.mxu0
    %v1506 = vadd.f32 %v764, %v1505
    %v1507 = vpop.f32.mrf.mxu0
    %v1508 = vadd.f32 %v764, %v1507
    %1509 = vmatmul.bf16.gmra.mxu0 %v1226
    %v1510 = vpop.f32.mrf.mxu0
    %v1511 = vadd.f32 %v764, %v1510
    %v1512 = vpop.f32.mrf.mxu0
    %v1513 = vadd.f32 %v764, %v1512
    %1514 = vmatmul.bf16.gmra.mxu0 %v1230
    %v1515 = vpop.f32.mrf.mxu0
    %v1516 = vadd.f32 %v764, %v1515
    %v1517 = vpop.f32.mrf.mxu0
    %v1518 = vadd.f32 %v764, %v1517
    %1519 = vmatmul.bf16.gmra.mxu0 %v1234
    %v1520 = vpop.f32.mrf.mxu0
    %v1521 = vadd.f32 %v764, %v1520
    %v1522 = vpop.f32.mrf.mxu0
    %v1523 = vadd.f32 %v764, %v1522
    %1524 = vmatmul.bf16.gmra.mxu0 %v1238
    %v1525 = vpop.f32.mrf.mxu0
    %v1526 = vadd.f32 %v764, %v1525
    %v1527 = vpop.f32.mrf.mxu0
    %v1528 = vadd.f32 %v764, %v1527
    %1529 = vmatmul.bf16.gmra.mxu0 %v1242
    %v1530 = vpop.f32.mrf.mxu0
    %v1531 = vadd.f32 %v764, %v1530
    %v1532 = vpop.f32.mrf.mxu0
    %v1533 = vadd.f32 %v764, %v1532
    %1534 = vmatmul.bf16.gmra.mxu0 %v1246
    %v1535 = vpop.f32.mrf.mxu0
    %v1536 = vadd.f32 %v764, %v1535
    %v1537 = vpop.f32.mrf.mxu0
    %v1538 = vadd.f32 %v764, %v1537
    %1539 = vmatmul.bf16.gmra.mxu0 %v1250
    %v1540 = vpop.f32.mrf.mxu0
    %v1541 = vadd.f32 %v764, %v1540
    %v1542 = vpop.f32.mrf.mxu0
    %v1543 = vadd.f32 %v764, %v1542
    %1544 = vmatmul.bf16.gmra.mxu0 %v1254
    %v1545 = vpop.f32.mrf.mxu0
    %v1546 = vadd.f32 %v764, %v1545
    %v1547 = vpop.f32.mrf.mxu0
    %v1548 = vadd.f32 %v764, %v1547
    %1549 = vmatmul.bf16.gmra.mxu0 %v1258
    %v1550 = vpop.f32.mrf.mxu0
    %v1551 = vadd.f32 %v764, %v1550
    %v1552 = vpop.f32.mrf.mxu0
    %v1553 = vadd.f32 %v764, %v1552
    %1554 = vmatmul.bf16.gmra.mxu0 %v1262
    %v1555 = vpop.f32.mrf.mxu0
    %v1556 = vadd.f32 %v764, %v1555
    %v1557 = vpop.f32.mrf.mxu0
    %v1558 = vadd.f32 %v764, %v1557
    %1559 = vmatmul.bf16.gmra.mxu0 %v1266
    %v1560 = vpop.f32.mrf.mxu0
    %v1561 = vadd.f32 %v764, %v1560
    %v1562 = vpop.f32.mrf.mxu0
    %v1563 = vadd.f32 %v764, %v1562
    %1564 = vmatmul.bf16.gmra.mxu0 %v1270
    %v1565 = vpop.f32.mrf.mxu0
    %v1566 = vadd.f32 %v764, %v1565
    %v1567 = vpop.f32.mrf.mxu0
    %v1568 = vadd.f32 %v764, %v1567
    %1569 = vmatmul.bf16.gmra.mxu0 %v1274
    %v1570 = vpop.f32.mrf.mxu0
    %v1571 = vadd.f32 %v764, %v1570
    %v1572 = vpop.f32.mrf.mxu0
    %v1573 = vadd.f32 %v764, %v1572
    %1574 = vdwg.mxu0
    %1575 = vmatpush.bf16.msra.mxu0 %v745
    %1576 = vmatpush.bf16.msra.mxu0 %v744
    %1577 = vmatpush.bf16.msra.mxu0 %v743
    %1578 = vmatpush.bf16.msra.mxu0 %v742
    %1579 = vmatpush.bf16.msra.mxu0 %v741
    %1580 = vmatpush.bf16.msra.mxu0 %v740
    %1581 = vmatpush.bf16.msra.mxu0 %v739
    %1582 = vmatpush.bf16.msra.mxu0 %v738
    %1583 = vmatmul.bf16.gmra.mxu0 %v1151
    %v1584 = vpop.f32.mrf.mxu0
    %v1585 = vadd.f32 %v1416, %v1584
    %v1586 = vpop.f32.mrf.mxu0
    %v1587 = vadd.f32 %v1418, %v1586
    %1588 = vmatmul.bf16.gmra.mxu0 %v1155
    %v1589 = vpop.f32.mrf.mxu0
    %v1590 = vadd.f32 %v1421, %v1589
    %v1591 = vpop.f32.mrf.mxu0
    %v1592 = vadd.f32 %v1423, %v1591
    %1593 = vmatmul.bf16.gmra.mxu0 %v1159
    %v1594 = vpop.f32.mrf.mxu0
    %v1595 = vadd.f32 %v1426, %v1594
    %v1596 = vpop.f32.mrf.mxu0
    %v1597 = vadd.f32 %v1428, %v1596
    %1598 = vmatmul.bf16.gmra.mxu0 %v1163
    %v1599 = vpop.f32.mrf.mxu0
    %v1600 = vadd.f32 %v1431, %v1599
    %v1601 = vpop.f32.mrf.mxu0
    %v1602 = vadd.f32 %v1433, %v1601
    %1603 = vmatmul.bf16.gmra.mxu0 %v1167
    %v1604 = vpop.f32.mrf.mxu0
    %v1605 = vadd.f32 %v1436, %v1604
    %v1606 = vpop.f32.mrf.mxu0
    %v1607 = vadd.f32 %v1438, %v1606
    %1608 = vmatmul.bf16.gmra.mxu0 %v1171
    %v1609 = vpop.f32.mrf.mxu0
    %v1610 = vadd.f32 %v1441, %v1609
    %v1611 = vpop.f32.mrf.mxu0
    %v1612 = vadd.f32 %v1443, %v1611
    %1613 = vmatmul.bf16.gmra.mxu0 %v1175
    %v1614 = vpop.f32.mrf.mxu0
    %v1615 = vadd.f32 %v1446, %v1614
    %v1616 = vpop.f32.mrf.mxu0
    %v1617 = vadd.f32 %v1448, %v1616
    %1618 = vmatmul.bf16.gmra.mxu0 %v1179
    %v1619 = vpop.f32.mrf.mxu0
    %v1620 = vadd.f32 %v1451, %v1619
    %v1621 = vpop.f32.mrf.mxu0
    %v1622 = vadd.f32 %v1453, %v1621
    %1623 = vmatmul.bf16.gmra.mxu0 %v1183
    %v1624 = vpop.f32.mrf.mxu0
    %v1625 = vadd.f32 %v1456, %v1624
    %v1626 = vpop.f32.mrf.mxu0
    %v1627 = vadd.f32 %v1458, %v1626
    %1628 = vmatmul.bf16.gmra.mxu0 %v1187
    %v1629 = vpop.f32.mrf.mxu0
    %v1630 = vadd.f32 %v1461, %v1629
    %v1631 = vpop.f32.mrf.mxu0
    %v1632 = vadd.f32 %v1463, %v1631
    %1633 = vmatmul.bf16.gmra.mxu0 %v1191
    %v1634 = vpop.f32.mrf.mxu0
    %v1635 = vadd.f32 %v1466, %v1634
    %v1636 = vpop.f32.mrf.mxu0
    %v1637 = vadd.f32 %v1468, %v1636
    %1638 = vmatmul.bf16.gmra.mxu0 %v1195
    %v1639 = vpop.f32.mrf.mxu0
    %v1640 = vadd.f32 %v1471, %v1639
    %v1641 = vpop.f32.mrf.mxu0
    %v1642 = vadd.f32 %v1473, %v1641
    %1643 = vmatmul.bf16.gmra.mxu0 %v1199
    %v1644 = vpop.f32.mrf.mxu0
    %v1645 = vadd.f32 %v1476, %v1644
    %v1646 = vpop.f32.mrf.mxu0
    %v1647 = vadd.f32 %v1478, %v1646
    %1648 = vmatmul.bf16.gmra.mxu0 %v1203
    %v1649 = vpop.f32.mrf.mxu0
    %v1650 = vadd.f32 %v1481, %v1649
    %v1651 = vpop.f32.mrf.mxu0
    %v1652 = vadd.f32 %v1483, %v1651
    %1653 = vmatmul.bf16.gmra.mxu0 %v1207
    %v1654 = vpop.f32.mrf.mxu0
    %v1655 = vadd.f32 %v1486, %v1654
    %v1656 = vpop.f32.mrf.mxu0
    %v1657 = vadd.f32 %v1488, %v1656
    %1658 = vmatmul.bf16.gmra.mxu0 %v1211
    %v1659 = vpop.f32.mrf.mxu0
    %v1660 = vadd.f32 %v1491, %v1659
    %v1661 = vpop.f32.mrf.mxu0
    %v1662 = vadd.f32 %v1493, %v1661
    %1663 = vmatmul.bf16.gmra.mxu0 %v1215
    %v1664 = vpop.f32.mrf.mxu0
    %v1665 = vadd.f32 %v1496, %v1664
    %v1666 = vpop.f32.mrf.mxu0
    %v1667 = vadd.f32 %v1498, %v1666
    %1668 = vmatmul.bf16.gmra.mxu0 %v1219
    %v1669 = vpop.f32.mrf.mxu0
    %v1670 = vadd.f32 %v1501, %v1669
    %v1671 = vpop.f32.mrf.mxu0
    %v1672 = vadd.f32 %v1503, %v1671
    %1673 = vmatmul.bf16.gmra.mxu0 %v1223
    %v1674 = vpop.f32.mrf.mxu0
    %v1675 = vadd.f32 %v1506, %v1674
    %v1676 = vpop.f32.mrf.mxu0
    %v1677 = vadd.f32 %v1508, %v1676
    %1678 = vmatmul.bf16.gmra.mxu0 %v1227
    %v1679 = vpop.f32.mrf.mxu0
    %v1680 = vadd.f32 %v1511, %v1679
    %v1681 = vpop.f32.mrf.mxu0
    %v1682 = vadd.f32 %v1513, %v1681
    %1683 = vmatmul.bf16.gmra.mxu0 %v1231
    %v1684 = vpop.f32.mrf.mxu0
    %v1685 = vadd.f32 %v1516, %v1684
    %v1686 = vpop.f32.mrf.mxu0
    %v1687 = vadd.f32 %v1518, %v1686
    %1688 = vmatmul.bf16.gmra.mxu0 %v1235
    %v1689 = vpop.f32.mrf.mxu0
    %v1690 = vadd.f32 %v1521, %v1689
    %v1691 = vpop.f32.mrf.mxu0
    %v1692 = vadd.f32 %v1523, %v1691
    %1693 = vmatmul.bf16.gmra.mxu0 %v1239
    %v1694 = vpop.f32.mrf.mxu0
    %v1695 = vadd.f32 %v1526, %v1694
    %v1696 = vpop.f32.mrf.mxu0
    %v1697 = vadd.f32 %v1528, %v1696
    %1698 = vmatmul.bf16.gmra.mxu0 %v1243
    %v1699 = vpop.f32.mrf.mxu0
    %v1700 = vadd.f32 %v1531, %v1699
    %v1701 = vpop.f32.mrf.mxu0
    %v1702 = vadd.f32 %v1533, %v1701
    %1703 = vmatmul.bf16.gmra.mxu0 %v1247
    %v1704 = vpop.f32.mrf.mxu0
    %v1705 = vadd.f32 %v1536, %v1704
    %v1706 = vpop.f32.mrf.mxu0
    %v1707 = vadd.f32 %v1538, %v1706
    %1708 = vmatmul.bf16.gmra.mxu0 %v1251
    %v1709 = vpop.f32.mrf.mxu0
    %v1710 = vadd.f32 %v1541, %v1709
    %v1711 = vpop.f32.mrf.mxu0
    %v1712 = vadd.f32 %v1543, %v1711
    %1713 = vmatmul.bf16.gmra.mxu0 %v1255
    %v1714 = vpop.f32.mrf.mxu0
    %v1715 = vadd.f32 %v1546, %v1714
    %v1716 = vpop.f32.mrf.mxu0
    %v1717 = vadd.f32 %v1548, %v1716
    %1718 = vmatmul.bf16.gmra.mxu0 %v1259
    %v1719 = vpop.f32.mrf.mxu0
    %v1720 = vadd.f32 %v1551, %v1719
    %v1721 = vpop.f32.mrf.mxu0
    %v1722 = vadd.f32 %v1553, %v1721
    %1723 = vmatmul.bf16.gmra.mxu0 %v1263
    %v1724 = vpop.f32.mrf.mxu0
    %v1725 = vadd.f32 %v1556, %v1724
    %v1726 = vpop.f32.mrf.mxu0
    %v1727 = vadd.f32 %v1558, %v1726
    %1728 = vmatmul.bf16.gmra.mxu0 %v1267
    %v1729 = vpop.f32.mrf.mxu0
    %v1730 = vadd.f32 %v1561, %v1729
    %v1731 = vpop.f32.mrf.mxu0
    %v1732 = vadd.f32 %v1563, %v1731
    %1733 = vmatmul.bf16.gmra.mxu0 %v1271
    %v1734 = vpop.f32.mrf.mxu0
    %v1735 = vadd.f32 %v1566, %v1734
    %v1736 = vpop.f32.mrf.mxu0
    %v1737 = vadd.f32 %v1568, %v1736
    %1738 = vmatmul.bf16.gmra.mxu0 %v1275
    %v1739 = vpop.f32.mrf.mxu0
    %v1740 = vadd.f32 %v1571, %v1739
    %v1741 = vpop.f32.mrf.mxu0
    %v1742 = vadd.f32 %v1573, %v1741
    %1743 = vdwg.mxu0
    %1744 = vmatpush.bf16.msra.mxu0 %v753
    %1745 = vmatpush.bf16.msra.mxu0 %v752
    %1746 = vmatpush.bf16.msra.mxu0 %v751
    %1747 = vmatpush.bf16.msra.mxu0 %v750
    %1748 = vmatpush.bf16.msra.mxu0 %v749
    %1749 = vmatpush.bf16.msra.mxu0 %v748
    %1750 = vmatpush.bf16.msra.mxu0 %v747
    %1751 = vmatpush.bf16.msra.mxu0 %v746
    %1752 = vmatmul.bf16.gmra.mxu0 %v1152
    %v1753 = vpop.f32.mrf.mxu0
    %v1754 = vadd.f32 %v1585, %v1753
    %v1755 = vpop.f32.mrf.mxu0
    %v1756 = vadd.f32 %v1587, %v1755
    %1757 = vmatmul.bf16.gmra.mxu0 %v1156
    %v1758 = vpop.f32.mrf.mxu0
    %v1759 = vadd.f32 %v1590, %v1758
    %v1760 = vpop.f32.mrf.mxu0
    %v1761 = vadd.f32 %v1592, %v1760
    %1762 = vmatmul.bf16.gmra.mxu0 %v1160
    %v1763 = vpop.f32.mrf.mxu0
    %v1764 = vadd.f32 %v1595, %v1763
    %v1765 = vpop.f32.mrf.mxu0
    %v1766 = vadd.f32 %v1597, %v1765
    %1767 = vmatmul.bf16.gmra.mxu0 %v1164
    %v1768 = vpop.f32.mrf.mxu0
    %v1769 = vadd.f32 %v1600, %v1768
    %v1770 = vpop.f32.mrf.mxu0
    %v1771 = vadd.f32 %v1602, %v1770
    %1772 = vmatmul.bf16.gmra.mxu0 %v1168
    %v1773 = vpop.f32.mrf.mxu0
    %v1774 = vadd.f32 %v1605, %v1773
    %v1775 = vpop.f32.mrf.mxu0
    %v1776 = vadd.f32 %v1607, %v1775
    %1777 = vmatmul.bf16.gmra.mxu0 %v1172
    %v1778 = vpop.f32.mrf.mxu0
    %v1779 = vadd.f32 %v1610, %v1778
    %v1780 = vpop.f32.mrf.mxu0
    %v1781 = vadd.f32 %v1612, %v1780
    %1782 = vmatmul.bf16.gmra.mxu0 %v1176
    %v1783 = vpop.f32.mrf.mxu0
    %v1784 = vadd.f32 %v1615, %v1783
    %v1785 = vpop.f32.mrf.mxu0
    %v1786 = vadd.f32 %v1617, %v1785
    %1787 = vmatmul.bf16.gmra.mxu0 %v1180
    %v1788 = vpop.f32.mrf.mxu0
    %v1789 = vadd.f32 %v1620, %v1788
    %v1790 = vpop.f32.mrf.mxu0
    %v1791 = vadd.f32 %v1622, %v1790
    %1792 = vmatmul.bf16.gmra.mxu0 %v1184
    %v1793 = vpop.f32.mrf.mxu0
    %v1794 = vadd.f32 %v1625, %v1793
    %v1795 = vpop.f32.mrf.mxu0
    %v1796 = vadd.f32 %v1627, %v1795
    %1797 = vmatmul.bf16.gmra.mxu0 %v1188
    %v1798 = vpop.f32.mrf.mxu0
    %v1799 = vadd.f32 %v1630, %v1798
    %v1800 = vpop.f32.mrf.mxu0
    %v1801 = vadd.f32 %v1632, %v1800
    %1802 = vmatmul.bf16.gmra.mxu0 %v1192
    %v1803 = vpop.f32.mrf.mxu0
    %v1804 = vadd.f32 %v1635, %v1803
    %v1805 = vpop.f32.mrf.mxu0
    %v1806 = vadd.f32 %v1637, %v1805
    %1807 = vmatmul.bf16.gmra.mxu0 %v1196
    %v1808 = vpop.f32.mrf.mxu0
    %v1809 = vadd.f32 %v1640, %v1808
    %v1810 = vpop.f32.mrf.mxu0
    %v1811 = vadd.f32 %v1642, %v1810
    %1812 = vmatmul.bf16.gmra.mxu0 %v1200
    %v1813 = vpop.f32.mrf.mxu0
    %v1814 = vadd.f32 %v1645, %v1813
    %v1815 = vpop.f32.mrf.mxu0
    %v1816 = vadd.f32 %v1647, %v1815
    %1817 = vmatmul.bf16.gmra.mxu0 %v1204
    %v1818 = vpop.f32.mrf.mxu0
    %v1819 = vadd.f32 %v1650, %v1818
    %v1820 = vpop.f32.mrf.mxu0
    %v1821 = vadd.f32 %v1652, %v1820
    %1822 = vmatmul.bf16.gmra.mxu0 %v1208
    %v1823 = vpop.f32.mrf.mxu0
    %v1824 = vadd.f32 %v1655, %v1823
    %v1825 = vpop.f32.mrf.mxu0
    %v1826 = vadd.f32 %v1657, %v1825
    %1827 = vmatmul.bf16.gmra.mxu0 %v1212
    %v1828 = vpop.f32.mrf.mxu0
    %v1829 = vadd.f32 %v1660, %v1828
    %v1830 = vpop.f32.mrf.mxu0
    %v1831 = vadd.f32 %v1662, %v1830
    %1832 = vmatmul.bf16.gmra.mxu0 %v1216
    %v1833 = vpop.f32.mrf.mxu0
    %v1834 = vadd.f32 %v1665, %v1833
    %v1835 = vpop.f32.mrf.mxu0
    %v1836 = vadd.f32 %v1667, %v1835
    %1837 = vmatmul.bf16.gmra.mxu0 %v1220
    %v1838 = vpop.f32.mrf.mxu0
    %v1839 = vadd.f32 %v1670, %v1838
    %v1840 = vpop.f32.mrf.mxu0
    %v1841 = vadd.f32 %v1672, %v1840
    %1842 = vmatmul.bf16.gmra.mxu0 %v1224
    %v1843 = vpop.f32.mrf.mxu0
    %v1844 = vadd.f32 %v1675, %v1843
    %v1845 = vpop.f32.mrf.mxu0
    %v1846 = vadd.f32 %v1677, %v1845
    %1847 = vmatmul.bf16.gmra.mxu0 %v1228
    %v1848 = vpop.f32.mrf.mxu0
    %v1849 = vadd.f32 %v1680, %v1848
    %v1850 = vpop.f32.mrf.mxu0
    %v1851 = vadd.f32 %v1682, %v1850
    %1852 = vmatmul.bf16.gmra.mxu0 %v1232
    %v1853 = vpop.f32.mrf.mxu0
    %v1854 = vadd.f32 %v1685, %v1853
    %v1855 = vpop.f32.mrf.mxu0
    %v1856 = vadd.f32 %v1687, %v1855
    %1857 = vmatmul.bf16.gmra.mxu0 %v1236
    %v1858 = vpop.f32.mrf.mxu0
    %v1859 = vadd.f32 %v1690, %v1858
    %v1860 = vpop.f32.mrf.mxu0
    %v1861 = vadd.f32 %v1692, %v1860
    %1862 = vmatmul.bf16.gmra.mxu0 %v1240
    %v1863 = vpop.f32.mrf.mxu0
    %v1864 = vadd.f32 %v1695, %v1863
    %v1865 = vpop.f32.mrf.mxu0
    %v1866 = vadd.f32 %v1697, %v1865
    %1867 = vmatmul.bf16.gmra.mxu0 %v1244
    %v1868 = vpop.f32.mrf.mxu0
    %v1869 = vadd.f32 %v1700, %v1868
    %v1870 = vpop.f32.mrf.mxu0
    %v1871 = vadd.f32 %v1702, %v1870
    %1872 = vmatmul.bf16.gmra.mxu0 %v1248
    %v1873 = vpop.f32.mrf.mxu0
    %v1874 = vadd.f32 %v1705, %v1873
    %v1875 = vpop.f32.mrf.mxu0
    %v1876 = vadd.f32 %v1707, %v1875
    %1877 = vmatmul.bf16.gmra.mxu0 %v1252
    %v1878 = vpop.f32.mrf.mxu0
    %v1879 = vadd.f32 %v1710, %v1878
    %v1880 = vpop.f32.mrf.mxu0
    %v1881 = vadd.f32 %v1712, %v1880
    %1882 = vmatmul.bf16.gmra.mxu0 %v1256
    %v1883 = vpop.f32.mrf.mxu0
    %v1884 = vadd.f32 %v1715, %v1883
    %v1885 = vpop.f32.mrf.mxu0
    %v1886 = vadd.f32 %v1717, %v1885
    %1887 = vmatmul.bf16.gmra.mxu0 %v1260
    %v1888 = vpop.f32.mrf.mxu0
    %v1889 = vadd.f32 %v1720, %v1888
    %v1890 = vpop.f32.mrf.mxu0
    %v1891 = vadd.f32 %v1722, %v1890
    %1892 = vmatmul.bf16.gmra.mxu0 %v1264
    %v1893 = vpop.f32.mrf.mxu0
    %v1894 = vadd.f32 %v1725, %v1893
    %v1895 = vpop.f32.mrf.mxu0
    %v1896 = vadd.f32 %v1727, %v1895
    %1897 = vmatmul.bf16.gmra.mxu0 %v1268
    %v1898 = vpop.f32.mrf.mxu0
    %v1899 = vadd.f32 %v1730, %v1898
    %v1900 = vpop.f32.mrf.mxu0
    %v1901 = vadd.f32 %v1732, %v1900
    %1902 = vmatmul.bf16.gmra.mxu0 %v1272
    %v1903 = vpop.f32.mrf.mxu0
    %v1904 = vadd.f32 %v1735, %v1903
    %v1905 = vpop.f32.mrf.mxu0
    %v1906 = vadd.f32 %v1737, %v1905
    %1907 = vmatmul.bf16.gmra.mxu0 %v1276
    %v1908 = vpop.f32.mrf.mxu0
    %v1909 = vadd.f32 %v1740, %v1908
    %v1910 = vpop.f32.mrf.mxu0
    %v1911 = vadd.f32 %v1742, %v1910
    %1912 = vdwg.mxu0
    %1913 = vmatpush.bf16.msra.mxu0 %v761
    %1914 = vmatpush.bf16.msra.mxu0 %v760
    %1915 = vmatpush.bf16.msra.mxu0 %v759
    %1916 = vmatpush.bf16.msra.mxu0 %v758
    %1917 = vmatpush.bf16.msra.mxu0 %v757
    %1918 = vmatpush.bf16.msra.mxu0 %v756
    %1919 = vmatpush.bf16.msra.mxu0 %v755
    %1920 = vmatpush.bf16.msra.mxu0 %v754
    %1921 = vmatmul.bf16.gmra.mxu0 %v1153
    %v1922 = vpop.f32.mrf.mxu0
    %v1923 = vadd.f32 %v1754, %v1922
    %v1924 = vpop.f32.mrf.mxu0
    %v1925 = vadd.f32 %v1756, %v1924
    %1926 = vmatmul.bf16.gmra.mxu0 %v1157
    %v1927 = vpop.f32.mrf.mxu0
    %v1928 = vadd.f32 %v1759, %v1927
    %v1929 = vpop.f32.mrf.mxu0
    %v1930 = vadd.f32 %v1761, %v1929
    %1931 = vmatmul.bf16.gmra.mxu0 %v1161
    %v1932 = vpop.f32.mrf.mxu0
    %v1933 = vadd.f32 %v1764, %v1932
    %v1934 = vpop.f32.mrf.mxu0
    %v1935 = vadd.f32 %v1766, %v1934
    %1936 = vmatmul.bf16.gmra.mxu0 %v1165
    %v1937 = vpop.f32.mrf.mxu0
    %v1938 = vadd.f32 %v1769, %v1937
    %v1939 = vpop.f32.mrf.mxu0
    %v1940 = vadd.f32 %v1771, %v1939
    %1941 = vmatmul.bf16.gmra.mxu0 %v1169
    %v1942 = vpop.f32.mrf.mxu0
    %v1943 = vadd.f32 %v1774, %v1942
    %v1944 = vpop.f32.mrf.mxu0
    %v1945 = vadd.f32 %v1776, %v1944
    %1946 = vmatmul.bf16.gmra.mxu0 %v1173
    %v1947 = vpop.f32.mrf.mxu0
    %v1948 = vadd.f32 %v1779, %v1947
    %v1949 = vpop.f32.mrf.mxu0
    %v1950 = vadd.f32 %v1781, %v1949
    %1951 = vmatmul.bf16.gmra.mxu0 %v1177
    %v1952 = vpop.f32.mrf.mxu0
    %v1953 = vadd.f32 %v1784, %v1952
    %v1954 = vpop.f32.mrf.mxu0
    %v1955 = vadd.f32 %v1786, %v1954
    %1956 = vmatmul.bf16.gmra.mxu0 %v1181
    %v1957 = vpop.f32.mrf.mxu0
    %v1958 = vadd.f32 %v1789, %v1957
    %v1959 = vpop.f32.mrf.mxu0
    %v1960 = vadd.f32 %v1791, %v1959
    %1961 = vmatmul.bf16.gmra.mxu0 %v1185
    %v1962 = vpop.f32.mrf.mxu0
    %v1963 = vadd.f32 %v1794, %v1962
    %v1964 = vpop.f32.mrf.mxu0
    %v1965 = vadd.f32 %v1796, %v1964
    %1966 = vmatmul.bf16.gmra.mxu0 %v1189
    %v1967 = vpop.f32.mrf.mxu0
    %v1968 = vadd.f32 %v1799, %v1967
    %v1969 = vpop.f32.mrf.mxu0
    %v1970 = vadd.f32 %v1801, %v1969
    %1971 = vmatmul.bf16.gmra.mxu0 %v1193
    %v1972 = vpop.f32.mrf.mxu0
    %v1973 = vadd.f32 %v1804, %v1972
    %v1974 = vpop.f32.mrf.mxu0
    %v1975 = vadd.f32 %v1806, %v1974
    %1976 = vmatmul.bf16.gmra.mxu0 %v1197
    %v1977 = vpop.f32.mrf.mxu0
    %v1978 = vadd.f32 %v1809, %v1977
    %v1979 = vpop.f32.mrf.mxu0
    %v1980 = vadd.f32 %v1811, %v1979
    %1981 = vmatmul.bf16.gmra.mxu0 %v1201
    %v1982 = vpop.f32.mrf.mxu0
    %v1983 = vadd.f32 %v1814, %v1982
    %v1984 = vpop.f32.mrf.mxu0
    %v1985 = vadd.f32 %v1816, %v1984
    %1986 = vmatmul.bf16.gmra.mxu0 %v1205
    %v1987 = vpop.f32.mrf.mxu0
    %v1988 = vadd.f32 %v1819, %v1987
    %v1989 = vpop.f32.mrf.mxu0
    %v1990 = vadd.f32 %v1821, %v1989
    %1991 = vmatmul.bf16.gmra.mxu0 %v1209
    %v1992 = vpop.f32.mrf.mxu0
    %v1993 = vadd.f32 %v1824, %v1992
    %v1994 = vpop.f32.mrf.mxu0
    %v1995 = vadd.f32 %v1826, %v1994
    %1996 = vmatmul.bf16.gmra.mxu0 %v1213
    %v1997 = vpop.f32.mrf.mxu0
    %v1998 = vadd.f32 %v1829, %v1997
    %v1999 = vpop.f32.mrf.mxu0
    %v2000 = vadd.f32 %v1831, %v1999
    %2001 = vmatmul.bf16.gmra.mxu0 %v1217
    %v2002 = vpop.f32.mrf.mxu0
    %v2003 = vadd.f32 %v1834, %v2002
    %v2004 = vpop.f32.mrf.mxu0
    %v2005 = vadd.f32 %v1836, %v2004
    %2006 = vmatmul.bf16.gmra.mxu0 %v1221
    %v2007 = vpop.f32.mrf.mxu0
    %v2008 = vadd.f32 %v1839, %v2007
    %v2009 = vpop.f32.mrf.mxu0
    %v2010 = vadd.f32 %v1841, %v2009
    %2011 = vmatmul.bf16.gmra.mxu0 %v1225
    %v2012 = vpop.f32.mrf.mxu0
    %v2013 = vadd.f32 %v1844, %v2012
    %v2014 = vpop.f32.mrf.mxu0
    %v2015 = vadd.f32 %v1846, %v2014
    %2016 = vmatmul.bf16.gmra.mxu0 %v1229
    %v2017 = vpop.f32.mrf.mxu0
    %v2018 = vadd.f32 %v1849, %v2017
    %v2019 = vpop.f32.mrf.mxu0
    %v2020 = vadd.f32 %v1851, %v2019
    %2021 = vmatmul.bf16.gmra.mxu0 %v1233
    %v2022 = vpop.f32.mrf.mxu0
    %v2023 = vadd.f32 %v1854, %v2022
    %v2024 = vpop.f32.mrf.mxu0
    %v2025 = vadd.f32 %v1856, %v2024
    %2026 = vmatmul.bf16.gmra.mxu0 %v1237
    %v2027 = vpop.f32.mrf.mxu0
    %v2028 = vadd.f32 %v1859, %v2027
    %v2029 = vpop.f32.mrf.mxu0
    %v2030 = vadd.f32 %v1861, %v2029
    %2031 = vmatmul.bf16.gmra.mxu0 %v1241
    %v2032 = vpop.f32.mrf.mxu0
    %v2033 = vadd.f32 %v1864, %v2032
    %v2034 = vpop.f32.mrf.mxu0
    %v2035 = vadd.f32 %v1866, %v2034
    %2036 = vmatmul.bf16.gmra.mxu0 %v1245
    %v2037 = vpop.f32.mrf.mxu0
    %v2038 = vadd.f32 %v1869, %v2037
    %v2039 = vpop.f32.mrf.mxu0
    %v2040 = vadd.f32 %v1871, %v2039
    %2041 = vmatmul.bf16.gmra.mxu0 %v1249
    %v2042 = vpop.f32.mrf.mxu0
    %v2043 = vadd.f32 %v1874, %v2042
    %v2044 = vpop.f32.mrf.mxu0
    %v2045 = vadd.f32 %v1876, %v2044
    %2046 = vmatmul.bf16.gmra.mxu0 %v1253
    %v2047 = vpop.f32.mrf.mxu0
    %v2048 = vadd.f32 %v1879, %v2047
    %v2049 = vpop.f32.mrf.mxu0
    %v2050 = vadd.f32 %v1881, %v2049
    %2051 = vmatmul.bf16.gmra.mxu0 %v1257
    %v2052 = vpop.f32.mrf.mxu0
    %v2053 = vadd.f32 %v1884, %v2052
    %v2054 = vpop.f32.mrf.mxu0
    %v2055 = vadd.f32 %v1886, %v2054
    %2056 = vmatmul.bf16.gmra.mxu0 %v1261
    %v2057 = vpop.f32.mrf.mxu0
    %v2058 = vadd.f32 %v1889, %v2057
    %v2059 = vpop.f32.mrf.mxu0
    %v2060 = vadd.f32 %v1891, %v2059
    %2061 = vmatmul.bf16.gmra.mxu0 %v1265
    %v2062 = vpop.f32.mrf.mxu0
    %v2063 = vadd.f32 %v1894, %v2062
    %v2064 = vpop.f32.mrf.mxu0
    %v2065 = vadd.f32 %v1896, %v2064
    %2066 = vmatmul.bf16.gmra.mxu0 %v1269
    %v2067 = vpop.f32.mrf.mxu0
    %v2068 = vadd.f32 %v1899, %v2067
    %v2069 = vpop.f32.mrf.mxu0
    %v2070 = vadd.f32 %v1901, %v2069
    %2071 = vmatmul.bf16.gmra.mxu0 %v1273
    %v2072 = vpop.f32.mrf.mxu0
    %v2073 = vadd.f32 %v1904, %v2072
    %v2074 = vpop.f32.mrf.mxu0
    %v2075 = vadd.f32 %v1906, %v2074
    %2076 = vmatmul.bf16.gmra.mxu0 %v1277
    %v2077 = vpop.f32.mrf.mxu0
    %v2078 = vadd.f32 %v1909, %v2077
    %v2079 = vpop.f32.mrf.mxu0
    %v2080 = vadd.f32 %v1911, %v2079
    %2081 = vdwg.mxu0
    %v2082 = vmax.f32 %v1923, 0.0
    %v2083 = vmax.f32 %v1925, 0.0
    %v2084 = vmax.f32 %v1928, 0.0
    %v2085 = vmax.f32 %v1930, 0.0
    %v2086 = vmax.f32 %v1933, 0.0
    %v2087 = vmax.f32 %v1935, 0.0
    %v2088 = vmax.f32 %v1938, 0.0
    %v2089 = vmax.f32 %v1940, 0.0
    %v2090 = vmax.f32 %v1943, 0.0
    %v2091 = vmax.f32 %v1945, 0.0
    %v2092 = vmax.f32 %v1948, 0.0
    %v2093 = vmax.f32 %v1950, 0.0
    %v2094 = vmax.f32 %v1953, 0.0
    %v2095 = vmax.f32 %v1955, 0.0
    %v2096 = vmax.f32 %v1958, 0.0
    %v2097 = vmax.f32 %v1960, 0.0
    %v2098 = vmax.f32 %v1963, 0.0
    %v2099 = vmax.f32 %v1965, 0.0
    %v2100 = vmax.f32 %v1968, 0.0
    %v2101 = vmax.f32 %v1970, 0.0
    %v2102 = vmax.f32 %v1973, 0.0
    %v2103 = vmax.f32 %v1975, 0.0
    %v2104 = vmax.f32 %v1978, 0.0
    %v2105 = vmax.f32 %v1980, 0.0
    %v2106 = vmax.f32 %v1983, 0.0
    %v2107 = vmax.f32 %v1985, 0.0
    %v2108 = vmax.f32 %v1988, 0.0
    %v2109 = vmax.f32 %v1990, 0.0
    %v2110 = vmax.f32 %v1993, 0.0
    %v2111 = vmax.f32 %v1995, 0.0
    %v2112 = vmax.f32 %v1998, 0.0
    %v2113 = vmax.f32 %v2000, 0.0
    %v2114 = vmax.f32 %v2003, 0.0
    %v2115 = vmax.f32 %v2005, 0.0
    %v2116 = vmax.f32 %v2008, 0.0
    %v2117 = vmax.f32 %v2010, 0.0
    %v2118 = vmax.f32 %v2013, 0.0
    %v2119 = vmax.f32 %v2015, 0.0
    %v2120 = vmax.f32 %v2018, 0.0
    %v2121 = vmax.f32 %v2020, 0.0
    %v2122 = vmax.f32 %v2023, 0.0
    %v2123 = vmax.f32 %v2025, 0.0
    %v2124 = vmax.f32 %v2028, 0.0
    %v2125 = vmax.f32 %v2030, 0.0
    %v2126 = vmax.f32 %v2033, 0.0
    %v2127 = vmax.f32 %v2035, 0.0
    %v2128 = vmax.f32 %v2038, 0.0
    %v2129 = vmax.f32 %v2040, 0.0
    %v2130 = vmax.f32 %v2043, 0.0
    %v2131 = vmax.f32 %v2045, 0.0
    %v2132 = vmax.f32 %v2048, 0.0
    %v2133 = vmax.f32 %v2050, 0.0
    %v2134 = vmax.f32 %v2053, 0.0
    %v2135 = vmax.f32 %v2055, 0.0
    %v2136 = vmax.f32 %v2058, 0.0
    %v2137 = vmax.f32 %v2060, 0.0
    %v2138 = vmax.f32 %v2063, 0.0
    %v2139 = vmax.f32 %v2065, 0.0
    %v2140 = vmax.f32 %v2068, 0.0
    %v2141 = vmax.f32 %v2070, 0.0
    %v2142 = vmax.f32 %v2073, 0.0
    %v2143 = vmax.f32 %v2075, 0.0
    %v2144 = vmax.f32 %v2078, 0.0
    %v2145 = vmax.f32 %v2080, 0.0
    %v2146 = vpack.c.bf16 %v2083, %v2082
    %v2147 = vpack.c.bf16 %v2085, %v2084
    %v2148 = vpack.c.bf16 %v2087, %v2086
    %v2149 = vpack.c.bf16 %v2089, %v2088
    %v2150 = vpack.c.bf16 %v2091, %v2090
    %v2151 = vpack.c.bf16 %v2093, %v2092
    %v2152 = vpack.c.bf16 %v2095, %v2094
    %v2153 = vpack.c.bf16 %v2097, %v2096
    %v2154 = vpack.c.bf16 %v2099, %v2098
    %v2155 = vpack.c.bf16 %v2101, %v2100
    %v2156 = vpack.c.bf16 %v2103, %v2102
    %v2157 = vpack.c.bf16 %v2105, %v2104
    %v2158 = vpack.c.bf16 %v2107, %v2106
    %v2159 = vpack.c.bf16 %v2109, %v2108
    %v2160 = vpack.c.bf16 %v2111, %v2110
    %v2161 = vpack.c.bf16 %v2113, %v2112
    %v2162 = vpack.c.bf16 %v2115, %v2114
    %v2163 = vpack.c.bf16 %v2117, %v2116
    %v2164 = vpack.c.bf16 %v2119, %v2118
    %v2165 = vpack.c.bf16 %v2121, %v2120
    %v2166 = vpack.c.bf16 %v2123, %v2122
    %v2167 = vpack.c.bf16 %v2125, %v2124
    %v2168 = vpack.c.bf16 %v2127, %v2126
    %v2169 = vpack.c.bf16 %v2129, %v2128
    %v2170 = vpack.c.bf16 %v2131, %v2130
    %v2171 = vpack.c.bf16 %v2133, %v2132
    %v2172 = vpack.c.bf16 %v2135, %v2134
    %v2173 = vpack.c.bf16 %v2137, %v2136
    %v2174 = vpack.c.bf16 %v2139, %v2138
    %v2175 = vpack.c.bf16 %v2141, %v2140
    %v2176 = vpack.c.bf16 %v2143, %v2142
    %v2177 = vpack.c.bf16 %v2145, %v2144
    %v2178 = vld [vmem:[#allocation7] sm:$0xf]
    %v2179 = vld [vmem:[#allocation7 + $0x4] sm:$0xf]
    %v2180 = vld [vmem:[#allocation7 + $0x8] sm:$0xf]
    %v2181 = vld [vmem:[#allocation7 + $0xc] sm:$0xf]
    %v2182 = vld [vmem:[#allocation7 + $0x10] sm:$0xf]
    %v2183 = vld [vmem:[#allocation7 + $0x14] sm:$0xf]
    %v2184 = vld [vmem:[#allocation7 + $0x18] sm:$0xf]
    %v2185 = vld [vmem:[#allocation7 + $0x1c] sm:$0xf]
    %v2186 = vld [vmem:[#allocation7 + $0x20] sm:$0xf]
    %v2187 = vld [vmem:[#allocation7 + $0x24] sm:$0xf]
    %v2188 = vld [vmem:[#allocation7 + $0x28] sm:$0xf]
    %v2189 = vld [vmem:[#allocation7 + $0x2c] sm:$0xf]
    %v2190 = vld [vmem:[#allocation7 + $0x30] sm:$0xf]
    %v2191 = vld [vmem:[#allocation7 + $0x34] sm:$0xf]
    %v2192 = vld [vmem:[#allocation7 + $0x38] sm:$0xf]
    %v2193 = vld [vmem:[#allocation7 + $0x3c] sm:$0xf]
    %v2210 = vunpack.c.l.b16 %v2178
    %v2211 = vunpack.c.l.b16 %v2179
    %v2212 = vunpack.c.l.b16 %v2180
    %v2213 = vunpack.c.l.b16 %v2181
    %v2214 = vunpack.c.l.b16 %v2182
    %v2215 = vunpack.c.l.b16 %v2183
    %v2216 = vunpack.c.l.b16 %v2184
    %v2217 = vunpack.c.l.b16 %v2185
    %v2218 = vunpack.c.l.b16 %v2186
    %v2219 = vunpack.c.l.b16 %v2187
    %v2220 = vunpack.c.l.b16 %v2188
    %v2221 = vunpack.c.l.b16 %v2189
    %v2222 = vunpack.c.l.b16 %v2190
    %v2223 = vunpack.c.l.b16 %v2191
    %v2224 = vunpack.c.l.b16 %v2192
    %v2225 = vunpack.c.l.b16 %v2193
    %v2226 = vpack.c.b16 %v2211, %v2210
    %v2227 = vpack.c.b16 %v2213, %v2212
    %v2228 = vpack.c.b16 %v2215, %v2214
    %v2229 = vpack.c.b16 %v2217, %v2216
    %v2230 = vpack.c.b16 %v2219, %v2218
    %v2231 = vpack.c.b16 %v2221, %v2220
    %v2232 = vpack.c.b16 %v2223, %v2222
    %v2233 = vpack.c.b16 %v2225, %v2224
    %2242 = vmatpush.bf16.msra.mxu0 %v2233
    %2243 = vmatpush.bf16.msra.mxu0 %v2232
    %2244 = vmatpush.bf16.msra.mxu0 %v2231
    %2245 = vmatpush.bf16.msra.mxu0 %v2230
    %2246 = vmatpush.bf16.msra.mxu0 %v2229
    %2247 = vmatpush.bf16.msra.mxu0 %v2228
    %2248 = vmatpush.bf16.msra.mxu0 %v2227
    %2249 = vmatpush.bf16.msra.mxu0 %v2226
    %2250 = vmatmul.bf16.gmra.mxu0 %v2146
    %v2251 = vpop.f32.mrf.mxu0
    %v2252 = vadd.f32 0.0, %v2251
    %v2253 = vpop.f32.mrf.mxu0
    %v2254 = vadd.f32 0.0, %v2253
    %2255 = vmatmul.bf16.gmra.mxu0 %v2147
    %v2256 = vpop.f32.mrf.mxu0
    %v2257 = vadd.f32 0.0, %v2256
    %v2258 = vpop.f32.mrf.mxu0
    %v2259 = vadd.f32 0.0, %v2258
    %2260 = vmatmul.bf16.gmra.mxu0 %v2148
    %v2261 = vpop.f32.mrf.mxu0
    %v2262 = vadd.f32 0.0, %v2261
    %v2263 = vpop.f32.mrf.mxu0
    %v2264 = vadd.f32 0.0, %v2263
    %2265 = vmatmul.bf16.gmra.mxu0 %v2149
    %v2266 = vpop.f32.mrf.mxu0
    %v2267 = vadd.f32 0.0, %v2266
    %v2268 = vpop.f32.mrf.mxu0
    %v2269 = vadd.f32 0.0, %v2268
    %2270 = vmatmul.bf16.gmra.mxu0 %v2150
    %v2271 = vpop.f32.mrf.mxu0
    %v2272 = vadd.f32 0.0, %v2271
    %v2273 = vpop.f32.mrf.mxu0
    %v2274 = vadd.f32 0.0, %v2273
    %2275 = vmatmul.bf16.gmra.mxu0 %v2151
    %v2276 = vpop.f32.mrf.mxu0
    %v2277 = vadd.f32 0.0, %v2276
    %v2278 = vpop.f32.mrf.mxu0
    %v2279 = vadd.f32 0.0, %v2278
    %2280 = vmatmul.bf16.gmra.mxu0 %v2152
    %v2281 = vpop.f32.mrf.mxu0
    %v2282 = vadd.f32 0.0, %v2281
    %v2283 = vpop.f32.mrf.mxu0
    %v2284 = vadd.f32 0.0, %v2283
    %2285 = vmatmul.bf16.gmra.mxu0 %v2153
    %v2286 = vpop.f32.mrf.mxu0
    %v2287 = vadd.f32 0.0, %v2286
    %v2288 = vpop.f32.mrf.mxu0
    %v2289 = vadd.f32 0.0, %v2288
    %2290 = vmatmul.bf16.gmra.mxu0 %v2154
    %v2291 = vpop.f32.mrf.mxu0
    %v2292 = vadd.f32 0.0, %v2291
    %v2293 = vpop.f32.mrf.mxu0
    %v2294 = vadd.f32 0.0, %v2293
    %2295 = vmatmul.bf16.gmra.mxu0 %v2155
    %v2296 = vpop.f32.mrf.mxu0
    %v2297 = vadd.f32 0.0, %v2296
    %v2298 = vpop.f32.mrf.mxu0
    %v2299 = vadd.f32 0.0, %v2298
    %2300 = vmatmul.bf16.gmra.mxu0 %v2156
    %v2301 = vpop.f32.mrf.mxu0
    %v2302 = vadd.f32 0.0, %v2301
    %v2303 = vpop.f32.mrf.mxu0
    %v2304 = vadd.f32 0.0, %v2303
    %2305 = vmatmul.bf16.gmra.mxu0 %v2157
    %v2306 = vpop.f32.mrf.mxu0
    %v2307 = vadd.f32 0.0, %v2306
    %v2308 = vpop.f32.mrf.mxu0
    %v2309 = vadd.f32 0.0, %v2308
    %2310 = vmatmul.bf16.gmra.mxu0 %v2158
    %v2311 = vpop.f32.mrf.mxu0
    %v2312 = vadd.f32 0.0, %v2311
    %v2313 = vpop.f32.mrf.mxu0
    %v2314 = vadd.f32 0.0, %v2313
    %2315 = vmatmul.bf16.gmra.mxu0 %v2159
    %v2316 = vpop.f32.mrf.mxu0
    %v2317 = vadd.f32 0.0, %v2316
    %v2318 = vpop.f32.mrf.mxu0
    %v2319 = vadd.f32 0.0, %v2318
    %2320 = vmatmul.bf16.gmra.mxu0 %v2160
    %v2321 = vpop.f32.mrf.mxu0
    %v2322 = vadd.f32 0.0, %v2321
    %v2323 = vpop.f32.mrf.mxu0
    %v2324 = vadd.f32 0.0, %v2323
    %2325 = vmatmul.bf16.gmra.mxu0 %v2161
    %v2326 = vpop.f32.mrf.mxu0
    %v2327 = vadd.f32 0.0, %v2326
    %v2328 = vpop.f32.mrf.mxu0
    %v2329 = vadd.f32 0.0, %v2328
    %2330 = vmatmul.bf16.gmra.mxu0 %v2162
    %v2331 = vpop.f32.mrf.mxu0
    %v2332 = vadd.f32 0.0, %v2331
    %v2333 = vpop.f32.mrf.mxu0
    %v2334 = vadd.f32 0.0, %v2333
    %2335 = vmatmul.bf16.gmra.mxu0 %v2163
    %v2336 = vpop.f32.mrf.mxu0
    %v2337 = vadd.f32 0.0, %v2336
    %v2338 = vpop.f32.mrf.mxu0
    %v2339 = vadd.f32 0.0, %v2338
    %2340 = vmatmul.bf16.gmra.mxu0 %v2164
    %v2341 = vpop.f32.mrf.mxu0
    %v2342 = vadd.f32 0.0, %v2341
    %v2343 = vpop.f32.mrf.mxu0
    %v2344 = vadd.f32 0.0, %v2343
    %2345 = vmatmul.bf16.gmra.mxu0 %v2165
    %v2346 = vpop.f32.mrf.mxu0
    %v2347 = vadd.f32 0.0, %v2346
    %v2348 = vpop.f32.mrf.mxu0
    %v2349 = vadd.f32 0.0, %v2348
    %2350 = vmatmul.bf16.gmra.mxu0 %v2166
    %v2351 = vpop.f32.mrf.mxu0
    %v2352 = vadd.f32 0.0, %v2351
    %v2353 = vpop.f32.mrf.mxu0
    %v2354 = vadd.f32 0.0, %v2353
    %2355 = vmatmul.bf16.gmra.mxu0 %v2167
    %v2356 = vpop.f32.mrf.mxu0
    %v2357 = vadd.f32 0.0, %v2356
    %v2358 = vpop.f32.mrf.mxu0
    %v2359 = vadd.f32 0.0, %v2358
    %2360 = vmatmul.bf16.gmra.mxu0 %v2168
    %v2361 = vpop.f32.mrf.mxu0
    %v2362 = vadd.f32 0.0, %v2361
    %v2363 = vpop.f32.mrf.mxu0
    %v2364 = vadd.f32 0.0, %v2363
    %2365 = vmatmul.bf16.gmra.mxu0 %v2169
    %v2366 = vpop.f32.mrf.mxu0
    %v2367 = vadd.f32 0.0, %v2366
    %v2368 = vpop.f32.mrf.mxu0
    %v2369 = vadd.f32 0.0, %v2368
    %2370 = vmatmul.bf16.gmra.mxu0 %v2170
    %v2371 = vpop.f32.mrf.mxu0
    %v2372 = vadd.f32 0.0, %v2371
    %v2373 = vpop.f32.mrf.mxu0
    %v2374 = vadd.f32 0.0, %v2373
    %2375 = vmatmul.bf16.gmra.mxu0 %v2171
    %v2376 = vpop.f32.mrf.mxu0
    %v2377 = vadd.f32 0.0, %v2376
    %v2378 = vpop.f32.mrf.mxu0
    %v2379 = vadd.f32 0.0, %v2378
    %2380 = vmatmul.bf16.gmra.mxu0 %v2172
    %v2381 = vpop.f32.mrf.mxu0
    %v2382 = vadd.f32 0.0, %v2381
    %v2383 = vpop.f32.mrf.mxu0
    %v2384 = vadd.f32 0.0, %v2383
    %2385 = vmatmul.bf16.gmra.mxu0 %v2173
    %v2386 = vpop.f32.mrf.mxu0
    %v2387 = vadd.f32 0.0, %v2386
    %v2388 = vpop.f32.mrf.mxu0
    %v2389 = vadd.f32 0.0, %v2388
    %2390 = vmatmul.bf16.gmra.mxu0 %v2174
    %v2391 = vpop.f32.mrf.mxu0
    %v2392 = vadd.f32 0.0, %v2391
    %v2393 = vpop.f32.mrf.mxu0
    %v2394 = vadd.f32 0.0, %v2393
    %2395 = vmatmul.bf16.gmra.mxu0 %v2175
    %v2396 = vpop.f32.mrf.mxu0
    %v2397 = vadd.f32 0.0, %v2396
    %v2398 = vpop.f32.mrf.mxu0
    %v2399 = vadd.f32 0.0, %v2398
    %2400 = vmatmul.bf16.gmra.mxu0 %v2176
    %v2401 = vpop.f32.mrf.mxu0
    %v2402 = vadd.f32 0.0, %v2401
    %v2403 = vpop.f32.mrf.mxu0
    %v2404 = vadd.f32 0.0, %v2403
    %2405 = vmatmul.bf16.gmra.mxu0 %v2177
    %v2406 = vpop.f32.mrf.mxu0
    %v2407 = vadd.f32 0.0, %v2406
    %v2408 = vpop.f32.mrf.mxu0
    %v2409 = vadd.f32 0.0, %v2408
    %2410 = vdwg.mxu0
    %v2411 = vpack.c.bf16 %v2254, %v2252
    %v2412 = vpack.c.bf16 %v2259, %v2257
    %v2413 = vpack.c.bf16 %v2264, %v2262
    %v2414 = vpack.c.bf16 %v2269, %v2267
    %v2415 = vpack.c.bf16 %v2274, %v2272
    %v2416 = vpack.c.bf16 %v2279, %v2277
    %v2417 = vpack.c.bf16 %v2284, %v2282
    %v2418 = vpack.c.bf16 %v2289, %v2287
    %v2419 = vpack.c.bf16 %v2294, %v2292
    %v2420 = vpack.c.bf16 %v2299, %v2297
    %v2421 = vpack.c.bf16 %v2304, %v2302
    %v2422 = vpack.c.bf16 %v2309, %v2307
    %v2423 = vpack.c.bf16 %v2314, %v2312
    %v2424 = vpack.c.bf16 %v2319, %v2317
    %v2425 = vpack.c.bf16 %v2324, %v2322
    %v2426 = vpack.c.bf16 %v2329, %v2327
    %v2427 = vpack.c.bf16 %v2334, %v2332
    %v2428 = vpack.c.bf16 %v2339, %v2337
    %v2429 = vpack.c.bf16 %v2344, %v2342
    %v2430 = vpack.c.bf16 %v2349, %v2347
    %v2431 = vpack.c.bf16 %v2354, %v2352
    %v2432 = vpack.c.bf16 %v2359, %v2357
    %v2433 = vpack.c.bf16 %v2364, %v2362
    %v2434 = vpack.c.bf16 %v2369, %v2367
    %v2435 = vpack.c.bf16 %v2374, %v2372
    %v2436 = vpack.c.bf16 %v2379, %v2377
    %v2437 = vpack.c.bf16 %v2384, %v2382
    %v2438 = vpack.c.bf16 %v2389, %v2387
    %v2439 = vpack.c.bf16 %v2394, %v2392
    %v2440 = vpack.c.bf16 %v2399, %v2397
    %v2441 = vpack.c.bf16 %v2404, %v2402
    %v2442 = vpack.c.bf16 %v2409, %v2407
    %v2443 = vld [vmem:[%s6] sm:$0x1]
    %v2445 = vperm.slane %v2443, 0
    %2447 = vmatpush.bf16.msra.mxu0 %v2418
    %2448 = vmatpush.bf16.msra.mxu0 %v2417
    %2449 = vmatpush.bf16.msra.mxu0 %v2416
    %2450 = vmatpush.bf16.msra.mxu0 %v2415
    %2451 = vmatpush.bf16.msra.mxu0 %v2414
    %2452 = vmatpush.bf16.msra.mxu0 %v2413
    %2453 = vmatpush.bf16.msra.mxu0 %v2412
    %2454 = vmatpush.bf16.msra.mxu0 %v2411
    %2455 = vmatmul.bf16.gmra.mxu0 %v1150
    %v2456 = vpop.f32.mrf.mxu0
    %v2457 = vadd.f32 %v2445, %v2456
    %v2458 = vpop.f32.mrf.mxu0
    %v2459 = vadd.f32 %v2445, %v2458
    %2460 = vmatmul.bf16.gmra.mxu0 %v1154
    %v2461 = vpop.f32.mrf.mxu0
    %v2462 = vadd.f32 %v2445, %v2461
    %v2463 = vpop.f32.mrf.mxu0
    %v2464 = vadd.f32 %v2445, %v2463
    %2465 = vmatmul.bf16.gmra.mxu0 %v1158
    %v2466 = vpop.f32.mrf.mxu0
    %v2467 = vadd.f32 %v2445, %v2466
    %v2468 = vpop.f32.mrf.mxu0
    %v2469 = vadd.f32 %v2445, %v2468
    %2470 = vmatmul.bf16.gmra.mxu0 %v1162
    %v2471 = vpop.f32.mrf.mxu0
    %v2472 = vadd.f32 %v2445, %v2471
    %v2473 = vpop.f32.mrf.mxu0
    %v2474 = vadd.f32 %v2445, %v2473
    %2475 = vmatmul.bf16.gmra.mxu0 %v1166
    %v2476 = vpop.f32.mrf.mxu0
    %v2477 = vadd.f32 %v2445, %v2476
    %v2478 = vpop.f32.mrf.mxu0
    %v2479 = vadd.f32 %v2445, %v2478
    %2480 = vmatmul.bf16.gmra.mxu0 %v1170
    %v2481 = vpop.f32.mrf.mxu0
    %v2482 = vadd.f32 %v2445, %v2481
    %v2483 = vpop.f32.mrf.mxu0
    %v2484 = vadd.f32 %v2445, %v2483
    %2485 = vmatmul.bf16.gmra.mxu0 %v1174
    %v2486 = vpop.f32.mrf.mxu0
    %v2487 = vadd.f32 %v2445, %v2486
    %v2488 = vpop.f32.mrf.mxu0
    %v2489 = vadd.f32 %v2445, %v2488
    %2490 = vmatmul.bf16.gmra.mxu0 %v1178
    %v2491 = vpop.f32.mrf.mxu0
    %v2492 = vadd.f32 %v2445, %v2491
    %v2493 = vpop.f32.mrf.mxu0
    %v2494 = vadd.f32 %v2445, %v2493
    %2495 = vmatmul.bf16.gmra.mxu0 %v1182
    %v2496 = vpop.f32.mrf.mxu0
    %v2497 = vadd.f32 %v2445, %v2496
    %v2498 = vpop.f32.mrf.mxu0
    %v2499 = vadd.f32 %v2445, %v2498
    %2500 = vmatmul.bf16.gmra.mxu0 %v1186
    %v2501 = vpop.f32.mrf.mxu0
    %v2502 = vadd.f32 %v2445, %v2501
    %v2503 = vpop.f32.mrf.mxu0
    %v2504 = vadd.f32 %v2445, %v2503
    %2505 = vmatmul.bf16.gmra.mxu0 %v1190
    %v2506 = vpop.f32.mrf.mxu0
    %v2507 = vadd.f32 %v2445, %v2506
    %v2508 = vpop.f32.mrf.mxu0
    %v2509 = vadd.f32 %v2445, %v2508
    %2510 = vmatmul.bf16.gmra.mxu0 %v1194
    %v2511 = vpop.f32.mrf.mxu0
    %v2512 = vadd.f32 %v2445, %v2511
    %v2513 = vpop.f32.mrf.mxu0
    %v2514 = vadd.f32 %v2445, %v2513
    %2515 = vmatmul.bf16.gmra.mxu0 %v1198
    %v2516 = vpop.f32.mrf.mxu0
    %v2517 = vadd.f32 %v2445, %v2516
    %v2518 = vpop.f32.mrf.mxu0
    %v2519 = vadd.f32 %v2445, %v2518
    %2520 = vmatmul.bf16.gmra.mxu0 %v1202
    %v2521 = vpop.f32.mrf.mxu0
    %v2522 = vadd.f32 %v2445, %v2521
    %v2523 = vpop.f32.mrf.mxu0
    %v2524 = vadd.f32 %v2445, %v2523
    %2525 = vmatmul.bf16.gmra.mxu0 %v1206
    %v2526 = vpop.f32.mrf.mxu0
    %v2527 = vadd.f32 %v2445, %v2526
    %v2528 = vpop.f32.mrf.mxu0
    %v2529 = vadd.f32 %v2445, %v2528
    %2530 = vmatmul.bf16.gmra.mxu0 %v1210
    %v2531 = vpop.f32.mrf.mxu0
    %v2532 = vadd.f32 %v2445, %v2531
    %v2533 = vpop.f32.mrf.mxu0
    %v2534 = vadd.f32 %v2445, %v2533
    %2535 = vmatmul.bf16.gmra.mxu0 %v1214
    %v2536 = vpop.f32.mrf.mxu0
    %v2537 = vadd.f32 %v2445, %v2536
    %v2538 = vpop.f32.mrf.mxu0
    %v2539 = vadd.f32 %v2445, %v2538
    %2540 = vmatmul.bf16.gmra.mxu0 %v1218
    %v2541 = vpop.f32.mrf.mxu0
    %v2542 = vadd.f32 %v2445, %v2541
    %v2543 = vpop.f32.mrf.mxu0
    %v2544 = vadd.f32 %v2445, %v2543
    %2545 = vmatmul.bf16.gmra.mxu0 %v1222
    %v2546 = vpop.f32.mrf.mxu0
    %v2547 = vadd.f32 %v2445, %v2546
    %v2548 = vpop.f32.mrf.mxu0
    %v2549 = vadd.f32 %v2445, %v2548
    %2550 = vmatmul.bf16.gmra.mxu0 %v1226
    %v2551 = vpop.f32.mrf.mxu0
    %v2552 = vadd.f32 %v2445, %v2551
    %v2553 = vpop.f32.mrf.mxu0
    %v2554 = vadd.f32 %v2445, %v2553
    %2555 = vmatmul.bf16.gmra.mxu0 %v1230
    %v2556 = vpop.f32.mrf.mxu0
    %v2557 = vadd.f32 %v2445, %v2556
    %v2558 = vpop.f32.mrf.mxu0
    %v2559 = vadd.f32 %v2445, %v2558
    %2560 = vmatmul.bf16.gmra.mxu0 %v1234
    %v2561 = vpop.f32.mrf.mxu0
    %v2562 = vadd.f32 %v2445, %v2561
    %v2563 = vpop.f32.mrf.mxu0
    %v2564 = vadd.f32 %v2445, %v2563
    %2565 = vmatmul.bf16.gmra.mxu0 %v1238
    %v2566 = vpop.f32.mrf.mxu0
    %v2567 = vadd.f32 %v2445, %v2566
    %v2568 = vpop.f32.mrf.mxu0
    %v2569 = vadd.f32 %v2445, %v2568
    %2570 = vmatmul.bf16.gmra.mxu0 %v1242
    %v2571 = vpop.f32.mrf.mxu0
    %v2572 = vadd.f32 %v2445, %v2571
    %v2573 = vpop.f32.mrf.mxu0
    %v2574 = vadd.f32 %v2445, %v2573
    %2575 = vmatmul.bf16.gmra.mxu0 %v1246
    %v2576 = vpop.f32.mrf.mxu0
    %v2577 = vadd.f32 %v2445, %v2576
    %v2578 = vpop.f32.mrf.mxu0
    %v2579 = vadd.f32 %v2445, %v2578
    %2580 = vmatmul.bf16.gmra.mxu0 %v1250
    %v2581 = vpop.f32.mrf.mxu0
    %v2582 = vadd.f32 %v2445, %v2581
    %v2583 = vpop.f32.mrf.mxu0
    %v2584 = vadd.f32 %v2445, %v2583
    %2585 = vmatmul.bf16.gmra.mxu0 %v1254
    %v2586 = vpop.f32.mrf.mxu0
    %v2587 = vadd.f32 %v2445, %v2586
    %v2588 = vpop.f32.mrf.mxu0
    %v2589 = vadd.f32 %v2445, %v2588
    %2590 = vmatmul.bf16.gmra.mxu0 %v1258
    %v2591 = vpop.f32.mrf.mxu0
    %v2592 = vadd.f32 %v2445, %v2591
    %v2593 = vpop.f32.mrf.mxu0
    %v2594 = vadd.f32 %v2445, %v2593
    %2595 = vmatmul.bf16.gmra.mxu0 %v1262
    %v2596 = vpop.f32.mrf.mxu0
    %v2597 = vadd.f32 %v2445, %v2596
    %v2598 = vpop.f32.mrf.mxu0
    %v2599 = vadd.f32 %v2445, %v2598
    %2600 = vmatmul.bf16.gmra.mxu0 %v1266
    %v2601 = vpop.f32.mrf.mxu0
    %v2602 = vadd.f32 %v2445, %v2601
    %v2603 = vpop.f32.mrf.mxu0
    %v2604 = vadd.f32 %v2445, %v2603
    %2605 = vmatmul.bf16.gmra.mxu0 %v1270
    %v2606 = vpop.f32.mrf.mxu0
    %v2607 = vadd.f32 %v2445, %v2606
    %v2608 = vpop.f32.mrf.mxu0
    %v2609 = vadd.f32 %v2445, %v2608
    %2610 = vmatmul.bf16.gmra.mxu0 %v1274
    %v2611 = vpop.f32.mrf.mxu0
    %v2612 = vadd.f32 %v2445, %v2611
    %v2613 = vpop.f32.mrf.mxu0
    %v2614 = vadd.f32 %v2445, %v2613
    %2615 = vdwg.mxu0
    %2616 = vmatpush.bf16.msra.mxu0 %v2426
    %2617 = vmatpush.bf16.msra.mxu0 %v2425
    %2618 = vmatpush.bf16.msra.mxu0 %v2424
    %2619 = vmatpush.bf16.msra.mxu0 %v2423
    %2620 = vmatpush.bf16.msra.mxu0 %v2422
    %2621 = vmatpush.bf16.msra.mxu0 %v2421
    %2622 = vmatpush.bf16.msra.mxu0 %v2420
    %2623 = vmatpush.bf16.msra.mxu0 %v2419
    %2624 = vmatmul.bf16.gmra.mxu0 %v1151
    %v2625 = vpop.f32.mrf.mxu0
    %v2626 = vadd.f32 %v2457, %v2625
    %v2627 = vpop.f32.mrf.mxu0
    %v2628 = vadd.f32 %v2459, %v2627
    %2629 = vmatmul.bf16.gmra.mxu0 %v1155
    %v2630 = vpop.f32.mrf.mxu0
    %v2631 = vadd.f32 %v2462, %v2630
    %v2632 = vpop.f32.mrf.mxu0
    %v2633 = vadd.f32 %v2464, %v2632
    %2634 = vmatmul.bf16.gmra.mxu0 %v1159
    %v2635 = vpop.f32.mrf.mxu0
    %v2636 = vadd.f32 %v2467, %v2635
    %v2637 = vpop.f32.mrf.mxu0
    %v2638 = vadd.f32 %v2469, %v2637
    %2639 = vmatmul.bf16.gmra.mxu0 %v1163
    %v2640 = vpop.f32.mrf.mxu0
    %v2641 = vadd.f32 %v2472, %v2640
    %v2642 = vpop.f32.mrf.mxu0
    %v2643 = vadd.f32 %v2474, %v2642
    %2644 = vmatmul.bf16.gmra.mxu0 %v1167
    %v2645 = vpop.f32.mrf.mxu0
    %v2646 = vadd.f32 %v2477, %v2645
    %v2647 = vpop.f32.mrf.mxu0
    %v2648 = vadd.f32 %v2479, %v2647
    %2649 = vmatmul.bf16.gmra.mxu0 %v1171
    %v2650 = vpop.f32.mrf.mxu0
    %v2651 = vadd.f32 %v2482, %v2650
    %v2652 = vpop.f32.mrf.mxu0
    %v2653 = vadd.f32 %v2484, %v2652
    %2654 = vmatmul.bf16.gmra.mxu0 %v1175
    %v2655 = vpop.f32.mrf.mxu0
    %v2656 = vadd.f32 %v2487, %v2655
    %v2657 = vpop.f32.mrf.mxu0
    %v2658 = vadd.f32 %v2489, %v2657
    %2659 = vmatmul.bf16.gmra.mxu0 %v1179
    %v2660 = vpop.f32.mrf.mxu0
    %v2661 = vadd.f32 %v2492, %v2660
    %v2662 = vpop.f32.mrf.mxu0
    %v2663 = vadd.f32 %v2494, %v2662
    %2664 = vmatmul.bf16.gmra.mxu0 %v1183
    %v2665 = vpop.f32.mrf.mxu0
    %v2666 = vadd.f32 %v2497, %v2665
    %v2667 = vpop.f32.mrf.mxu0
    %v2668 = vadd.f32 %v2499, %v2667
    %2669 = vmatmul.bf16.gmra.mxu0 %v1187
    %v2670 = vpop.f32.mrf.mxu0
    %v2671 = vadd.f32 %v2502, %v2670
    %v2672 = vpop.f32.mrf.mxu0
    %v2673 = vadd.f32 %v2504, %v2672
    %2674 = vmatmul.bf16.gmra.mxu0 %v1191
    %v2675 = vpop.f32.mrf.mxu0
    %v2676 = vadd.f32 %v2507, %v2675
    %v2677 = vpop.f32.mrf.mxu0
    %v2678 = vadd.f32 %v2509, %v2677
    %2679 = vmatmul.bf16.gmra.mxu0 %v1195
    %v2680 = vpop.f32.mrf.mxu0
    %v2681 = vadd.f32 %v2512, %v2680
    %v2682 = vpop.f32.mrf.mxu0
    %v2683 = vadd.f32 %v2514, %v2682
    %2684 = vmatmul.bf16.gmra.mxu0 %v1199
    %v2685 = vpop.f32.mrf.mxu0
    %v2686 = vadd.f32 %v2517, %v2685
    %v2687 = vpop.f32.mrf.mxu0
    %v2688 = vadd.f32 %v2519, %v2687
    %2689 = vmatmul.bf16.gmra.mxu0 %v1203
    %v2690 = vpop.f32.mrf.mxu0
    %v2691 = vadd.f32 %v2522, %v2690
    %v2692 = vpop.f32.mrf.mxu0
    %v2693 = vadd.f32 %v2524, %v2692
    %2694 = vmatmul.bf16.gmra.mxu0 %v1207
    %v2695 = vpop.f32.mrf.mxu0
    %v2696 = vadd.f32 %v2527, %v2695
    %v2697 = vpop.f32.mrf.mxu0
    %v2698 = vadd.f32 %v2529, %v2697
    %2699 = vmatmul.bf16.gmra.mxu0 %v1211
    %v2700 = vpop.f32.mrf.mxu0
    %v2701 = vadd.f32 %v2532, %v2700
    %v2702 = vpop.f32.mrf.mxu0
    %v2703 = vadd.f32 %v2534, %v2702
    %2704 = vmatmul.bf16.gmra.mxu0 %v1215
    %v2705 = vpop.f32.mrf.mxu0
    %v2706 = vadd.f32 %v2537, %v2705
    %v2707 = vpop.f32.mrf.mxu0
    %v2708 = vadd.f32 %v2539, %v2707
    %2709 = vmatmul.bf16.gmra.mxu0 %v1219
    %v2710 = vpop.f32.mrf.mxu0
    %v2711 = vadd.f32 %v2542, %v2710
    %v2712 = vpop.f32.mrf.mxu0
    %v2713 = vadd.f32 %v2544, %v2712
    %2714 = vmatmul.bf16.gmra.mxu0 %v1223
    %v2715 = vpop.f32.mrf.mxu0
    %v2716 = vadd.f32 %v2547, %v2715
    %v2717 = vpop.f32.mrf.mxu0
    %v2718 = vadd.f32 %v2549, %v2717
    %2719 = vmatmul.bf16.gmra.mxu0 %v1227
    %v2720 = vpop.f32.mrf.mxu0
    %v2721 = vadd.f32 %v2552, %v2720
    %v2722 = vpop.f32.mrf.mxu0
    %v2723 = vadd.f32 %v2554, %v2722
    %2724 = vmatmul.bf16.gmra.mxu0 %v1231
    %v2725 = vpop.f32.mrf.mxu0
    %v2726 = vadd.f32 %v2557, %v2725
    %v2727 = vpop.f32.mrf.mxu0
    %v2728 = vadd.f32 %v2559, %v2727
    %2729 = vmatmul.bf16.gmra.mxu0 %v1235
    %v2730 = vpop.f32.mrf.mxu0
    %v2731 = vadd.f32 %v2562, %v2730
    %v2732 = vpop.f32.mrf.mxu0
    %v2733 = vadd.f32 %v2564, %v2732
    %2734 = vmatmul.bf16.gmra.mxu0 %v1239
    %v2735 = vpop.f32.mrf.mxu0
    %v2736 = vadd.f32 %v2567, %v2735
    %v2737 = vpop.f32.mrf.mxu0
    %v2738 = vadd.f32 %v2569, %v2737
    %2739 = vmatmul.bf16.gmra.mxu0 %v1243
    %v2740 = vpop.f32.mrf.mxu0
    %v2741 = vadd.f32 %v2572, %v2740
    %v2742 = vpop.f32.mrf.mxu0
    %v2743 = vadd.f32 %v2574, %v2742
    %2744 = vmatmul.bf16.gmra.mxu0 %v1247
    %v2745 = vpop.f32.mrf.mxu0
    %v2746 = vadd.f32 %v2577, %v2745
    %v2747 = vpop.f32.mrf.mxu0
    %v2748 = vadd.f32 %v2579, %v2747
    %2749 = vmatmul.bf16.gmra.mxu0 %v1251
    %v2750 = vpop.f32.mrf.mxu0
    %v2751 = vadd.f32 %v2582, %v2750
    %v2752 = vpop.f32.mrf.mxu0
    %v2753 = vadd.f32 %v2584, %v2752
    %2754 = vmatmul.bf16.gmra.mxu0 %v1255
    %v2755 = vpop.f32.mrf.mxu0
    %v2756 = vadd.f32 %v2587, %v2755
    %v2757 = vpop.f32.mrf.mxu0
    %v2758 = vadd.f32 %v2589, %v2757
    %2759 = vmatmul.bf16.gmra.mxu0 %v1259
    %v2760 = vpop.f32.mrf.mxu0
    %v2761 = vadd.f32 %v2592, %v2760
    %v2762 = vpop.f32.mrf.mxu0
    %v2763 = vadd.f32 %v2594, %v2762
    %2764 = vmatmul.bf16.gmra.mxu0 %v1263
    %v2765 = vpop.f32.mrf.mxu0
    %v2766 = vadd.f32 %v2597, %v2765
    %v2767 = vpop.f32.mrf.mxu0
    %v2768 = vadd.f32 %v2599, %v2767
    %2769 = vmatmul.bf16.gmra.mxu0 %v1267
    %v2770 = vpop.f32.mrf.mxu0
    %v2771 = vadd.f32 %v2602, %v2770
    %v2772 = vpop.f32.mrf.mxu0
    %v2773 = vadd.f32 %v2604, %v2772
    %2774 = vmatmul.bf16.gmra.mxu0 %v1271
    %v2775 = vpop.f32.mrf.mxu0
    %v2776 = vadd.f32 %v2607, %v2775
    %v2777 = vpop.f32.mrf.mxu0
    %v2778 = vadd.f32 %v2609, %v2777
    %2779 = vmatmul.bf16.gmra.mxu0 %v1275
    %v2780 = vpop.f32.mrf.mxu0
    %v2781 = vadd.f32 %v2612, %v2780
    %v2782 = vpop.f32.mrf.mxu0
    %v2783 = vadd.f32 %v2614, %v2782
    %2784 = vdwg.mxu0
    %2785 = vmatpush.bf16.msra.mxu0 %v2434
    %2786 = vmatpush.bf16.msra.mxu0 %v2433
    %2787 = vmatpush.bf16.msra.mxu0 %v2432
    %2788 = vmatpush.bf16.msra.mxu0 %v2431
    %2789 = vmatpush.bf16.msra.mxu0 %v2430
    %2790 = vmatpush.bf16.msra.mxu0 %v2429
    %2791 = vmatpush.bf16.msra.mxu0 %v2428
    %2792 = vmatpush.bf16.msra.mxu0 %v2427
    %2793 = vmatmul.bf16.gmra.mxu0 %v1152
    %v2794 = vpop.f32.mrf.mxu0
    %v2795 = vadd.f32 %v2626, %v2794
    %v2796 = vpop.f32.mrf.mxu0
    %v2797 = vadd.f32 %v2628, %v2796
    %2798 = vmatmul.bf16.gmra.mxu0 %v1156
    %v2799 = vpop.f32.mrf.mxu0
    %v2800 = vadd.f32 %v2631, %v2799
    %v2801 = vpop.f32.mrf.mxu0
    %v2802 = vadd.f32 %v2633, %v2801
    %2803 = vmatmul.bf16.gmra.mxu0 %v1160
    %v2804 = vpop.f32.mrf.mxu0
    %v2805 = vadd.f32 %v2636, %v2804
    %v2806 = vpop.f32.mrf.mxu0
    %v2807 = vadd.f32 %v2638, %v2806
    %2808 = vmatmul.bf16.gmra.mxu0 %v1164
    %v2809 = vpop.f32.mrf.mxu0
    %v2810 = vadd.f32 %v2641, %v2809
    %v2811 = vpop.f32.mrf.mxu0
    %v2812 = vadd.f32 %v2643, %v2811
    %2813 = vmatmul.bf16.gmra.mxu0 %v1168
    %v2814 = vpop.f32.mrf.mxu0
    %v2815 = vadd.f32 %v2646, %v2814
    %v2816 = vpop.f32.mrf.mxu0
    %v2817 = vadd.f32 %v2648, %v2816
    %2818 = vmatmul.bf16.gmra.mxu0 %v1172
    %v2819 = vpop.f32.mrf.mxu0
    %v2820 = vadd.f32 %v2651, %v2819
    %v2821 = vpop.f32.mrf.mxu0
    %v2822 = vadd.f32 %v2653, %v2821
    %2823 = vmatmul.bf16.gmra.mxu0 %v1176
    %v2824 = vpop.f32.mrf.mxu0
    %v2825 = vadd.f32 %v2656, %v2824
    %v2826 = vpop.f32.mrf.mxu0
    %v2827 = vadd.f32 %v2658, %v2826
    %2828 = vmatmul.bf16.gmra.mxu0 %v1180
    %v2829 = vpop.f32.mrf.mxu0
    %v2830 = vadd.f32 %v2661, %v2829
    %v2831 = vpop.f32.mrf.mxu0
    %v2832 = vadd.f32 %v2663, %v2831
    %2833 = vmatmul.bf16.gmra.mxu0 %v1184
    %v2834 = vpop.f32.mrf.mxu0
    %v2835 = vadd.f32 %v2666, %v2834
    %v2836 = vpop.f32.mrf.mxu0
    %v2837 = vadd.f32 %v2668, %v2836
    %2838 = vmatmul.bf16.gmra.mxu0 %v1188
    %v2839 = vpop.f32.mrf.mxu0
    %v2840 = vadd.f32 %v2671, %v2839
    %v2841 = vpop.f32.mrf.mxu0
    %v2842 = vadd.f32 %v2673, %v2841
    %2843 = vmatmul.bf16.gmra.mxu0 %v1192
    %v2844 = vpop.f32.mrf.mxu0
    %v2845 = vadd.f32 %v2676, %v2844
    %v2846 = vpop.f32.mrf.mxu0
    %v2847 = vadd.f32 %v2678, %v2846
    %2848 = vmatmul.bf16.gmra.mxu0 %v1196
    %v2849 = vpop.f32.mrf.mxu0
    %v2850 = vadd.f32 %v2681, %v2849
    %v2851 = vpop.f32.mrf.mxu0
    %v2852 = vadd.f32 %v2683, %v2851
    %2853 = vmatmul.bf16.gmra.mxu0 %v1200
    %v2854 = vpop.f32.mrf.mxu0
    %v2855 = vadd.f32 %v2686, %v2854
    %v2856 = vpop.f32.mrf.mxu0
    %v2857 = vadd.f32 %v2688, %v2856
    %2858 = vmatmul.bf16.gmra.mxu0 %v1204
    %v2859 = vpop.f32.mrf.mxu0
    %v2860 = vadd.f32 %v2691, %v2859
    %v2861 = vpop.f32.mrf.mxu0
    %v2862 = vadd.f32 %v2693, %v2861
    %2863 = vmatmul.bf16.gmra.mxu0 %v1208
    %v2864 = vpop.f32.mrf.mxu0
    %v2865 = vadd.f32 %v2696, %v2864
    %v2866 = vpop.f32.mrf.mxu0
    %v2867 = vadd.f32 %v2698, %v2866
    %2868 = vmatmul.bf16.gmra.mxu0 %v1212
    %v2869 = vpop.f32.mrf.mxu0
    %v2870 = vadd.f32 %v2701, %v2869
    %v2871 = vpop.f32.mrf.mxu0
    %v2872 = vadd.f32 %v2703, %v2871
    %2873 = vmatmul.bf16.gmra.mxu0 %v1216
    %v2874 = vpop.f32.mrf.mxu0
    %v2875 = vadd.f32 %v2706, %v2874
    %v2876 = vpop.f32.mrf.mxu0
    %v2877 = vadd.f32 %v2708, %v2876
    %2878 = vmatmul.bf16.gmra.mxu0 %v1220
    %v2879 = vpop.f32.mrf.mxu0
    %v2880 = vadd.f32 %v2711, %v2879
    %v2881 = vpop.f32.mrf.mxu0
    %v2882 = vadd.f32 %v2713, %v2881
    %2883 = vmatmul.bf16.gmra.mxu0 %v1224
    %v2884 = vpop.f32.mrf.mxu0
    %v2885 = vadd.f32 %v2716, %v2884
    %v2886 = vpop.f32.mrf.mxu0
    %v2887 = vadd.f32 %v2718, %v2886
    %2888 = vmatmul.bf16.gmra.mxu0 %v1228
    %v2889 = vpop.f32.mrf.mxu0
    %v2890 = vadd.f32 %v2721, %v2889
    %v2891 = vpop.f32.mrf.mxu0
    %v2892 = vadd.f32 %v2723, %v2891
    %2893 = vmatmul.bf16.gmra.mxu0 %v1232
    %v2894 = vpop.f32.mrf.mxu0
    %v2895 = vadd.f32 %v2726, %v2894
    %v2896 = vpop.f32.mrf.mxu0
    %v2897 = vadd.f32 %v2728, %v2896
    %2898 = vmatmul.bf16.gmra.mxu0 %v1236
    %v2899 = vpop.f32.mrf.mxu0
    %v2900 = vadd.f32 %v2731, %v2899
    %v2901 = vpop.f32.mrf.mxu0
    %v2902 = vadd.f32 %v2733, %v2901
    %2903 = vmatmul.bf16.gmra.mxu0 %v1240
    %v2904 = vpop.f32.mrf.mxu0
    %v2905 = vadd.f32 %v2736, %v2904
    %v2906 = vpop.f32.mrf.mxu0
    %v2907 = vadd.f32 %v2738, %v2906
    %2908 = vmatmul.bf16.gmra.mxu0 %v1244
    %v2909 = vpop.f32.mrf.mxu0
    %v2910 = vadd.f32 %v2741, %v2909
    %v2911 = vpop.f32.mrf.mxu0
    %v2912 = vadd.f32 %v2743, %v2911
    %2913 = vmatmul.bf16.gmra.mxu0 %v1248
    %v2914 = vpop.f32.mrf.mxu0
    %v2915 = vadd.f32 %v2746, %v2914
    %v2916 = vpop.f32.mrf.mxu0
    %v2917 = vadd.f32 %v2748, %v2916
    %2918 = vmatmul.bf16.gmra.mxu0 %v1252
    %v2919 = vpop.f32.mrf.mxu0
    %v2920 = vadd.f32 %v2751, %v2919
    %v2921 = vpop.f32.mrf.mxu0
    %v2922 = vadd.f32 %v2753, %v2921
    %2923 = vmatmul.bf16.gmra.mxu0 %v1256
    %v2924 = vpop.f32.mrf.mxu0
    %v2925 = vadd.f32 %v2756, %v2924
    %v2926 = vpop.f32.mrf.mxu0
    %v2927 = vadd.f32 %v2758, %v2926
    %2928 = vmatmul.bf16.gmra.mxu0 %v1260
    %v2929 = vpop.f32.mrf.mxu0
    %v2930 = vadd.f32 %v2761, %v2929
    %v2931 = vpop.f32.mrf.mxu0
    %v2932 = vadd.f32 %v2763, %v2931
    %2933 = vmatmul.bf16.gmra.mxu0 %v1264
    %v2934 = vpop.f32.mrf.mxu0
    %v2935 = vadd.f32 %v2766, %v2934
    %v2936 = vpop.f32.mrf.mxu0
    %v2937 = vadd.f32 %v2768, %v2936
    %2938 = vmatmul.bf16.gmra.mxu0 %v1268
    %v2939 = vpop.f32.mrf.mxu0
    %v2940 = vadd.f32 %v2771, %v2939
    %v2941 = vpop.f32.mrf.mxu0
    %v2942 = vadd.f32 %v2773, %v2941
    %2943 = vmatmul.bf16.gmra.mxu0 %v1272
    %v2944 = vpop.f32.mrf.mxu0
    %v2945 = vadd.f32 %v2776, %v2944
    %v2946 = vpop.f32.mrf.mxu0
    %v2947 = vadd.f32 %v2778, %v2946
    %2948 = vmatmul.bf16.gmra.mxu0 %v1276
    %v2949 = vpop.f32.mrf.mxu0
    %v2950 = vadd.f32 %v2781, %v2949
    %v2951 = vpop.f32.mrf.mxu0
    %v2952 = vadd.f32 %v2783, %v2951
    %2953 = vdwg.mxu0
    %2954 = vmatpush.bf16.msra.mxu0 %v2442
    %2955 = vmatpush.bf16.msra.mxu0 %v2441
    %2956 = vmatpush.bf16.msra.mxu0 %v2440
    %2957 = vmatpush.bf16.msra.mxu0 %v2439
    %2958 = vmatpush.bf16.msra.mxu0 %v2438
    %2959 = vmatpush.bf16.msra.mxu0 %v2437
    %2960 = vmatpush.bf16.msra.mxu0 %v2436
    %2961 = vmatpush.bf16.msra.mxu0 %v2435
    %2962 = vmatmul.bf16.gmra.mxu0 %v1153
    %v2963 = vpop.f32.mrf.mxu0
    %v2964 = vadd.f32 %v2795, %v2963
    %v2965 = vpop.f32.mrf.mxu0
    %v2966 = vadd.f32 %v2797, %v2965
    %2967 = vmatmul.bf16.gmra.mxu0 %v1157
    %v2968 = vpop.f32.mrf.mxu0
    %v2969 = vadd.f32 %v2800, %v2968
    %v2970 = vpop.f32.mrf.mxu0
    %v2971 = vadd.f32 %v2802, %v2970
    %2972 = vmatmul.bf16.gmra.mxu0 %v1161
    %v2973 = vpop.f32.mrf.mxu0
    %v2974 = vadd.f32 %v2805, %v2973
    %v2975 = vpop.f32.mrf.mxu0
    %v2976 = vadd.f32 %v2807, %v2975
    %2977 = vmatmul.bf16.gmra.mxu0 %v1165
    %v2978 = vpop.f32.mrf.mxu0
    %v2979 = vadd.f32 %v2810, %v2978
    %v2980 = vpop.f32.mrf.mxu0
    %v2981 = vadd.f32 %v2812, %v2980
    %2982 = vmatmul.bf16.gmra.mxu0 %v1169
    %v2983 = vpop.f32.mrf.mxu0
    %v2984 = vadd.f32 %v2815, %v2983
    %v2985 = vpop.f32.mrf.mxu0
    %v2986 = vadd.f32 %v2817, %v2985
    %2987 = vmatmul.bf16.gmra.mxu0 %v1173
    %v2988 = vpop.f32.mrf.mxu0
    %v2989 = vadd.f32 %v2820, %v2988
    %v2990 = vpop.f32.mrf.mxu0
    %v2991 = vadd.f32 %v2822, %v2990
    %2992 = vmatmul.bf16.gmra.mxu0 %v1177
    %v2993 = vpop.f32.mrf.mxu0
    %v2994 = vadd.f32 %v2825, %v2993
    %v2995 = vpop.f32.mrf.mxu0
    %v2996 = vadd.f32 %v2827, %v2995
    %2997 = vmatmul.bf16.gmra.mxu0 %v1181
    %v2998 = vpop.f32.mrf.mxu0
    %v2999 = vadd.f32 %v2830, %v2998
    %v3000 = vpop.f32.mrf.mxu0
    %v3001 = vadd.f32 %v2832, %v3000
    %3002 = vmatmul.bf16.gmra.mxu0 %v1185
    %v3003 = vpop.f32.mrf.mxu0
    %v3004 = vadd.f32 %v2835, %v3003
    %v3005 = vpop.f32.mrf.mxu0
    %v3006 = vadd.f32 %v2837, %v3005
    %3007 = vmatmul.bf16.gmra.mxu0 %v1189
    %v3008 = vpop.f32.mrf.mxu0
    %v3009 = vadd.f32 %v2840, %v3008
    %v3010 = vpop.f32.mrf.mxu0
    %v3011 = vadd.f32 %v2842, %v3010
    %3012 = vmatmul.bf16.gmra.mxu0 %v1193
    %v3013 = vpop.f32.mrf.mxu0
    %v3014 = vadd.f32 %v2845, %v3013
    %v3015 = vpop.f32.mrf.mxu0
    %v3016 = vadd.f32 %v2847, %v3015
    %3017 = vmatmul.bf16.gmra.mxu0 %v1197
    %v3018 = vpop.f32.mrf.mxu0
    %v3019 = vadd.f32 %v2850, %v3018
    %v3020 = vpop.f32.mrf.mxu0
    %v3021 = vadd.f32 %v2852, %v3020
    %3022 = vmatmul.bf16.gmra.mxu0 %v1201
    %v3023 = vpop.f32.mrf.mxu0
    %v3024 = vadd.f32 %v2855, %v3023
    %v3025 = vpop.f32.mrf.mxu0
    %v3026 = vadd.f32 %v2857, %v3025
    %3027 = vmatmul.bf16.gmra.mxu0 %v1205
    %v3028 = vpop.f32.mrf.mxu0
    %v3029 = vadd.f32 %v2860, %v3028
    %v3030 = vpop.f32.mrf.mxu0
    %v3031 = vadd.f32 %v2862, %v3030
    %3032 = vmatmul.bf16.gmra.mxu0 %v1209
    %v3033 = vpop.f32.mrf.mxu0
    %v3034 = vadd.f32 %v2865, %v3033
    %v3035 = vpop.f32.mrf.mxu0
    %v3036 = vadd.f32 %v2867, %v3035
    %3037 = vmatmul.bf16.gmra.mxu0 %v1213
    %v3038 = vpop.f32.mrf.mxu0
    %v3039 = vadd.f32 %v2870, %v3038
    %v3040 = vpop.f32.mrf.mxu0
    %v3041 = vadd.f32 %v2872, %v3040
    %3042 = vmatmul.bf16.gmra.mxu0 %v1217
    %v3043 = vpop.f32.mrf.mxu0
    %v3044 = vadd.f32 %v2875, %v3043
    %v3045 = vpop.f32.mrf.mxu0
    %v3046 = vadd.f32 %v2877, %v3045
    %3047 = vmatmul.bf16.gmra.mxu0 %v1221
    %v3048 = vpop.f32.mrf.mxu0
    %v3049 = vadd.f32 %v2880, %v3048
    %v3050 = vpop.f32.mrf.mxu0
    %v3051 = vadd.f32 %v2882, %v3050
    %3052 = vmatmul.bf16.gmra.mxu0 %v1225
    %v3053 = vpop.f32.mrf.mxu0
    %v3054 = vadd.f32 %v2885, %v3053
    %v3055 = vpop.f32.mrf.mxu0
    %v3056 = vadd.f32 %v2887, %v3055
    %3057 = vmatmul.bf16.gmra.mxu0 %v1229
    %v3058 = vpop.f32.mrf.mxu0
    %v3059 = vadd.f32 %v2890, %v3058
    %v3060 = vpop.f32.mrf.mxu0
    %v3061 = vadd.f32 %v2892, %v3060
    %3062 = vmatmul.bf16.gmra.mxu0 %v1233
    %v3063 = vpop.f32.mrf.mxu0
    %v3064 = vadd.f32 %v2895, %v3063
    %v3065 = vpop.f32.mrf.mxu0
    %v3066 = vadd.f32 %v2897, %v3065
    %3067 = vmatmul.bf16.gmra.mxu0 %v1237
    %v3068 = vpop.f32.mrf.mxu0
    %v3069 = vadd.f32 %v2900, %v3068
    %v3070 = vpop.f32.mrf.mxu0
    %v3071 = vadd.f32 %v2902, %v3070
    %3072 = vmatmul.bf16.gmra.mxu0 %v1241
    %v3073 = vpop.f32.mrf.mxu0
    %v3074 = vadd.f32 %v2905, %v3073
    %v3075 = vpop.f32.mrf.mxu0
    %v3076 = vadd.f32 %v2907, %v3075
    %3077 = vmatmul.bf16.gmra.mxu0 %v1245
    %v3078 = vpop.f32.mrf.mxu0
    %v3079 = vadd.f32 %v2910, %v3078
    %v3080 = vpop.f32.mrf.mxu0
    %v3081 = vadd.f32 %v2912, %v3080
    %3082 = vmatmul.bf16.gmra.mxu0 %v1249
    %v3083 = vpop.f32.mrf.mxu0
    %v3084 = vadd.f32 %v2915, %v3083
    %v3085 = vpop.f32.mrf.mxu0
    %v3086 = vadd.f32 %v2917, %v3085
    %3087 = vmatmul.bf16.gmra.mxu0 %v1253
    %v3088 = vpop.f32.mrf.mxu0
    %v3089 = vadd.f32 %v2920, %v3088
    %v3090 = vpop.f32.mrf.mxu0
    %v3091 = vadd.f32 %v2922, %v3090
    %3092 = vmatmul.bf16.gmra.mxu0 %v1257
    %v3093 = vpop.f32.mrf.mxu0
    %v3094 = vadd.f32 %v2925, %v3093
    %v3095 = vpop.f32.mrf.mxu0
    %v3096 = vadd.f32 %v2927, %v3095
    %3097 = vmatmul.bf16.gmra.mxu0 %v1261
    %v3098 = vpop.f32.mrf.mxu0
    %v3099 = vadd.f32 %v2930, %v3098
    %v3100 = vpop.f32.mrf.mxu0
    %v3101 = vadd.f32 %v2932, %v3100
    %3102 = vmatmul.bf16.gmra.mxu0 %v1265
    %v3103 = vpop.f32.mrf.mxu0
    %v3104 = vadd.f32 %v2935, %v3103
    %v3105 = vpop.f32.mrf.mxu0
    %v3106 = vadd.f32 %v2937, %v3105
    %3107 = vmatmul.bf16.gmra.mxu0 %v1269
    %v3108 = vpop.f32.mrf.mxu0
    %v3109 = vadd.f32 %v2940, %v3108
    %v3110 = vpop.f32.mrf.mxu0
    %v3111 = vadd.f32 %v2942, %v3110
    %3112 = vmatmul.bf16.gmra.mxu0 %v1273
    %v3113 = vpop.f32.mrf.mxu0
    %v3114 = vadd.f32 %v2945, %v3113
    %v3115 = vpop.f32.mrf.mxu0
    %v3116 = vadd.f32 %v2947, %v3115
    %3117 = vmatmul.bf16.gmra.mxu0 %v1277
    %v3118 = vpop.f32.mrf.mxu0
    %v3119 = vadd.f32 %v2950, %v3118
    %v3120 = vpop.f32.mrf.mxu0
    %v3121 = vadd.f32 %v2952, %v3120
    %3122 = vdwg.mxu0
    %v3123 = vmax.f32 %v2964, 0.0
    %v3124 = vmax.f32 %v2966, 0.0
    %v3125 = vmax.f32 %v2969, 0.0
    %v3126 = vmax.f32 %v2971, 0.0
    %v3127 = vmax.f32 %v2974, 0.0
    %v3128 = vmax.f32 %v2976, 0.0
    %v3129 = vmax.f32 %v2979, 0.0
    %v3130 = vmax.f32 %v2981, 0.0
    %v3131 = vmax.f32 %v2984, 0.0
    %v3132 = vmax.f32 %v2986, 0.0
    %v3133 = vmax.f32 %v2989, 0.0
    %v3134 = vmax.f32 %v2991, 0.0
    %v3135 = vmax.f32 %v2994, 0.0
    %v3136 = vmax.f32 %v2996, 0.0
    %v3137 = vmax.f32 %v2999, 0.0
    %v3138 = vmax.f32 %v3001, 0.0
    %v3139 = vmax.f32 %v3004, 0.0
    %v3140 = vmax.f32 %v3006, 0.0
    %v3141 = vmax.f32 %v3009, 0.0
    %v3142 = vmax.f32 %v3011, 0.0
    %v3143 = vmax.f32 %v3014, 0.0
    %v3144 = vmax.f32 %v3016, 0.0
    %v3145 = vmax.f32 %v3019, 0.0
    %v3146 = vmax.f32 %v3021, 0.0
    %v3147 = vmax.f32 %v3024, 0.0
    %v3148 = vmax.f32 %v3026, 0.0
    %v3149 = vmax.f32 %v3029, 0.0
    %v3150 = vmax.f32 %v3031, 0.0
    %v3151 = vmax.f32 %v3034, 0.0
    %v3152 = vmax.f32 %v3036, 0.0
    %v3153 = vmax.f32 %v3039, 0.0
    %v3154 = vmax.f32 %v3041, 0.0
    %v3155 = vmax.f32 %v3044, 0.0
    %v3156 = vmax.f32 %v3046, 0.0
    %v3157 = vmax.f32 %v3049, 0.0
    %v3158 = vmax.f32 %v3051, 0.0
    %v3159 = vmax.f32 %v3054, 0.0
    %v3160 = vmax.f32 %v3056, 0.0
    %v3161 = vmax.f32 %v3059, 0.0
    %v3162 = vmax.f32 %v3061, 0.0
    %v3163 = vmax.f32 %v3064, 0.0
    %v3164 = vmax.f32 %v3066, 0.0
    %v3165 = vmax.f32 %v3069, 0.0
    %v3166 = vmax.f32 %v3071, 0.0
    %v3167 = vmax.f32 %v3074, 0.0
    %v3168 = vmax.f32 %v3076, 0.0
    %v3169 = vmax.f32 %v3079, 0.0
    %v3170 = vmax.f32 %v3081, 0.0
    %v3171 = vmax.f32 %v3084, 0.0
    %v3172 = vmax.f32 %v3086, 0.0
    %v3173 = vmax.f32 %v3089, 0.0
    %v3174 = vmax.f32 %v3091, 0.0
    %v3175 = vmax.f32 %v3094, 0.0
    %v3176 = vmax.f32 %v3096, 0.0
    %v3177 = vmax.f32 %v3099, 0.0
    %v3178 = vmax.f32 %v3101, 0.0
    %v3179 = vmax.f32 %v3104, 0.0
    %v3180 = vmax.f32 %v3106, 0.0
    %v3181 = vmax.f32 %v3109, 0.0
    %v3182 = vmax.f32 %v3111, 0.0
    %v3183 = vmax.f32 %v3114, 0.0
    %v3184 = vmax.f32 %v3116, 0.0
    %v3185 = vmax.f32 %v3119, 0.0
    %v3186 = vmax.f32 %v3121, 0.0
    %v3187 = vpack.c.bf16 %v3124, %v3123
    %v3188 = vpack.c.bf16 %v3126, %v3125
    %v3189 = vpack.c.bf16 %v3128, %v3127
    %v3190 = vpack.c.bf16 %v3130, %v3129
    %v3191 = vpack.c.bf16 %v3132, %v3131
    %v3192 = vpack.c.bf16 %v3134, %v3133
    %v3193 = vpack.c.bf16 %v3136, %v3135
    %v3194 = vpack.c.bf16 %v3138, %v3137
    %v3195 = vpack.c.bf16 %v3140, %v3139
    %v3196 = vpack.c.bf16 %v3142, %v3141
    %v3197 = vpack.c.bf16 %v3144, %v3143
    %v3198 = vpack.c.bf16 %v3146, %v3145
    %v3199 = vpack.c.bf16 %v3148, %v3147
    %v3200 = vpack.c.bf16 %v3150, %v3149
    %v3201 = vpack.c.bf16 %v3152, %v3151
    %v3202 = vpack.c.bf16 %v3154, %v3153
    %v3203 = vpack.c.bf16 %v3156, %v3155
    %v3204 = vpack.c.bf16 %v3158, %v3157
    %v3205 = vpack.c.bf16 %v3160, %v3159
    %v3206 = vpack.c.bf16 %v3162, %v3161
    %v3207 = vpack.c.bf16 %v3164, %v3163
    %v3208 = vpack.c.bf16 %v3166, %v3165
    %v3209 = vpack.c.bf16 %v3168, %v3167
    %v3210 = vpack.c.bf16 %v3170, %v3169
    %v3211 = vpack.c.bf16 %v3172, %v3171
    %v3212 = vpack.c.bf16 %v3174, %v3173
    %v3213 = vpack.c.bf16 %v3176, %v3175
    %v3214 = vpack.c.bf16 %v3178, %v3177
    %v3215 = vpack.c.bf16 %v3180, %v3179
    %v3216 = vpack.c.bf16 %v3182, %v3181
    %v3217 = vpack.c.bf16 %v3184, %v3183
    %v3218 = vpack.c.bf16 %v3186, %v3185
    %v3219 = vld [vmem:[#allocation9] sm:$0xf]
    %v3220 = vld [vmem:[#allocation9 + $0x4] sm:$0xf]
    %v3221 = vld [vmem:[#allocation9 + $0x8] sm:$0xf]
    %v3222 = vld [vmem:[#allocation9 + $0xc] sm:$0xf]
    %v3223 = vld [vmem:[#allocation9 + $0x10] sm:$0xf]
    %v3224 = vld [vmem:[#allocation9 + $0x14] sm:$0xf]
    %v3225 = vld [vmem:[#allocation9 + $0x18] sm:$0xf]
    %v3226 = vld [vmem:[#allocation9 + $0x1c] sm:$0xf]
    %v3227 = vld [vmem:[#allocation9 + $0x20] sm:$0xf]
    %v3228 = vld [vmem:[#allocation9 + $0x24] sm:$0xf]
    %v3229 = vld [vmem:[#allocation9 + $0x28] sm:$0xf]
    %v3230 = vld [vmem:[#allocation9 + $0x2c] sm:$0xf]
    %v3231 = vld [vmem:[#allocation9 + $0x30] sm:$0xf]
    %v3232 = vld [vmem:[#allocation9 + $0x34] sm:$0xf]
    %v3233 = vld [vmem:[#allocation9 + $0x38] sm:$0xf]
    %v3234 = vld [vmem:[#allocation9 + $0x3c] sm:$0xf]
    %v3251 = vunpack.c.l.b16 %v3219
    %v3252 = vunpack.c.l.b16 %v3220
    %v3253 = vunpack.c.l.b16 %v3221
    %v3254 = vunpack.c.l.b16 %v3222
    %v3255 = vunpack.c.l.b16 %v3223
    %v3256 = vunpack.c.l.b16 %v3224
    %v3257 = vunpack.c.l.b16 %v3225
    %v3258 = vunpack.c.l.b16 %v3226
    %v3259 = vunpack.c.l.b16 %v3227
    %v3260 = vunpack.c.l.b16 %v3228
    %v3261 = vunpack.c.l.b16 %v3229
    %v3262 = vunpack.c.l.b16 %v3230
    %v3263 = vunpack.c.l.b16 %v3231
    %v3264 = vunpack.c.l.b16 %v3232
    %v3265 = vunpack.c.l.b16 %v3233
    %v3266 = vunpack.c.l.b16 %v3234
    %v3267 = vpack.c.b16 %v3252, %v3251
    %v3268 = vpack.c.b16 %v3254, %v3253
    %v3269 = vpack.c.b16 %v3256, %v3255
    %v3270 = vpack.c.b16 %v3258, %v3257
    %v3271 = vpack.c.b16 %v3260, %v3259
    %v3272 = vpack.c.b16 %v3262, %v3261
    %v3273 = vpack.c.b16 %v3264, %v3263
    %v3274 = vpack.c.b16 %v3266, %v3265
    %3283 = vmatpush.bf16.msra.mxu0 %v3274
    %3284 = vmatpush.bf16.msra.mxu0 %v3273
    %3285 = vmatpush.bf16.msra.mxu0 %v3272
    %3286 = vmatpush.bf16.msra.mxu0 %v3271
    %3287 = vmatpush.bf16.msra.mxu0 %v3270
    %3288 = vmatpush.bf16.msra.mxu0 %v3269
    %3289 = vmatpush.bf16.msra.mxu0 %v3268
    %3290 = vmatpush.bf16.msra.mxu0 %v3267
    %3291 = vmatmul.bf16.gmra.mxu0 %v3187
    %v3292 = vpop.f32.mrf.mxu0
    %v3293 = vadd.f32 0.0, %v3292
    %v3294 = vpop.f32.mrf.mxu0
    %v3295 = vadd.f32 0.0, %v3294
    %3296 = vmatmul.bf16.gmra.mxu0 %v3188
    %v3297 = vpop.f32.mrf.mxu0
    %v3298 = vadd.f32 0.0, %v3297
    %v3299 = vpop.f32.mrf.mxu0
    %v3300 = vadd.f32 0.0, %v3299
    %3301 = vmatmul.bf16.gmra.mxu0 %v3189
    %v3302 = vpop.f32.mrf.mxu0
    %v3303 = vadd.f32 0.0, %v3302
    %v3304 = vpop.f32.mrf.mxu0
    %v3305 = vadd.f32 0.0, %v3304
    %3306 = vmatmul.bf16.gmra.mxu0 %v3190
    %v3307 = vpop.f32.mrf.mxu0
    %v3308 = vadd.f32 0.0, %v3307
    %v3309 = vpop.f32.mrf.mxu0
    %v3310 = vadd.f32 0.0, %v3309
    %3311 = vmatmul.bf16.gmra.mxu0 %v3191
    %v3312 = vpop.f32.mrf.mxu0
    %v3313 = vadd.f32 0.0, %v3312
    %v3314 = vpop.f32.mrf.mxu0
    %v3315 = vadd.f32 0.0, %v3314
    %3316 = vmatmul.bf16.gmra.mxu0 %v3192
    %v3317 = vpop.f32.mrf.mxu0
    %v3318 = vadd.f32 0.0, %v3317
    %v3319 = vpop.f32.mrf.mxu0
    %v3320 = vadd.f32 0.0, %v3319
    %3321 = vmatmul.bf16.gmra.mxu0 %v3193
    %v3322 = vpop.f32.mrf.mxu0
    %v3323 = vadd.f32 0.0, %v3322
    %v3324 = vpop.f32.mrf.mxu0
    %v3325 = vadd.f32 0.0, %v3324
    %3326 = vmatmul.bf16.gmra.mxu0 %v3194
    %v3327 = vpop.f32.mrf.mxu0
    %v3328 = vadd.f32 0.0, %v3327
    %v3329 = vpop.f32.mrf.mxu0
    %v3330 = vadd.f32 0.0, %v3329
    %3331 = vmatmul.bf16.gmra.mxu0 %v3195
    %v3332 = vpop.f32.mrf.mxu0
    %v3333 = vadd.f32 0.0, %v3332
    %v3334 = vpop.f32.mrf.mxu0
    %v3335 = vadd.f32 0.0, %v3334
    %3336 = vmatmul.bf16.gmra.mxu0 %v3196
    %v3337 = vpop.f32.mrf.mxu0
    %v3338 = vadd.f32 0.0, %v3337
    %v3339 = vpop.f32.mrf.mxu0
    %v3340 = vadd.f32 0.0, %v3339
    %3341 = vmatmul.bf16.gmra.mxu0 %v3197
    %v3342 = vpop.f32.mrf.mxu0
    %v3343 = vadd.f32 0.0, %v3342
    %v3344 = vpop.f32.mrf.mxu0
    %v3345 = vadd.f32 0.0, %v3344
    %3346 = vmatmul.bf16.gmra.mxu0 %v3198
    %v3347 = vpop.f32.mrf.mxu0
    %v3348 = vadd.f32 0.0, %v3347
    %v3349 = vpop.f32.mrf.mxu0
    %v3350 = vadd.f32 0.0, %v3349
    %3351 = vmatmul.bf16.gmra.mxu0 %v3199
    %v3352 = vpop.f32.mrf.mxu0
    %v3353 = vadd.f32 0.0, %v3352
    %v3354 = vpop.f32.mrf.mxu0
    %v3355 = vadd.f32 0.0, %v3354
    %3356 = vmatmul.bf16.gmra.mxu0 %v3200
    %v3357 = vpop.f32.mrf.mxu0
    %v3358 = vadd.f32 0.0, %v3357
    %v3359 = vpop.f32.mrf.mxu0
    %v3360 = vadd.f32 0.0, %v3359
    %3361 = vmatmul.bf16.gmra.mxu0 %v3201
    %v3362 = vpop.f32.mrf.mxu0
    %v3363 = vadd.f32 0.0, %v3362
    %v3364 = vpop.f32.mrf.mxu0
    %v3365 = vadd.f32 0.0, %v3364
    %3366 = vmatmul.bf16.gmra.mxu0 %v3202
    %v3367 = vpop.f32.mrf.mxu0
    %v3368 = vadd.f32 0.0, %v3367
    %v3369 = vpop.f32.mrf.mxu0
    %v3370 = vadd.f32 0.0, %v3369
    %3371 = vmatmul.bf16.gmra.mxu0 %v3203
    %v3372 = vpop.f32.mrf.mxu0
    %v3373 = vadd.f32 0.0, %v3372
    %v3374 = vpop.f32.mrf.mxu0
    %v3375 = vadd.f32 0.0, %v3374
    %3376 = vmatmul.bf16.gmra.mxu0 %v3204
    %v3377 = vpop.f32.mrf.mxu0
    %v3378 = vadd.f32 0.0, %v3377
    %v3379 = vpop.f32.mrf.mxu0
    %v3380 = vadd.f32 0.0, %v3379
    %3381 = vmatmul.bf16.gmra.mxu0 %v3205
    %v3382 = vpop.f32.mrf.mxu0
    %v3383 = vadd.f32 0.0, %v3382
    %v3384 = vpop.f32.mrf.mxu0
    %v3385 = vadd.f32 0.0, %v3384
    %3386 = vmatmul.bf16.gmra.mxu0 %v3206
    %v3387 = vpop.f32.mrf.mxu0
    %v3388 = vadd.f32 0.0, %v3387
    %v3389 = vpop.f32.mrf.mxu0
    %v3390 = vadd.f32 0.0, %v3389
    %3391 = vmatmul.bf16.gmra.mxu0 %v3207
    %v3392 = vpop.f32.mrf.mxu0
    %v3393 = vadd.f32 0.0, %v3392
    %v3394 = vpop.f32.mrf.mxu0
    %v3395 = vadd.f32 0.0, %v3394
    %3396 = vmatmul.bf16.gmra.mxu0 %v3208
    %v3397 = vpop.f32.mrf.mxu0
    %v3398 = vadd.f32 0.0, %v3397
    %v3399 = vpop.f32.mrf.mxu0
    %v3400 = vadd.f32 0.0, %v3399
    %3401 = vmatmul.bf16.gmra.mxu0 %v3209
    %v3402 = vpop.f32.mrf.mxu0
    %v3403 = vadd.f32 0.0, %v3402
    %v3404 = vpop.f32.mrf.mxu0
    %v3405 = vadd.f32 0.0, %v3404
    %3406 = vmatmul.bf16.gmra.mxu0 %v3210
    %v3407 = vpop.f32.mrf.mxu0
    %v3408 = vadd.f32 0.0, %v3407
    %v3409 = vpop.f32.mrf.mxu0
    %v3410 = vadd.f32 0.0, %v3409
    %3411 = vmatmul.bf16.gmra.mxu0 %v3211
    %v3412 = vpop.f32.mrf.mxu0
    %v3413 = vadd.f32 0.0, %v3412
    %v3414 = vpop.f32.mrf.mxu0
    %v3415 = vadd.f32 0.0, %v3414
    %3416 = vmatmul.bf16.gmra.mxu0 %v3212
    %v3417 = vpop.f32.mrf.mxu0
    %v3418 = vadd.f32 0.0, %v3417
    %v3419 = vpop.f32.mrf.mxu0
    %v3420 = vadd.f32 0.0, %v3419
    %3421 = vmatmul.bf16.gmra.mxu0 %v3213
    %v3422 = vpop.f32.mrf.mxu0
    %v3423 = vadd.f32 0.0, %v3422
    %v3424 = vpop.f32.mrf.mxu0
    %v3425 = vadd.f32 0.0, %v3424
    %3426 = vmatmul.bf16.gmra.mxu0 %v3214
    %v3427 = vpop.f32.mrf.mxu0
    %v3428 = vadd.f32 0.0, %v3427
    %v3429 = vpop.f32.mrf.mxu0
    %v3430 = vadd.f32 0.0, %v3429
    %3431 = vmatmul.bf16.gmra.mxu0 %v3215
    %v3432 = vpop.f32.mrf.mxu0
    %v3433 = vadd.f32 0.0, %v3432
    %v3434 = vpop.f32.mrf.mxu0
    %v3435 = vadd.f32 0.0, %v3434
    %3436 = vmatmul.bf16.gmra.mxu0 %v3216
    %v3437 = vpop.f32.mrf.mxu0
    %v3438 = vadd.f32 0.0, %v3437
    %v3439 = vpop.f32.mrf.mxu0
    %v3440 = vadd.f32 0.0, %v3439
    %3441 = vmatmul.bf16.gmra.mxu0 %v3217
    %v3442 = vpop.f32.mrf.mxu0
    %v3443 = vadd.f32 0.0, %v3442
    %v3444 = vpop.f32.mrf.mxu0
    %v3445 = vadd.f32 0.0, %v3444
    %3446 = vmatmul.bf16.gmra.mxu0 %v3218
    %v3447 = vpop.f32.mrf.mxu0
    %v3448 = vadd.f32 0.0, %v3447
    %v3449 = vpop.f32.mrf.mxu0
    %v3450 = vadd.f32 0.0, %v3449
    %3451 = vdwg.mxu0
    %v3452 = vpack.c.bf16 %v3295, %v3293
    %v3453 = vpack.c.bf16 %v3300, %v3298
    %v3454 = vpack.c.bf16 %v3305, %v3303
    %v3455 = vpack.c.bf16 %v3310, %v3308
    %v3456 = vpack.c.bf16 %v3315, %v3313
    %v3457 = vpack.c.bf16 %v3320, %v3318
    %v3458 = vpack.c.bf16 %v3325, %v3323
    %v3459 = vpack.c.bf16 %v3330, %v3328
    %v3460 = vpack.c.bf16 %v3335, %v3333
    %v3461 = vpack.c.bf16 %v3340, %v3338
    %v3462 = vpack.c.bf16 %v3345, %v3343
    %v3463 = vpack.c.bf16 %v3350, %v3348
    %v3464 = vpack.c.bf16 %v3355, %v3353
    %v3465 = vpack.c.bf16 %v3360, %v3358
    %v3466 = vpack.c.bf16 %v3365, %v3363
    %v3467 = vpack.c.bf16 %v3370, %v3368
    %v3468 = vpack.c.bf16 %v3375, %v3373
    %v3469 = vpack.c.bf16 %v3380, %v3378
    %v3470 = vpack.c.bf16 %v3385, %v3383
    %v3471 = vpack.c.bf16 %v3390, %v3388
    %v3472 = vpack.c.bf16 %v3395, %v3393
    %v3473 = vpack.c.bf16 %v3400, %v3398
    %v3474 = vpack.c.bf16 %v3405, %v3403
    %v3475 = vpack.c.bf16 %v3410, %v3408
    %v3476 = vpack.c.bf16 %v3415, %v3413
    %v3477 = vpack.c.bf16 %v3420, %v3418
    %v3478 = vpack.c.bf16 %v3425, %v3423
    %v3479 = vpack.c.bf16 %v3430, %v3428
    %v3480 = vpack.c.bf16 %v3435, %v3433
    %v3481 = vpack.c.bf16 %v3440, %v3438
    %v3482 = vpack.c.bf16 %v3445, %v3443
    %v3483 = vpack.c.bf16 %v3450, %v3448
    %v3484 = vld [vmem:[%s7] sm:$0x1]
    %v3486 = vperm.slane %v3484, 0
    %3488 = vmatpush.bf16.msra.mxu0 %v3459
    %3489 = vmatpush.bf16.msra.mxu0 %v3458
    %3490 = vmatpush.bf16.msra.mxu0 %v3457
    %3491 = vmatpush.bf16.msra.mxu0 %v3456
    %3492 = vmatpush.bf16.msra.mxu0 %v3455
    %3493 = vmatpush.bf16.msra.mxu0 %v3454
    %3494 = vmatpush.bf16.msra.mxu0 %v3453
    %3495 = vmatpush.bf16.msra.mxu0 %v3452
    %3496 = vmatmul.bf16.gmra.mxu0 %v1150
    %v3497 = vpop.f32.mrf.mxu0
    %v3498 = vadd.f32 %v3486, %v3497
    %v3499 = vpop.f32.mrf.mxu0
    %v3500 = vadd.f32 %v3486, %v3499
    %3501 = vmatmul.bf16.gmra.mxu0 %v1154
    %v3502 = vpop.f32.mrf.mxu0
    %v3503 = vadd.f32 %v3486, %v3502
    %v3504 = vpop.f32.mrf.mxu0
    %v3505 = vadd.f32 %v3486, %v3504
    %3506 = vmatmul.bf16.gmra.mxu0 %v1158
    %v3507 = vpop.f32.mrf.mxu0
    %v3508 = vadd.f32 %v3486, %v3507
    %v3509 = vpop.f32.mrf.mxu0
    %v3510 = vadd.f32 %v3486, %v3509
    %3511 = vmatmul.bf16.gmra.mxu0 %v1162
    %v3512 = vpop.f32.mrf.mxu0
    %v3513 = vadd.f32 %v3486, %v3512
    %v3514 = vpop.f32.mrf.mxu0
    %v3515 = vadd.f32 %v3486, %v3514
    %3516 = vmatmul.bf16.gmra.mxu0 %v1166
    %v3517 = vpop.f32.mrf.mxu0
    %v3518 = vadd.f32 %v3486, %v3517
    %v3519 = vpop.f32.mrf.mxu0
    %v3520 = vadd.f32 %v3486, %v3519
    %3521 = vmatmul.bf16.gmra.mxu0 %v1170
    %v3522 = vpop.f32.mrf.mxu0
    %v3523 = vadd.f32 %v3486, %v3522
    %v3524 = vpop.f32.mrf.mxu0
    %v3525 = vadd.f32 %v3486, %v3524
    %3526 = vmatmul.bf16.gmra.mxu0 %v1174
    %v3527 = vpop.f32.mrf.mxu0
    %v3528 = vadd.f32 %v3486, %v3527
    %v3529 = vpop.f32.mrf.mxu0
    %v3530 = vadd.f32 %v3486, %v3529
    %3531 = vmatmul.bf16.gmra.mxu0 %v1178
    %v3532 = vpop.f32.mrf.mxu0
    %v3533 = vadd.f32 %v3486, %v3532
    %v3534 = vpop.f32.mrf.mxu0
    %v3535 = vadd.f32 %v3486, %v3534
    %3536 = vmatmul.bf16.gmra.mxu0 %v1182
    %v3537 = vpop.f32.mrf.mxu0
    %v3538 = vadd.f32 %v3486, %v3537
    %v3539 = vpop.f32.mrf.mxu0
    %v3540 = vadd.f32 %v3486, %v3539
    %3541 = vmatmul.bf16.gmra.mxu0 %v1186
    %v3542 = vpop.f32.mrf.mxu0
    %v3543 = vadd.f32 %v3486, %v3542
    %v3544 = vpop.f32.mrf.mxu0
    %v3545 = vadd.f32 %v3486, %v3544
    %3546 = vmatmul.bf16.gmra.mxu0 %v1190
    %v3547 = vpop.f32.mrf.mxu0
    %v3548 = vadd.f32 %v3486, %v3547
    %v3549 = vpop.f32.mrf.mxu0
    %v3550 = vadd.f32 %v3486, %v3549
    %3551 = vmatmul.bf16.gmra.mxu0 %v1194
    %v3552 = vpop.f32.mrf.mxu0
    %v3553 = vadd.f32 %v3486, %v3552
    %v3554 = vpop.f32.mrf.mxu0
    %v3555 = vadd.f32 %v3486, %v3554
    %3556 = vmatmul.bf16.gmra.mxu0 %v1198
    %v3557 = vpop.f32.mrf.mxu0
    %v3558 = vadd.f32 %v3486, %v3557
    %v3559 = vpop.f32.mrf.mxu0
    %v3560 = vadd.f32 %v3486, %v3559
    %3561 = vmatmul.bf16.gmra.mxu0 %v1202
    %v3562 = vpop.f32.mrf.mxu0
    %v3563 = vadd.f32 %v3486, %v3562
    %v3564 = vpop.f32.mrf.mxu0
    %v3565 = vadd.f32 %v3486, %v3564
    %3566 = vmatmul.bf16.gmra.mxu0 %v1206
    %v3567 = vpop.f32.mrf.mxu0
    %v3568 = vadd.f32 %v3486, %v3567
    %v3569 = vpop.f32.mrf.mxu0
    %v3570 = vadd.f32 %v3486, %v3569
    %3571 = vmatmul.bf16.gmra.mxu0 %v1210
    %v3572 = vpop.f32.mrf.mxu0
    %v3573 = vadd.f32 %v3486, %v3572
    %v3574 = vpop.f32.mrf.mxu0
    %v3575 = vadd.f32 %v3486, %v3574
    %3576 = vmatmul.bf16.gmra.mxu0 %v1214
    %v3577 = vpop.f32.mrf.mxu0
    %v3578 = vadd.f32 %v3486, %v3577
    %v3579 = vpop.f32.mrf.mxu0
    %v3580 = vadd.f32 %v3486, %v3579
    %3581 = vmatmul.bf16.gmra.mxu0 %v1218
    %v3582 = vpop.f32.mrf.mxu0
    %v3583 = vadd.f32 %v3486, %v3582
    %v3584 = vpop.f32.mrf.mxu0
    %v3585 = vadd.f32 %v3486, %v3584
    %3586 = vmatmul.bf16.gmra.mxu0 %v1222
    %v3587 = vpop.f32.mrf.mxu0
    %v3588 = vadd.f32 %v3486, %v3587
    %v3589 = vpop.f32.mrf.mxu0
    %v3590 = vadd.f32 %v3486, %v3589
    %3591 = vmatmul.bf16.gmra.mxu0 %v1226
    %v3592 = vpop.f32.mrf.mxu0
    %v3593 = vadd.f32 %v3486, %v3592
    %v3594 = vpop.f32.mrf.mxu0
    %v3595 = vadd.f32 %v3486, %v3594
    %3596 = vmatmul.bf16.gmra.mxu0 %v1230
    %v3597 = vpop.f32.mrf.mxu0
    %v3598 = vadd.f32 %v3486, %v3597
    %v3599 = vpop.f32.mrf.mxu0
    %v3600 = vadd.f32 %v3486, %v3599
    %3601 = vmatmul.bf16.gmra.mxu0 %v1234
    %v3602 = vpop.f32.mrf.mxu0
    %v3603 = vadd.f32 %v3486, %v3602
    %v3604 = vpop.f32.mrf.mxu0
    %v3605 = vadd.f32 %v3486, %v3604
    %3606 = vmatmul.bf16.gmra.mxu0 %v1238
    %v3607 = vpop.f32.mrf.mxu0
    %v3608 = vadd.f32 %v3486, %v3607
    %v3609 = vpop.f32.mrf.mxu0
    %v3610 = vadd.f32 %v3486, %v3609
    %3611 = vmatmul.bf16.gmra.mxu0 %v1242
    %v3612 = vpop.f32.mrf.mxu0
    %v3613 = vadd.f32 %v3486, %v3612
    %v3614 = vpop.f32.mrf.mxu0
    %v3615 = vadd.f32 %v3486, %v3614
    %3616 = vmatmul.bf16.gmra.mxu0 %v1246
    %v3617 = vpop.f32.mrf.mxu0
    %v3618 = vadd.f32 %v3486, %v3617
    %v3619 = vpop.f32.mrf.mxu0
    %v3620 = vadd.f32 %v3486, %v3619
    %3621 = vmatmul.bf16.gmra.mxu0 %v1250
    %v3622 = vpop.f32.mrf.mxu0
    %v3623 = vadd.f32 %v3486, %v3622
    %v3624 = vpop.f32.mrf.mxu0
    %v3625 = vadd.f32 %v3486, %v3624
    %3626 = vmatmul.bf16.gmra.mxu0 %v1254
    %v3627 = vpop.f32.mrf.mxu0
    %v3628 = vadd.f32 %v3486, %v3627
    %v3629 = vpop.f32.mrf.mxu0
    %v3630 = vadd.f32 %v3486, %v3629
    %3631 = vmatmul.bf16.gmra.mxu0 %v1258
    %v3632 = vpop.f32.mrf.mxu0
    %v3633 = vadd.f32 %v3486, %v3632
    %v3634 = vpop.f32.mrf.mxu0
    %v3635 = vadd.f32 %v3486, %v3634
    %3636 = vmatmul.bf16.gmra.mxu0 %v1262
    %v3637 = vpop.f32.mrf.mxu0
    %v3638 = vadd.f32 %v3486, %v3637
    %v3639 = vpop.f32.mrf.mxu0
    %v3640 = vadd.f32 %v3486, %v3639
    %3641 = vmatmul.bf16.gmra.mxu0 %v1266
    %v3642 = vpop.f32.mrf.mxu0
    %v3643 = vadd.f32 %v3486, %v3642
    %v3644 = vpop.f32.mrf.mxu0
    %v3645 = vadd.f32 %v3486, %v3644
    %3646 = vmatmul.bf16.gmra.mxu0 %v1270
    %v3647 = vpop.f32.mrf.mxu0
    %v3648 = vadd.f32 %v3486, %v3647
    %v3649 = vpop.f32.mrf.mxu0
    %v3650 = vadd.f32 %v3486, %v3649
    %3651 = vmatmul.bf16.gmra.mxu0 %v1274
    %v3652 = vpop.f32.mrf.mxu0
    %v3653 = vadd.f32 %v3486, %v3652
    %v3654 = vpop.f32.mrf.mxu0
    %v3655 = vadd.f32 %v3486, %v3654
    %3656 = vdwg.mxu0
    %3657 = vmatpush.bf16.msra.mxu0 %v3467
    %3658 = vmatpush.bf16.msra.mxu0 %v3466
    %3659 = vmatpush.bf16.msra.mxu0 %v3465
    %3660 = vmatpush.bf16.msra.mxu0 %v3464
    %3661 = vmatpush.bf16.msra.mxu0 %v3463
    %3662 = vmatpush.bf16.msra.mxu0 %v3462
    %3663 = vmatpush.bf16.msra.mxu0 %v3461
    %3664 = vmatpush.bf16.msra.mxu0 %v3460
    %3665 = vmatmul.bf16.gmra.mxu0 %v1151
    %v3666 = vpop.f32.mrf.mxu0
    %v3667 = vadd.f32 %v3498, %v3666
    %v3668 = vpop.f32.mrf.mxu0
    %v3669 = vadd.f32 %v3500, %v3668
    %3670 = vmatmul.bf16.gmra.mxu0 %v1155
    %v3671 = vpop.f32.mrf.mxu0
    %v3672 = vadd.f32 %v3503, %v3671
    %v3673 = vpop.f32.mrf.mxu0
    %v3674 = vadd.f32 %v3505, %v3673
    %3675 = vmatmul.bf16.gmra.mxu0 %v1159
    %v3676 = vpop.f32.mrf.mxu0
    %v3677 = vadd.f32 %v3508, %v3676
    %v3678 = vpop.f32.mrf.mxu0
    %v3679 = vadd.f32 %v3510, %v3678
    %3680 = vmatmul.bf16.gmra.mxu0 %v1163
    %v3681 = vpop.f32.mrf.mxu0
    %v3682 = vadd.f32 %v3513, %v3681
    %v3683 = vpop.f32.mrf.mxu0
    %v3684 = vadd.f32 %v3515, %v3683
    %3685 = vmatmul.bf16.gmra.mxu0 %v1167
    %v3686 = vpop.f32.mrf.mxu0
    %v3687 = vadd.f32 %v3518, %v3686
    %v3688 = vpop.f32.mrf.mxu0
    %v3689 = vadd.f32 %v3520, %v3688
    %3690 = vmatmul.bf16.gmra.mxu0 %v1171
    %v3691 = vpop.f32.mrf.mxu0
    %v3692 = vadd.f32 %v3523, %v3691
    %v3693 = vpop.f32.mrf.mxu0
    %v3694 = vadd.f32 %v3525, %v3693
    %3695 = vmatmul.bf16.gmra.mxu0 %v1175
    %v3696 = vpop.f32.mrf.mxu0
    %v3697 = vadd.f32 %v3528, %v3696
    %v3698 = vpop.f32.mrf.mxu0
    %v3699 = vadd.f32 %v3530, %v3698
    %3700 = vmatmul.bf16.gmra.mxu0 %v1179
    %v3701 = vpop.f32.mrf.mxu0
    %v3702 = vadd.f32 %v3533, %v3701
    %v3703 = vpop.f32.mrf.mxu0
    %v3704 = vadd.f32 %v3535, %v3703
    %3705 = vmatmul.bf16.gmra.mxu0 %v1183
    %v3706 = vpop.f32.mrf.mxu0
    %v3707 = vadd.f32 %v3538, %v3706
    %v3708 = vpop.f32.mrf.mxu0
    %v3709 = vadd.f32 %v3540, %v3708
    %3710 = vmatmul.bf16.gmra.mxu0 %v1187
    %v3711 = vpop.f32.mrf.mxu0
    %v3712 = vadd.f32 %v3543, %v3711
    %v3713 = vpop.f32.mrf.mxu0
    %v3714 = vadd.f32 %v3545, %v3713
    %3715 = vmatmul.bf16.gmra.mxu0 %v1191
    %v3716 = vpop.f32.mrf.mxu0
    %v3717 = vadd.f32 %v3548, %v3716
    %v3718 = vpop.f32.mrf.mxu0
    %v3719 = vadd.f32 %v3550, %v3718
    %3720 = vmatmul.bf16.gmra.mxu0 %v1195
    %v3721 = vpop.f32.mrf.mxu0
    %v3722 = vadd.f32 %v3553, %v3721
    %v3723 = vpop.f32.mrf.mxu0
    %v3724 = vadd.f32 %v3555, %v3723
    %3725 = vmatmul.bf16.gmra.mxu0 %v1199
    %v3726 = vpop.f32.mrf.mxu0
    %v3727 = vadd.f32 %v3558, %v3726
    %v3728 = vpop.f32.mrf.mxu0
    %v3729 = vadd.f32 %v3560, %v3728
    %3730 = vmatmul.bf16.gmra.mxu0 %v1203
    %v3731 = vpop.f32.mrf.mxu0
    %v3732 = vadd.f32 %v3563, %v3731
    %v3733 = vpop.f32.mrf.mxu0
    %v3734 = vadd.f32 %v3565, %v3733
    %3735 = vmatmul.bf16.gmra.mxu0 %v1207
    %v3736 = vpop.f32.mrf.mxu0
    %v3737 = vadd.f32 %v3568, %v3736
    %v3738 = vpop.f32.mrf.mxu0
    %v3739 = vadd.f32 %v3570, %v3738
    %3740 = vmatmul.bf16.gmra.mxu0 %v1211
    %v3741 = vpop.f32.mrf.mxu0
    %v3742 = vadd.f32 %v3573, %v3741
    %v3743 = vpop.f32.mrf.mxu0
    %v3744 = vadd.f32 %v3575, %v3743
    %3745 = vmatmul.bf16.gmra.mxu0 %v1215
    %v3746 = vpop.f32.mrf.mxu0
    %v3747 = vadd.f32 %v3578, %v3746
    %v3748 = vpop.f32.mrf.mxu0
    %v3749 = vadd.f32 %v3580, %v3748
    %3750 = vmatmul.bf16.gmra.mxu0 %v1219
    %v3751 = vpop.f32.mrf.mxu0
    %v3752 = vadd.f32 %v3583, %v3751
    %v3753 = vpop.f32.mrf.mxu0
    %v3754 = vadd.f32 %v3585, %v3753
    %3755 = vmatmul.bf16.gmra.mxu0 %v1223
    %v3756 = vpop.f32.mrf.mxu0
    %v3757 = vadd.f32 %v3588, %v3756
    %v3758 = vpop.f32.mrf.mxu0
    %v3759 = vadd.f32 %v3590, %v3758
    %3760 = vmatmul.bf16.gmra.mxu0 %v1227
    %v3761 = vpop.f32.mrf.mxu0
    %v3762 = vadd.f32 %v3593, %v3761
    %v3763 = vpop.f32.mrf.mxu0
    %v3764 = vadd.f32 %v3595, %v3763
    %3765 = vmatmul.bf16.gmra.mxu0 %v1231
    %v3766 = vpop.f32.mrf.mxu0
    %v3767 = vadd.f32 %v3598, %v3766
    %v3768 = vpop.f32.mrf.mxu0
    %v3769 = vadd.f32 %v3600, %v3768
    %3770 = vmatmul.bf16.gmra.mxu0 %v1235
    %v3771 = vpop.f32.mrf.mxu0
    %v3772 = vadd.f32 %v3603, %v3771
    %v3773 = vpop.f32.mrf.mxu0
    %v3774 = vadd.f32 %v3605, %v3773
    %3775 = vmatmul.bf16.gmra.mxu0 %v1239
    %v3776 = vpop.f32.mrf.mxu0
    %v3777 = vadd.f32 %v3608, %v3776
    %v3778 = vpop.f32.mrf.mxu0
    %v3779 = vadd.f32 %v3610, %v3778
    %3780 = vmatmul.bf16.gmra.mxu0 %v1243
    %v3781 = vpop.f32.mrf.mxu0
    %v3782 = vadd.f32 %v3613, %v3781
    %v3783 = vpop.f32.mrf.mxu0
    %v3784 = vadd.f32 %v3615, %v3783
    %3785 = vmatmul.bf16.gmra.mxu0 %v1247
    %v3786 = vpop.f32.mrf.mxu0
    %v3787 = vadd.f32 %v3618, %v3786
    %v3788 = vpop.f32.mrf.mxu0
    %v3789 = vadd.f32 %v3620, %v3788
    %3790 = vmatmul.bf16.gmra.mxu0 %v1251
    %v3791 = vpop.f32.mrf.mxu0
    %v3792 = vadd.f32 %v3623, %v3791
    %v3793 = vpop.f32.mrf.mxu0
    %v3794 = vadd.f32 %v3625, %v3793
    %3795 = vmatmul.bf16.gmra.mxu0 %v1255
    %v3796 = vpop.f32.mrf.mxu0
    %v3797 = vadd.f32 %v3628, %v3796
    %v3798 = vpop.f32.mrf.mxu0
    %v3799 = vadd.f32 %v3630, %v3798
    %3800 = vmatmul.bf16.gmra.mxu0 %v1259
    %v3801 = vpop.f32.mrf.mxu0
    %v3802 = vadd.f32 %v3633, %v3801
    %v3803 = vpop.f32.mrf.mxu0
    %v3804 = vadd.f32 %v3635, %v3803
    %3805 = vmatmul.bf16.gmra.mxu0 %v1263
    %v3806 = vpop.f32.mrf.mxu0
    %v3807 = vadd.f32 %v3638, %v3806
    %v3808 = vpop.f32.mrf.mxu0
    %v3809 = vadd.f32 %v3640, %v3808
    %3810 = vmatmul.bf16.gmra.mxu0 %v1267
    %v3811 = vpop.f32.mrf.mxu0
    %v3812 = vadd.f32 %v3643, %v3811
    %v3813 = vpop.f32.mrf.mxu0
    %v3814 = vadd.f32 %v3645, %v3813
    %3815 = vmatmul.bf16.gmra.mxu0 %v1271
    %v3816 = vpop.f32.mrf.mxu0
    %v3817 = vadd.f32 %v3648, %v3816
    %v3818 = vpop.f32.mrf.mxu0
    %v3819 = vadd.f32 %v3650, %v3818
    %3820 = vmatmul.bf16.gmra.mxu0 %v1275
    %v3821 = vpop.f32.mrf.mxu0
    %v3822 = vadd.f32 %v3653, %v3821
    %v3823 = vpop.f32.mrf.mxu0
    %v3824 = vadd.f32 %v3655, %v3823
    %3825 = vdwg.mxu0
    %3826 = vmatpush.bf16.msra.mxu0 %v3475
    %3827 = vmatpush.bf16.msra.mxu0 %v3474
    %3828 = vmatpush.bf16.msra.mxu0 %v3473
    %3829 = vmatpush.bf16.msra.mxu0 %v3472
    %3830 = vmatpush.bf16.msra.mxu0 %v3471
    %3831 = vmatpush.bf16.msra.mxu0 %v3470
    %3832 = vmatpush.bf16.msra.mxu0 %v3469
    %3833 = vmatpush.bf16.msra.mxu0 %v3468
    %3834 = vmatmul.bf16.gmra.mxu0 %v1152
    %v3835 = vpop.f32.mrf.mxu0
    %v3836 = vadd.f32 %v3667, %v3835
    %v3837 = vpop.f32.mrf.mxu0
    %v3838 = vadd.f32 %v3669, %v3837
    %3839 = vmatmul.bf16.gmra.mxu0 %v1156
    %v3840 = vpop.f32.mrf.mxu0
    %v3841 = vadd.f32 %v3672, %v3840
    %v3842 = vpop.f32.mrf.mxu0
    %v3843 = vadd.f32 %v3674, %v3842
    %3844 = vmatmul.bf16.gmra.mxu0 %v1160
    %v3845 = vpop.f32.mrf.mxu0
    %v3846 = vadd.f32 %v3677, %v3845
    %v3847 = vpop.f32.mrf.mxu0
    %v3848 = vadd.f32 %v3679, %v3847
    %3849 = vmatmul.bf16.gmra.mxu0 %v1164
    %v3850 = vpop.f32.mrf.mxu0
    %v3851 = vadd.f32 %v3682, %v3850
    %v3852 = vpop.f32.mrf.mxu0
    %v3853 = vadd.f32 %v3684, %v3852
    %3854 = vmatmul.bf16.gmra.mxu0 %v1168
    %v3855 = vpop.f32.mrf.mxu0
    %v3856 = vadd.f32 %v3687, %v3855
    %v3857 = vpop.f32.mrf.mxu0
    %v3858 = vadd.f32 %v3689, %v3857
    %3859 = vmatmul.bf16.gmra.mxu0 %v1172
    %v3860 = vpop.f32.mrf.mxu0
    %v3861 = vadd.f32 %v3692, %v3860
    %v3862 = vpop.f32.mrf.mxu0
    %v3863 = vadd.f32 %v3694, %v3862
    %3864 = vmatmul.bf16.gmra.mxu0 %v1176
    %v3865 = vpop.f32.mrf.mxu0
    %v3866 = vadd.f32 %v3697, %v3865
    %v3867 = vpop.f32.mrf.mxu0
    %v3868 = vadd.f32 %v3699, %v3867
    %3869 = vmatmul.bf16.gmra.mxu0 %v1180
    %v3870 = vpop.f32.mrf.mxu0
    %v3871 = vadd.f32 %v3702, %v3870
    %v3872 = vpop.f32.mrf.mxu0
    %v3873 = vadd.f32 %v3704, %v3872
    %3874 = vmatmul.bf16.gmra.mxu0 %v1184
    %v3875 = vpop.f32.mrf.mxu0
    %v3876 = vadd.f32 %v3707, %v3875
    %v3877 = vpop.f32.mrf.mxu0
    %v3878 = vadd.f32 %v3709, %v3877
    %3879 = vmatmul.bf16.gmra.mxu0 %v1188
    %v3880 = vpop.f32.mrf.mxu0
    %v3881 = vadd.f32 %v3712, %v3880
    %v3882 = vpop.f32.mrf.mxu0
    %v3883 = vadd.f32 %v3714, %v3882
    %3884 = vmatmul.bf16.gmra.mxu0 %v1192
    %v3885 = vpop.f32.mrf.mxu0
    %v3886 = vadd.f32 %v3717, %v3885
    %v3887 = vpop.f32.mrf.mxu0
    %v3888 = vadd.f32 %v3719, %v3887
    %3889 = vmatmul.bf16.gmra.mxu0 %v1196
    %v3890 = vpop.f32.mrf.mxu0
    %v3891 = vadd.f32 %v3722, %v3890
    %v3892 = vpop.f32.mrf.mxu0
    %v3893 = vadd.f32 %v3724, %v3892
    %3894 = vmatmul.bf16.gmra.mxu0 %v1200
    %v3895 = vpop.f32.mrf.mxu0
    %v3896 = vadd.f32 %v3727, %v3895
    %v3897 = vpop.f32.mrf.mxu0
    %v3898 = vadd.f32 %v3729, %v3897
    %3899 = vmatmul.bf16.gmra.mxu0 %v1204
    %v3900 = vpop.f32.mrf.mxu0
    %v3901 = vadd.f32 %v3732, %v3900
    %v3902 = vpop.f32.mrf.mxu0
    %v3903 = vadd.f32 %v3734, %v3902
    %3904 = vmatmul.bf16.gmra.mxu0 %v1208
    %v3905 = vpop.f32.mrf.mxu0
    %v3906 = vadd.f32 %v3737, %v3905
    %v3907 = vpop.f32.mrf.mxu0
    %v3908 = vadd.f32 %v3739, %v3907
    %3909 = vmatmul.bf16.gmra.mxu0 %v1212
    %v3910 = vpop.f32.mrf.mxu0
    %v3911 = vadd.f32 %v3742, %v3910
    %v3912 = vpop.f32.mrf.mxu0
    %v3913 = vadd.f32 %v3744, %v3912
    %3914 = vmatmul.bf16.gmra.mxu0 %v1216
    %v3915 = vpop.f32.mrf.mxu0
    %v3916 = vadd.f32 %v3747, %v3915
    %v3917 = vpop.f32.mrf.mxu0
    %v3918 = vadd.f32 %v3749, %v3917
    %3919 = vmatmul.bf16.gmra.mxu0 %v1220
    %v3920 = vpop.f32.mrf.mxu0
    %v3921 = vadd.f32 %v3752, %v3920
    %v3922 = vpop.f32.mrf.mxu0
    %v3923 = vadd.f32 %v3754, %v3922
    %3924 = vmatmul.bf16.gmra.mxu0 %v1224
    %v3925 = vpop.f32.mrf.mxu0
    %v3926 = vadd.f32 %v3757, %v3925
    %v3927 = vpop.f32.mrf.mxu0
    %v3928 = vadd.f32 %v3759, %v3927
    %3929 = vmatmul.bf16.gmra.mxu0 %v1228
    %v3930 = vpop.f32.mrf.mxu0
    %v3931 = vadd.f32 %v3762, %v3930
    %v3932 = vpop.f32.mrf.mxu0
    %v3933 = vadd.f32 %v3764, %v3932
    %3934 = vmatmul.bf16.gmra.mxu0 %v1232
    %v3935 = vpop.f32.mrf.mxu0
    %v3936 = vadd.f32 %v3767, %v3935
    %v3937 = vpop.f32.mrf.mxu0
    %v3938 = vadd.f32 %v3769, %v3937
    %3939 = vmatmul.bf16.gmra.mxu0 %v1236
    %v3940 = vpop.f32.mrf.mxu0
    %v3941 = vadd.f32 %v3772, %v3940
    %v3942 = vpop.f32.mrf.mxu0
    %v3943 = vadd.f32 %v3774, %v3942
    %3944 = vmatmul.bf16.gmra.mxu0 %v1240
    %v3945 = vpop.f32.mrf.mxu0
    %v3946 = vadd.f32 %v3777, %v3945
    %v3947 = vpop.f32.mrf.mxu0
    %v3948 = vadd.f32 %v3779, %v3947
    %3949 = vmatmul.bf16.gmra.mxu0 %v1244
    %v3950 = vpop.f32.mrf.mxu0
    %v3951 = vadd.f32 %v3782, %v3950
    %v3952 = vpop.f32.mrf.mxu0
    %v3953 = vadd.f32 %v3784, %v3952
    %3954 = vmatmul.bf16.gmra.mxu0 %v1248
    %v3955 = vpop.f32.mrf.mxu0
    %v3956 = vadd.f32 %v3787, %v3955
    %v3957 = vpop.f32.mrf.mxu0
    %v3958 = vadd.f32 %v3789, %v3957
    %3959 = vmatmul.bf16.gmra.mxu0 %v1252
    %v3960 = vpop.f32.mrf.mxu0
    %v3961 = vadd.f32 %v3792, %v3960
    %v3962 = vpop.f32.mrf.mxu0
    %v3963 = vadd.f32 %v3794, %v3962
    %3964 = vmatmul.bf16.gmra.mxu0 %v1256
    %v3965 = vpop.f32.mrf.mxu0
    %v3966 = vadd.f32 %v3797, %v3965
    %v3967 = vpop.f32.mrf.mxu0
    %v3968 = vadd.f32 %v3799, %v3967
    %3969 = vmatmul.bf16.gmra.mxu0 %v1260
    %v3970 = vpop.f32.mrf.mxu0
    %v3971 = vadd.f32 %v3802, %v3970
    %v3972 = vpop.f32.mrf.mxu0
    %v3973 = vadd.f32 %v3804, %v3972
    %3974 = vmatmul.bf16.gmra.mxu0 %v1264
    %v3975 = vpop.f32.mrf.mxu0
    %v3976 = vadd.f32 %v3807, %v3975
    %v3977 = vpop.f32.mrf.mxu0
    %v3978 = vadd.f32 %v3809, %v3977
    %3979 = vmatmul.bf16.gmra.mxu0 %v1268
    %v3980 = vpop.f32.mrf.mxu0
    %v3981 = vadd.f32 %v3812, %v3980
    %v3982 = vpop.f32.mrf.mxu0
    %v3983 = vadd.f32 %v3814, %v3982
    %3984 = vmatmul.bf16.gmra.mxu0 %v1272
    %v3985 = vpop.f32.mrf.mxu0
    %v3986 = vadd.f32 %v3817, %v3985
    %v3987 = vpop.f32.mrf.mxu0
    %v3988 = vadd.f32 %v3819, %v3987
    %3989 = vmatmul.bf16.gmra.mxu0 %v1276
    %v3990 = vpop.f32.mrf.mxu0
    %v3991 = vadd.f32 %v3822, %v3990
    %v3992 = vpop.f32.mrf.mxu0
    %v3993 = vadd.f32 %v3824, %v3992
    %3994 = vdwg.mxu0
    %3995 = vmatpush.bf16.msra.mxu0 %v3483
    %3996 = vmatpush.bf16.msra.mxu0 %v3482
    %3997 = vmatpush.bf16.msra.mxu0 %v3481
    %3998 = vmatpush.bf16.msra.mxu0 %v3480
    %3999 = vmatpush.bf16.msra.mxu0 %v3479
    %4000 = vmatpush.bf16.msra.mxu0 %v3478
    %4001 = vmatpush.bf16.msra.mxu0 %v3477
    %4002 = vmatpush.bf16.msra.mxu0 %v3476
    %4003 = vmatmul.bf16.gmra.mxu0 %v1153
    %v4004 = vpop.f32.mrf.mxu0
    %v4005 = vadd.f32 %v3836, %v4004
    %v4006 = vpop.f32.mrf.mxu0
    %v4007 = vadd.f32 %v3838, %v4006
    %4008 = vmatmul.bf16.gmra.mxu0 %v1157
    %v4009 = vpop.f32.mrf.mxu0
    %v4010 = vadd.f32 %v3841, %v4009
    %v4011 = vpop.f32.mrf.mxu0
    %v4012 = vadd.f32 %v3843, %v4011
    %4013 = vmatmul.bf16.gmra.mxu0 %v1161
    %v4014 = vpop.f32.mrf.mxu0
    %v4015 = vadd.f32 %v3846, %v4014
    %v4016 = vpop.f32.mrf.mxu0
    %v4017 = vadd.f32 %v3848, %v4016
    %4018 = vmatmul.bf16.gmra.mxu0 %v1165
    %v4019 = vpop.f32.mrf.mxu0
    %v4020 = vadd.f32 %v3851, %v4019
    %v4021 = vpop.f32.mrf.mxu0
    %v4022 = vadd.f32 %v3853, %v4021
    %4023 = vmatmul.bf16.gmra.mxu0 %v1169
    %v4024 = vpop.f32.mrf.mxu0
    %v4025 = vadd.f32 %v3856, %v4024
    %v4026 = vpop.f32.mrf.mxu0
    %v4027 = vadd.f32 %v3858, %v4026
    %4028 = vmatmul.bf16.gmra.mxu0 %v1173
    %v4029 = vpop.f32.mrf.mxu0
    %v4030 = vadd.f32 %v3861, %v4029
    %v4031 = vpop.f32.mrf.mxu0
    %v4032 = vadd.f32 %v3863, %v4031
    %4033 = vmatmul.bf16.gmra.mxu0 %v1177
    %v4034 = vpop.f32.mrf.mxu0
    %v4035 = vadd.f32 %v3866, %v4034
    %v4036 = vpop.f32.mrf.mxu0
    %v4037 = vadd.f32 %v3868, %v4036
    %4038 = vmatmul.bf16.gmra.mxu0 %v1181
    %v4039 = vpop.f32.mrf.mxu0
    %v4040 = vadd.f32 %v3871, %v4039
    %v4041 = vpop.f32.mrf.mxu0
    %v4042 = vadd.f32 %v3873, %v4041
    %4043 = vmatmul.bf16.gmra.mxu0 %v1185
    %v4044 = vpop.f32.mrf.mxu0
    %v4045 = vadd.f32 %v3876, %v4044
    %v4046 = vpop.f32.mrf.mxu0
    %v4047 = vadd.f32 %v3878, %v4046
    %4048 = vmatmul.bf16.gmra.mxu0 %v1189
    %v4049 = vpop.f32.mrf.mxu0
    %v4050 = vadd.f32 %v3881, %v4049
    %v4051 = vpop.f32.mrf.mxu0
    %v4052 = vadd.f32 %v3883, %v4051
    %4053 = vmatmul.bf16.gmra.mxu0 %v1193
    %v4054 = vpop.f32.mrf.mxu0
    %v4055 = vadd.f32 %v3886, %v4054
    %v4056 = vpop.f32.mrf.mxu0
    %v4057 = vadd.f32 %v3888, %v4056
    %4058 = vmatmul.bf16.gmra.mxu0 %v1197
    %v4059 = vpop.f32.mrf.mxu0
    %v4060 = vadd.f32 %v3891, %v4059
    %v4061 = vpop.f32.mrf.mxu0
    %v4062 = vadd.f32 %v3893, %v4061
    %4063 = vmatmul.bf16.gmra.mxu0 %v1201
    %v4064 = vpop.f32.mrf.mxu0
    %v4065 = vadd.f32 %v3896, %v4064
    %v4066 = vpop.f32.mrf.mxu0
    %v4067 = vadd.f32 %v3898, %v4066
    %4068 = vmatmul.bf16.gmra.mxu0 %v1205
    %v4069 = vpop.f32.mrf.mxu0
    %v4070 = vadd.f32 %v3901, %v4069
    %v4071 = vpop.f32.mrf.mxu0
    %v4072 = vadd.f32 %v3903, %v4071
    %4073 = vmatmul.bf16.gmra.mxu0 %v1209
    %v4074 = vpop.f32.mrf.mxu0
    %v4075 = vadd.f32 %v3906, %v4074
    %v4076 = vpop.f32.mrf.mxu0
    %v4077 = vadd.f32 %v3908, %v4076
    %4078 = vmatmul.bf16.gmra.mxu0 %v1213
    %v4079 = vpop.f32.mrf.mxu0
    %v4080 = vadd.f32 %v3911, %v4079
    %v4081 = vpop.f32.mrf.mxu0
    %v4082 = vadd.f32 %v3913, %v4081
    %4083 = vmatmul.bf16.gmra.mxu0 %v1217
    %v4084 = vpop.f32.mrf.mxu0
    %v4085 = vadd.f32 %v3916, %v4084
    %v4086 = vpop.f32.mrf.mxu0
    %v4087 = vadd.f32 %v3918, %v4086
    %4088 = vmatmul.bf16.gmra.mxu0 %v1221
    %v4089 = vpop.f32.mrf.mxu0
    %v4090 = vadd.f32 %v3921, %v4089
    %v4091 = vpop.f32.mrf.mxu0
    %v4092 = vadd.f32 %v3923, %v4091
    %4093 = vmatmul.bf16.gmra.mxu0 %v1225
    %v4094 = vpop.f32.mrf.mxu0
    %v4095 = vadd.f32 %v3926, %v4094
    %v4096 = vpop.f32.mrf.mxu0
    %v4097 = vadd.f32 %v3928, %v4096
    %4098 = vmatmul.bf16.gmra.mxu0 %v1229
    %v4099 = vpop.f32.mrf.mxu0
    %v4100 = vadd.f32 %v3931, %v4099
    %v4101 = vpop.f32.mrf.mxu0
    %v4102 = vadd.f32 %v3933, %v4101
    %4103 = vmatmul.bf16.gmra.mxu0 %v1233
    %v4104 = vpop.f32.mrf.mxu0
    %v4105 = vadd.f32 %v3936, %v4104
    %v4106 = vpop.f32.mrf.mxu0
    %v4107 = vadd.f32 %v3938, %v4106
    %4108 = vmatmul.bf16.gmra.mxu0 %v1237
    %v4109 = vpop.f32.mrf.mxu0
    %v4110 = vadd.f32 %v3941, %v4109
    %v4111 = vpop.f32.mrf.mxu0
    %v4112 = vadd.f32 %v3943, %v4111
    %4113 = vmatmul.bf16.gmra.mxu0 %v1241
    %v4114 = vpop.f32.mrf.mxu0
    %v4115 = vadd.f32 %v3946, %v4114
    %v4116 = vpop.f32.mrf.mxu0
    %v4117 = vadd.f32 %v3948, %v4116
    %4118 = vmatmul.bf16.gmra.mxu0 %v1245
    %v4119 = vpop.f32.mrf.mxu0
    %v4120 = vadd.f32 %v3951, %v4119
    %v4121 = vpop.f32.mrf.mxu0
    %v4122 = vadd.f32 %v3953, %v4121
    %4123 = vmatmul.bf16.gmra.mxu0 %v1249
    %v4124 = vpop.f32.mrf.mxu0
    %v4125 = vadd.f32 %v3956, %v4124
    %v4126 = vpop.f32.mrf.mxu0
    %v4127 = vadd.f32 %v3958, %v4126
    %4128 = vmatmul.bf16.gmra.mxu0 %v1253
    %v4129 = vpop.f32.mrf.mxu0
    %v4130 = vadd.f32 %v3961, %v4129
    %v4131 = vpop.f32.mrf.mxu0
    %v4132 = vadd.f32 %v3963, %v4131
    %4133 = vmatmul.bf16.gmra.mxu0 %v1257
    %v4134 = vpop.f32.mrf.mxu0
    %v4135 = vadd.f32 %v3966, %v4134
    %v4136 = vpop.f32.mrf.mxu0
    %v4137 = vadd.f32 %v3968, %v4136
    %4138 = vmatmul.bf16.gmra.mxu0 %v1261
    %v4139 = vpop.f32.mrf.mxu0
    %v4140 = vadd.f32 %v3971, %v4139
    %v4141 = vpop.f32.mrf.mxu0
    %v4142 = vadd.f32 %v3973, %v4141
    %4143 = vmatmul.bf16.gmra.mxu0 %v1265
    %v4144 = vpop.f32.mrf.mxu0
    %v4145 = vadd.f32 %v3976, %v4144
    %v4146 = vpop.f32.mrf.mxu0
    %v4147 = vadd.f32 %v3978, %v4146
    %4148 = vmatmul.bf16.gmra.mxu0 %v1269
    %v4149 = vpop.f32.mrf.mxu0
    %v4150 = vadd.f32 %v3981, %v4149
    %v4151 = vpop.f32.mrf.mxu0
    %v4152 = vadd.f32 %v3983, %v4151
    %4153 = vmatmul.bf16.gmra.mxu0 %v1273
    %v4154 = vpop.f32.mrf.mxu0
    %v4155 = vadd.f32 %v3986, %v4154
    %v4156 = vpop.f32.mrf.mxu0
    %v4157 = vadd.f32 %v3988, %v4156
    %4158 = vmatmul.bf16.gmra.mxu0 %v1277
    %v4159 = vpop.f32.mrf.mxu0
    %v4160 = vadd.f32 %v3991, %v4159
    %v4161 = vpop.f32.mrf.mxu0
    %v4162 = vadd.f32 %v3993, %v4161
    %4163 = vdwg.mxu0
    %v4164 = vld [vmem:[%s8] sm:$0x1]
    %v4165 = vld [vmem:[%s9] sm:$0x1]
    %v4166 = vlaneseq
    %v4167 = vand.u32 %v4166, 127
    %vm4168 = vcmp.lt.s32.totalorder %v4167, 16
    %v4169 = vsel %vm4168, %v4005, 0.0
    %v4170 = vsel %vm4168, %v4007, 0.0
    %v4171 = vsel %vm4168, %v4010, 0.0
    %v4172 = vsel %vm4168, %v4012, 0.0
    %v4173 = vsel %vm4168, %v4015, 0.0
    %v4174 = vsel %vm4168, %v4017, 0.0
    %v4175 = vsel %vm4168, %v4020, 0.0
    %v4176 = vsel %vm4168, %v4022, 0.0
    %v4177 = vsel %vm4168, %v4025, 0.0
    %v4178 = vsel %vm4168, %v4027, 0.0
    %v4179 = vsel %vm4168, %v4030, 0.0
    %v4180 = vsel %vm4168, %v4032, 0.0
    %v4181 = vsel %vm4168, %v4035, 0.0
    %v4182 = vsel %vm4168, %v4037, 0.0
    %v4183 = vsel %vm4168, %v4040, 0.0
    %v4184 = vsel %vm4168, %v4042, 0.0
    %v4185 = vsel %vm4168, %v4045, 0.0
    %v4186 = vsel %vm4168, %v4047, 0.0
    %v4187 = vsel %vm4168, %v4050, 0.0
    %v4188 = vsel %vm4168, %v4052, 0.0
    %v4189 = vsel %vm4168, %v4055, 0.0
    %v4190 = vsel %vm4168, %v4057, 0.0
    %v4191 = vsel %vm4168, %v4060, 0.0
    %v4192 = vsel %vm4168, %v4062, 0.0
    %v4193 = vsel %vm4168, %v4065, 0.0
    %v4194 = vsel %vm4168, %v4067, 0.0
    %v4195 = vsel %vm4168, %v4070, 0.0
    %v4196 = vsel %vm4168, %v4072, 0.0
    %v4197 = vsel %vm4168, %v4075, 0.0
    %v4198 = vsel %vm4168, %v4077, 0.0
    %v4199 = vsel %vm4168, %v4080, 0.0
    %v4200 = vsel %vm4168, %v4082, 0.0
    %v4201 = vsel %vm4168, %v4085, 0.0
    %v4202 = vsel %vm4168, %v4087, 0.0
    %v4203 = vsel %vm4168, %v4090, 0.0
    %v4204 = vsel %vm4168, %v4092, 0.0
    %v4205 = vsel %vm4168, %v4095, 0.0
    %v4206 = vsel %vm4168, %v4097, 0.0
    %v4207 = vsel %vm4168, %v4100, 0.0
    %v4208 = vsel %vm4168, %v4102, 0.0
    %v4209 = vsel %vm4168, %v4105, 0.0
    %v4210 = vsel %vm4168, %v4107, 0.0
    %v4211 = vsel %vm4168, %v4110, 0.0
    %v4212 = vsel %vm4168, %v4112, 0.0
    %v4213 = vsel %vm4168, %v4115, 0.0
    %v4214 = vsel %vm4168, %v4117, 0.0
    %v4215 = vsel %vm4168, %v4120, 0.0
    %v4216 = vsel %vm4168, %v4122, 0.0
    %v4217 = vsel %vm4168, %v4125, 0.0
    %v4218 = vsel %vm4168, %v4127, 0.0
    %v4219 = vsel %vm4168, %v4130, 0.0
    %v4220 = vsel %vm4168, %v4132, 0.0
    %v4221 = vsel %vm4168, %v4135, 0.0
    %v4222 = vsel %vm4168, %v4137, 0.0
    %v4223 = vsel %vm4168, %v4140, 0.0
    %v4224 = vsel %vm4168, %v4142, 0.0
    %v4225 = vsel %vm4168, %v4145, 0.0
    %v4226 = vsel %vm4168, %v4147, 0.0
    %v4227 = vsel %vm4168, %v4150, 0.0
    %v4228 = vsel %vm4168, %v4152, 0.0
    %v4229 = vsel %vm4168, %v4155, 0.0
    %v4230 = vsel %vm4168, %v4157, 0.0
    %v4231 = vsel %vm4168, %v4160, 0.0
    %v4232 = vsel %vm4168, %v4162, 0.0
    %4233 = vadd.xlane.f32.xlu0 %v4169
    %v4234 = vpop.xlane.xlu0 %4233
    %4235 = vadd.xlane.f32.xlu0 %v4170
    %v4236 = vpop.xlane.xlu0 %4235
    %4237 = vadd.xlane.f32.xlu0 %v4171
    %v4238 = vpop.xlane.xlu0 %4237
    %4239 = vadd.xlane.f32.xlu0 %v4172
    %v4240 = vpop.xlane.xlu0 %4239
    %4241 = vadd.xlane.f32.xlu0 %v4173
    %v4242 = vpop.xlane.xlu0 %4241
    %4243 = vadd.xlane.f32.xlu0 %v4174
    %v4244 = vpop.xlane.xlu0 %4243
    %4245 = vadd.xlane.f32.xlu0 %v4175
    %v4246 = vpop.xlane.xlu0 %4245
    %4247 = vadd.xlane.f32.xlu0 %v4176
    %v4248 = vpop.xlane.xlu0 %4247
    %4249 = vadd.xlane.f32.xlu0 %v4177
    %v4250 = vpop.xlane.xlu0 %4249
    %4251 = vadd.xlane.f32.xlu0 %v4178
    %v4252 = vpop.xlane.xlu0 %4251
    %4253 = vadd.xlane.f32.xlu0 %v4179
    %v4254 = vpop.xlane.xlu0 %4253
    %4255 = vadd.xlane.f32.xlu0 %v4180
    %v4256 = vpop.xlane.xlu0 %4255
    %4257 = vadd.xlane.f32.xlu0 %v4181
    %v4258 = vpop.xlane.xlu0 %4257
    %4259 = vadd.xlane.f32.xlu0 %v4182
    %v4260 = vpop.xlane.xlu0 %4259
    %4261 = vadd.xlane.f32.xlu0 %v4183
    %v4262 = vpop.xlane.xlu0 %4261
    %4263 = vadd.xlane.f32.xlu0 %v4184
    %v4264 = vpop.xlane.xlu0 %4263
    %4265 = vadd.xlane.f32.xlu0 %v4185
    %v4266 = vpop.xlane.xlu0 %4265
    %4267 = vadd.xlane.f32.xlu0 %v4186
    %v4268 = vpop.xlane.xlu0 %4267
    %4269 = vadd.xlane.f32.xlu0 %v4187
    %v4270 = vpop.xlane.xlu0 %4269
    %4271 = vadd.xlane.f32.xlu0 %v4188
    %v4272 = vpop.xlane.xlu0 %4271
    %4273 = vadd.xlane.f32.xlu0 %v4189
    %v4274 = vpop.xlane.xlu0 %4273
    %4275 = vadd.xlane.f32.xlu0 %v4190
    %v4276 = vpop.xlane.xlu0 %4275
    %4277 = vadd.xlane.f32.xlu0 %v4191
    %v4278 = vpop.xlane.xlu0 %4277
    %4279 = vadd.xlane.f32.xlu0 %v4192
    %v4280 = vpop.xlane.xlu0 %4279
    %4281 = vadd.xlane.f32.xlu0 %v4193
    %v4282 = vpop.xlane.xlu0 %4281
    %4283 = vadd.xlane.f32.xlu0 %v4194
    %v4284 = vpop.xlane.xlu0 %4283
    %4285 = vadd.xlane.f32.xlu0 %v4195
    %v4286 = vpop.xlane.xlu0 %4285
    %4287 = vadd.xlane.f32.xlu0 %v4196
    %v4288 = vpop.xlane.xlu0 %4287
    %4289 = vadd.xlane.f32.xlu0 %v4197
    %v4290 = vpop.xlane.xlu0 %4289
    %4291 = vadd.xlane.f32.xlu0 %v4198
    %v4292 = vpop.xlane.xlu0 %4291
    %4293 = vadd.xlane.f32.xlu0 %v4199
    %v4294 = vpop.xlane.xlu0 %4293
    %4295 = vadd.xlane.f32.xlu0 %v4200
    %v4296 = vpop.xlane.xlu0 %4295
    %4297 = vadd.xlane.f32.xlu0 %v4201
    %v4298 = vpop.xlane.xlu0 %4297
    %4299 = vadd.xlane.f32.xlu0 %v4202
    %v4300 = vpop.xlane.xlu0 %4299
    %4301 = vadd.xlane.f32.xlu0 %v4203
    %v4302 = vpop.xlane.xlu0 %4301
    %4303 = vadd.xlane.f32.xlu0 %v4204
    %v4304 = vpop.xlane.xlu0 %4303
    %4305 = vadd.xlane.f32.xlu0 %v4205
    %v4306 = vpop.xlane.xlu0 %4305
    %4307 = vadd.xlane.f32.xlu0 %v4206
    %v4308 = vpop.xlane.xlu0 %4307
    %4309 = vadd.xlane.f32.xlu0 %v4207
    %v4310 = vpop.xlane.xlu0 %4309
    %4311 = vadd.xlane.f32.xlu0 %v4208
    %v4312 = vpop.xlane.xlu0 %4311
    %4313 = vadd.xlane.f32.xlu0 %v4209
    %v4314 = vpop.xlane.xlu0 %4313
    %4315 = vadd.xlane.f32.xlu0 %v4210
    %v4316 = vpop.xlane.xlu0 %4315
    %4317 = vadd.xlane.f32.xlu0 %v4211
    %v4318 = vpop.xlane.xlu0 %4317
    %4319 = vadd.xlane.f32.xlu0 %v4212
    %v4320 = vpop.xlane.xlu0 %4319
    %4321 = vadd.xlane.f32.xlu0 %v4213
    %v4322 = vpop.xlane.xlu0 %4321
    %4323 = vadd.xlane.f32.xlu0 %v4214
    %v4324 = vpop.xlane.xlu0 %4323
    %4325 = vadd.xlane.f32.xlu0 %v4215
    %v4326 = vpop.xlane.xlu0 %4325
    %4327 = vadd.xlane.f32.xlu0 %v4216
    %v4328 = vpop.xlane.xlu0 %4327
    %4329 = vadd.xlane.f32.xlu0 %v4217
    %v4330 = vpop.xlane.xlu0 %4329
    %4331 = vadd.xlane.f32.xlu0 %v4218
    %v4332 = vpop.xlane.xlu0 %4331
    %4333 = vadd.xlane.f32.xlu0 %v4219
    %v4334 = vpop.xlane.xlu0 %4333
    %4335 = vadd.xlane.f32.xlu0 %v4220
    %v4336 = vpop.xlane.xlu0 %4335
    %4337 = vadd.xlane.f32.xlu0 %v4221
    %v4338 = vpop.xlane.xlu0 %4337
    %4339 = vadd.xlane.f32.xlu0 %v4222
    %v4340 = vpop.xlane.xlu0 %4339
    %4341 = vadd.xlane.f32.xlu0 %v4223
    %v4342 = vpop.xlane.xlu0 %4341
    %4343 = vadd.xlane.f32.xlu0 %v4224
    %v4344 = vpop.xlane.xlu0 %4343
    %4345 = vadd.xlane.f32.xlu0 %v4225
    %v4346 = vpop.xlane.xlu0 %4345
    %4347 = vadd.xlane.f32.xlu0 %v4226
    %v4348 = vpop.xlane.xlu0 %4347
    %4349 = vadd.xlane.f32.xlu0 %v4227
    %v4350 = vpop.xlane.xlu0 %4349
    %4351 = vadd.xlane.f32.xlu0 %v4228
    %v4352 = vpop.xlane.xlu0 %4351
    %4353 = vadd.xlane.f32.xlu0 %v4229
    %v4354 = vpop.xlane.xlu0 %4353
    %4355 = vadd.xlane.f32.xlu0 %v4230
    %v4356 = vpop.xlane.xlu0 %4355
    %4357 = vadd.xlane.f32.xlu0 %v4231
    %v4358 = vpop.xlane.xlu0 %4357
    %4359 = vadd.xlane.f32.xlu0 %v4232
    %v4360 = vpop.xlane.xlu0 %4359
    %v4361 = vmul.f32 %v4234, 0.0625
    %v4362 = vmul.f32 %v4236, 0.0625
    %v4363 = vmul.f32 %v4238, 0.0625
    %v4364 = vmul.f32 %v4240, 0.0625
    %v4365 = vmul.f32 %v4242, 0.0625
    %v4366 = vmul.f32 %v4244, 0.0625
    %v4367 = vmul.f32 %v4246, 0.0625
    %v4368 = vmul.f32 %v4248, 0.0625
    %v4369 = vmul.f32 %v4250, 0.0625
    %v4370 = vmul.f32 %v4252, 0.0625
    %v4371 = vmul.f32 %v4254, 0.0625
    %v4372 = vmul.f32 %v4256, 0.0625
    %v4373 = vmul.f32 %v4258, 0.0625
    %v4374 = vmul.f32 %v4260, 0.0625
    %v4375 = vmul.f32 %v4262, 0.0625
    %v4376 = vmul.f32 %v4264, 0.0625
    %v4377 = vmul.f32 %v4266, 0.0625
    %v4378 = vmul.f32 %v4268, 0.0625
    %v4379 = vmul.f32 %v4270, 0.0625
    %v4380 = vmul.f32 %v4272, 0.0625
    %v4381 = vmul.f32 %v4274, 0.0625
    %v4382 = vmul.f32 %v4276, 0.0625
    %v4383 = vmul.f32 %v4278, 0.0625
    %v4384 = vmul.f32 %v4280, 0.0625
    %v4385 = vmul.f32 %v4282, 0.0625
    %v4386 = vmul.f32 %v4284, 0.0625
    %v4387 = vmul.f32 %v4286, 0.0625
    %v4388 = vmul.f32 %v4288, 0.0625
    %v4389 = vmul.f32 %v4290, 0.0625
    %v4390 = vmul.f32 %v4292, 0.0625
    %v4391 = vmul.f32 %v4294, 0.0625
    %v4392 = vmul.f32 %v4296, 0.0625
    %v4393 = vmul.f32 %v4298, 0.0625
    %v4394 = vmul.f32 %v4300, 0.0625
    %v4395 = vmul.f32 %v4302, 0.0625
    %v4396 = vmul.f32 %v4304, 0.0625
    %v4397 = vmul.f32 %v4306, 0.0625
    %v4398 = vmul.f32 %v4308, 0.0625
    %v4399 = vmul.f32 %v4310, 0.0625
    %v4400 = vmul.f32 %v4312, 0.0625
    %v4401 = vmul.f32 %v4314, 0.0625
    %v4402 = vmul.f32 %v4316, 0.0625
    %v4403 = vmul.f32 %v4318, 0.0625
    %v4404 = vmul.f32 %v4320, 0.0625
    %v4405 = vmul.f32 %v4322, 0.0625
    %v4406 = vmul.f32 %v4324, 0.0625
    %v4407 = vmul.f32 %v4326, 0.0625
    %v4408 = vmul.f32 %v4328, 0.0625
    %v4409 = vmul.f32 %v4330, 0.0625
    %v4410 = vmul.f32 %v4332, 0.0625
    %v4411 = vmul.f32 %v4334, 0.0625
    %v4412 = vmul.f32 %v4336, 0.0625
    %v4413 = vmul.f32 %v4338, 0.0625
    %v4414 = vmul.f32 %v4340, 0.0625
    %v4415 = vmul.f32 %v4342, 0.0625
    %v4416 = vmul.f32 %v4344, 0.0625
    %v4417 = vmul.f32 %v4346, 0.0625
    %v4418 = vmul.f32 %v4348, 0.0625
    %v4419 = vmul.f32 %v4350, 0.0625
    %v4420 = vmul.f32 %v4352, 0.0625
    %v4421 = vmul.f32 %v4354, 0.0625
    %v4422 = vmul.f32 %v4356, 0.0625
    %v4423 = vmul.f32 %v4358, 0.0625
    %v4424 = vmul.f32 %v4360, 0.0625
    %v4425 = vsub.f32 %v4005, %v4361
    %v4426 = vsub.f32 %v4007, %v4362
    %v4427 = vsub.f32 %v4010, %v4363
    %v4428 = vsub.f32 %v4012, %v4364
    %v4429 = vsub.f32 %v4015, %v4365
    %v4430 = vsub.f32 %v4017, %v4366
    %v4431 = vsub.f32 %v4020, %v4367
    %v4432 = vsub.f32 %v4022, %v4368
    %v4433 = vsub.f32 %v4025, %v4369
    %v4434 = vsub.f32 %v4027, %v4370
    %v4435 = vsub.f32 %v4030, %v4371
    %v4436 = vsub.f32 %v4032, %v4372
    %v4437 = vsub.f32 %v4035, %v4373
    %v4438 = vsub.f32 %v4037, %v4374
    %v4439 = vsub.f32 %v4040, %v4375
    %v4440 = vsub.f32 %v4042, %v4376
    %v4441 = vsub.f32 %v4045, %v4377
    %v4442 = vsub.f32 %v4047, %v4378
    %v4443 = vsub.f32 %v4050, %v4379
    %v4444 = vsub.f32 %v4052, %v4380
    %v4445 = vsub.f32 %v4055, %v4381
    %v4446 = vsub.f32 %v4057, %v4382
    %v4447 = vsub.f32 %v4060, %v4383
    %v4448 = vsub.f32 %v4062, %v4384
    %v4449 = vsub.f32 %v4065, %v4385
    %v4450 = vsub.f32 %v4067, %v4386
    %v4451 = vsub.f32 %v4070, %v4387
    %v4452 = vsub.f32 %v4072, %v4388
    %v4453 = vsub.f32 %v4075, %v4389
    %v4454 = vsub.f32 %v4077, %v4390
    %v4455 = vsub.f32 %v4080, %v4391
    %v4456 = vsub.f32 %v4082, %v4392
    %v4457 = vsub.f32 %v4085, %v4393
    %v4458 = vsub.f32 %v4087, %v4394
    %v4459 = vsub.f32 %v4090, %v4395
    %v4460 = vsub.f32 %v4092, %v4396
    %v4461 = vsub.f32 %v4095, %v4397
    %v4462 = vsub.f32 %v4097, %v4398
    %v4463 = vsub.f32 %v4100, %v4399
    %v4464 = vsub.f32 %v4102, %v4400
    %v4465 = vsub.f32 %v4105, %v4401
    %v4466 = vsub.f32 %v4107, %v4402
    %v4467 = vsub.f32 %v4110, %v4403
    %v4468 = vsub.f32 %v4112, %v4404
    %v4469 = vsub.f32 %v4115, %v4405
    %v4470 = vsub.f32 %v4117, %v4406
    %v4471 = vsub.f32 %v4120, %v4407
    %v4472 = vsub.f32 %v4122, %v4408
    %v4473 = vsub.f32 %v4125, %v4409
    %v4474 = vsub.f32 %v4127, %v4410
    %v4475 = vsub.f32 %v4130, %v4411
    %v4476 = vsub.f32 %v4132, %v4412
    %v4477 = vsub.f32 %v4135, %v4413
    %v4478 = vsub.f32 %v4137, %v4414
    %v4479 = vsub.f32 %v4140, %v4415
    %v4480 = vsub.f32 %v4142, %v4416
    %v4481 = vsub.f32 %v4145, %v4417
    %v4482 = vsub.f32 %v4147, %v4418
    %v4483 = vsub.f32 %v4150, %v4419
    %v4484 = vsub.f32 %v4152, %v4420
    %v4485 = vsub.f32 %v4155, %v4421
    %v4486 = vsub.f32 %v4157, %v4422
    %v4487 = vsub.f32 %v4160, %v4423
    %v4488 = vsub.f32 %v4162, %v4424
    %v4489 = vsel %vm4168, %v4425, 0.0
    %v4490 = vsel %vm4168, %v4426, 0.0
    %v4491 = vsel %vm4168, %v4427, 0.0
    %v4492 = vsel %vm4168, %v4428, 0.0
    %v4493 = vsel %vm4168, %v4429, 0.0
    %v4494 = vsel %vm4168, %v4430, 0.0
    %v4495 = vsel %vm4168, %v4431, 0.0
    %v4496 = vsel %vm4168, %v4432, 0.0
    %v4497 = vsel %vm4168, %v4433, 0.0
    %v4498 = vsel %vm4168, %v4434, 0.0
    %v4499 = vsel %vm4168, %v4435, 0.0
    %v4500 = vsel %vm4168, %v4436, 0.0
    %v4501 = vsel %vm4168, %v4437, 0.0
    %v4502 = vsel %vm4168, %v4438, 0.0
    %v4503 = vsel %vm4168, %v4439, 0.0
    %v4504 = vsel %vm4168, %v4440, 0.0
    %v4505 = vsel %vm4168, %v4441, 0.0
    %v4506 = vsel %vm4168, %v4442, 0.0
    %v4507 = vsel %vm4168, %v4443, 0.0
    %v4508 = vsel %vm4168, %v4444, 0.0
    %v4509 = vsel %vm4168, %v4445, 0.0
    %v4510 = vsel %vm4168, %v4446, 0.0
    %v4511 = vsel %vm4168, %v4447, 0.0
    %v4512 = vsel %vm4168, %v4448, 0.0
    %v4513 = vsel %vm4168, %v4449, 0.0
    %v4514 = vsel %vm4168, %v4450, 0.0
    %v4515 = vsel %vm4168, %v4451, 0.0
    %v4516 = vsel %vm4168, %v4452, 0.0
    %v4517 = vsel %vm4168, %v4453, 0.0
    %v4518 = vsel %vm4168, %v4454, 0.0
    %v4519 = vsel %vm4168, %v4455, 0.0
    %v4520 = vsel %vm4168, %v4456, 0.0
    %v4521 = vsel %vm4168, %v4457, 0.0
    %v4522 = vsel %vm4168, %v4458, 0.0
    %v4523 = vsel %vm4168, %v4459, 0.0
    %v4524 = vsel %vm4168, %v4460, 0.0
    %v4525 = vsel %vm4168, %v4461, 0.0
    %v4526 = vsel %vm4168, %v4462, 0.0
    %v4527 = vsel %vm4168, %v4463, 0.0
    %v4528 = vsel %vm4168, %v4464, 0.0
    %v4529 = vsel %vm4168, %v4465, 0.0
    %v4530 = vsel %vm4168, %v4466, 0.0
    %v4531 = vsel %vm4168, %v4467, 0.0
    %v4532 = vsel %vm4168, %v4468, 0.0
    %v4533 = vsel %vm4168, %v4469, 0.0
    %v4534 = vsel %vm4168, %v4470, 0.0
    %v4535 = vsel %vm4168, %v4471, 0.0
    %v4536 = vsel %vm4168, %v4472, 0.0
    %v4537 = vsel %vm4168, %v4473, 0.0
    %v4538 = vsel %vm4168, %v4474, 0.0
    %v4539 = vsel %vm4168, %v4475, 0.0
    %v4540 = vsel %vm4168, %v4476, 0.0
    %v4541 = vsel %vm4168, %v4477, 0.0
    %v4542 = vsel %vm4168, %v4478, 0.0
    %v4543 = vsel %vm4168, %v4479, 0.0
    %v4544 = vsel %vm4168, %v4480, 0.0
    %v4545 = vsel %vm4168, %v4481, 0.0
    %v4546 = vsel %vm4168, %v4482, 0.0
    %v4547 = vsel %vm4168, %v4483, 0.0
    %v4548 = vsel %vm4168, %v4484, 0.0
    %v4549 = vsel %vm4168, %v4485, 0.0
    %v4550 = vsel %vm4168, %v4486, 0.0
    %v4551 = vsel %vm4168, %v4487, 0.0
    %v4552 = vsel %vm4168, %v4488, 0.0
    %v4553 = vmul.f32 %v4489, %v4489
    %v4554 = vmul.f32 %v4490, %v4490
    %v4555 = vmul.f32 %v4491, %v4491
    %v4556 = vmul.f32 %v4492, %v4492
    %v4557 = vmul.f32 %v4493, %v4493
    %v4558 = vmul.f32 %v4494, %v4494
    %v4559 = vmul.f32 %v4495, %v4495
    %v4560 = vmul.f32 %v4496, %v4496
    %v4561 = vmul.f32 %v4497, %v4497
    %v4562 = vmul.f32 %v4498, %v4498
    %v4563 = vmul.f32 %v4499, %v4499
    %v4564 = vmul.f32 %v4500, %v4500
    %v4565 = vmul.f32 %v4501, %v4501
    %v4566 = vmul.f32 %v4502, %v4502
    %v4567 = vmul.f32 %v4503, %v4503
    %v4568 = vmul.f32 %v4504, %v4504
    %v4569 = vmul.f32 %v4505, %v4505
    %v4570 = vmul.f32 %v4506, %v4506
    %v4571 = vmul.f32 %v4507, %v4507
    %v4572 = vmul.f32 %v4508, %v4508
    %v4573 = vmul.f32 %v4509, %v4509
    %v4574 = vmul.f32 %v4510, %v4510
    %v4575 = vmul.f32 %v4511, %v4511
    %v4576 = vmul.f32 %v4512, %v4512
    %v4577 = vmul.f32 %v4513, %v4513
    %v4578 = vmul.f32 %v4514, %v4514
    %v4579 = vmul.f32 %v4515, %v4515
    %v4580 = vmul.f32 %v4516, %v4516
    %v4581 = vmul.f32 %v4517, %v4517
    %v4582 = vmul.f32 %v4518, %v4518
    %v4583 = vmul.f32 %v4519, %v4519
    %v4584 = vmul.f32 %v4520, %v4520
    %v4585 = vmul.f32 %v4521, %v4521
    %v4586 = vmul.f32 %v4522, %v4522
    %v4587 = vmul.f32 %v4523, %v4523
    %v4588 = vmul.f32 %v4524, %v4524
    %v4589 = vmul.f32 %v4525, %v4525
    %v4590 = vmul.f32 %v4526, %v4526
    %v4591 = vmul.f32 %v4527, %v4527
    %v4592 = vmul.f32 %v4528, %v4528
    %v4593 = vmul.f32 %v4529, %v4529
    %v4594 = vmul.f32 %v4530, %v4530
    %v4595 = vmul.f32 %v4531, %v4531
    %v4596 = vmul.f32 %v4532, %v4532
    %v4597 = vmul.f32 %v4533, %v4533
    %v4598 = vmul.f32 %v4534, %v4534
    %v4599 = vmul.f32 %v4535, %v4535
    %v4600 = vmul.f32 %v4536, %v4536
    %v4601 = vmul.f32 %v4537, %v4537
    %v4602 = vmul.f32 %v4538, %v4538
    %v4603 = vmul.f32 %v4539, %v4539
    %v4604 = vmul.f32 %v4540, %v4540
    %v4605 = vmul.f32 %v4541, %v4541
    %v4606 = vmul.f32 %v4542, %v4542
    %v4607 = vmul.f32 %v4543, %v4543
    %v4608 = vmul.f32 %v4544, %v4544
    %v4609 = vmul.f32 %v4545, %v4545
    %v4610 = vmul.f32 %v4546, %v4546
    %v4611 = vmul.f32 %v4547, %v4547
    %v4612 = vmul.f32 %v4548, %v4548
    %v4613 = vmul.f32 %v4549, %v4549
    %v4614 = vmul.f32 %v4550, %v4550
    %v4615 = vmul.f32 %v4551, %v4551
    %v4616 = vmul.f32 %v4552, %v4552
    %4617 = vadd.xlane.f32.xlu0 %v4553
    %v4618 = vpop.xlane.xlu0 %4617
    %4619 = vadd.xlane.f32.xlu0 %v4554
    %v4620 = vpop.xlane.xlu0 %4619
    %4621 = vadd.xlane.f32.xlu0 %v4555
    %v4622 = vpop.xlane.xlu0 %4621
    %4623 = vadd.xlane.f32.xlu0 %v4556
    %v4624 = vpop.xlane.xlu0 %4623
    %4625 = vadd.xlane.f32.xlu0 %v4557
    %v4626 = vpop.xlane.xlu0 %4625
    %4627 = vadd.xlane.f32.xlu0 %v4558
    %v4628 = vpop.xlane.xlu0 %4627
    %4629 = vadd.xlane.f32.xlu0 %v4559
    %v4630 = vpop.xlane.xlu0 %4629
    %4631 = vadd.xlane.f32.xlu0 %v4560
    %v4632 = vpop.xlane.xlu0 %4631
    %4633 = vadd.xlane.f32.xlu0 %v4561
    %v4634 = vpop.xlane.xlu0 %4633
    %4635 = vadd.xlane.f32.xlu0 %v4562
    %v4636 = vpop.xlane.xlu0 %4635
    %4637 = vadd.xlane.f32.xlu0 %v4563
    %v4638 = vpop.xlane.xlu0 %4637
    %4639 = vadd.xlane.f32.xlu0 %v4564
    %v4640 = vpop.xlane.xlu0 %4639
    %4641 = vadd.xlane.f32.xlu0 %v4565
    %v4642 = vpop.xlane.xlu0 %4641
    %4643 = vadd.xlane.f32.xlu0 %v4566
    %v4644 = vpop.xlane.xlu0 %4643
    %4645 = vadd.xlane.f32.xlu0 %v4567
    %v4646 = vpop.xlane.xlu0 %4645
    %4647 = vadd.xlane.f32.xlu0 %v4568
    %v4648 = vpop.xlane.xlu0 %4647
    %4649 = vadd.xlane.f32.xlu0 %v4569
    %v4650 = vpop.xlane.xlu0 %4649
    %4651 = vadd.xlane.f32.xlu0 %v4570
    %v4652 = vpop.xlane.xlu0 %4651
    %4653 = vadd.xlane.f32.xlu0 %v4571
    %v4654 = vpop.xlane.xlu0 %4653
    %4655 = vadd.xlane.f32.xlu0 %v4572
    %v4656 = vpop.xlane.xlu0 %4655
    %4657 = vadd.xlane.f32.xlu0 %v4573
    %v4658 = vpop.xlane.xlu0 %4657
    %4659 = vadd.xlane.f32.xlu0 %v4574
    %v4660 = vpop.xlane.xlu0 %4659
    %4661 = vadd.xlane.f32.xlu0 %v4575
    %v4662 = vpop.xlane.xlu0 %4661
    %4663 = vadd.xlane.f32.xlu0 %v4576
    %v4664 = vpop.xlane.xlu0 %4663
    %4665 = vadd.xlane.f32.xlu0 %v4577
    %v4666 = vpop.xlane.xlu0 %4665
    %4667 = vadd.xlane.f32.xlu0 %v4578
    %v4668 = vpop.xlane.xlu0 %4667
    %4669 = vadd.xlane.f32.xlu0 %v4579
    %v4670 = vpop.xlane.xlu0 %4669
    %4671 = vadd.xlane.f32.xlu0 %v4580
    %v4672 = vpop.xlane.xlu0 %4671
    %4673 = vadd.xlane.f32.xlu0 %v4581
    %v4674 = vpop.xlane.xlu0 %4673
    %4675 = vadd.xlane.f32.xlu0 %v4582
    %v4676 = vpop.xlane.xlu0 %4675
    %4677 = vadd.xlane.f32.xlu0 %v4583
    %v4678 = vpop.xlane.xlu0 %4677
    %4679 = vadd.xlane.f32.xlu0 %v4584
    %v4680 = vpop.xlane.xlu0 %4679
    %4681 = vadd.xlane.f32.xlu0 %v4585
    %v4682 = vpop.xlane.xlu0 %4681
    %4683 = vadd.xlane.f32.xlu0 %v4586
    %v4684 = vpop.xlane.xlu0 %4683
    %4685 = vadd.xlane.f32.xlu0 %v4587
    %v4686 = vpop.xlane.xlu0 %4685
    %4687 = vadd.xlane.f32.xlu0 %v4588
    %v4688 = vpop.xlane.xlu0 %4687
    %4689 = vadd.xlane.f32.xlu0 %v4589
    %v4690 = vpop.xlane.xlu0 %4689
    %4691 = vadd.xlane.f32.xlu0 %v4590
    %v4692 = vpop.xlane.xlu0 %4691
    %4693 = vadd.xlane.f32.xlu0 %v4591
    %v4694 = vpop.xlane.xlu0 %4693
    %4695 = vadd.xlane.f32.xlu0 %v4592
    %v4696 = vpop.xlane.xlu0 %4695
    %4697 = vadd.xlane.f32.xlu0 %v4593
    %v4698 = vpop.xlane.xlu0 %4697
    %4699 = vadd.xlane.f32.xlu0 %v4594
    %v4700 = vpop.xlane.xlu0 %4699
    %4701 = vadd.xlane.f32.xlu0 %v4595
    %v4702 = vpop.xlane.xlu0 %4701
    %4703 = vadd.xlane.f32.xlu0 %v4596
    %v4704 = vpop.xlane.xlu0 %4703
    %4705 = vadd.xlane.f32.xlu0 %v4597
    %v4706 = vpop.xlane.xlu0 %4705
    %4707 = vadd.xlane.f32.xlu0 %v4598
    %v4708 = vpop.xlane.xlu0 %4707
    %4709 = vadd.xlane.f32.xlu0 %v4599
    %v4710 = vpop.xlane.xlu0 %4709
    %4711 = vadd.xlane.f32.xlu0 %v4600
    %v4712 = vpop.xlane.xlu0 %4711
    %4713 = vadd.xlane.f32.xlu0 %v4601
    %v4714 = vpop.xlane.xlu0 %4713
    %4715 = vadd.xlane.f32.xlu0 %v4602
    %v4716 = vpop.xlane.xlu0 %4715
    %4717 = vadd.xlane.f32.xlu0 %v4603
    %v4718 = vpop.xlane.xlu0 %4717
    %4719 = vadd.xlane.f32.xlu0 %v4604
    %v4720 = vpop.xlane.xlu0 %4719
    %4721 = vadd.xlane.f32.xlu0 %v4605
    %v4722 = vpop.xlane.xlu0 %4721
    %4723 = vadd.xlane.f32.xlu0 %v4606
    %v4724 = vpop.xlane.xlu0 %4723
    %4725 = vadd.xlane.f32.xlu0 %v4607
    %v4726 = vpop.xlane.xlu0 %4725
    %4727 = vadd.xlane.f32.xlu0 %v4608
    %v4728 = vpop.xlane.xlu0 %4727
    %4729 = vadd.xlane.f32.xlu0 %v4609
    %v4730 = vpop.xlane.xlu0 %4729
    %4731 = vadd.xlane.f32.xlu0 %v4610
    %v4732 = vpop.xlane.xlu0 %4731
    %4733 = vadd.xlane.f32.xlu0 %v4611
    %v4734 = vpop.xlane.xlu0 %4733
    %4735 = vadd.xlane.f32.xlu0 %v4612
    %v4736 = vpop.xlane.xlu0 %4735
    %4737 = vadd.xlane.f32.xlu0 %v4613
    %v4738 = vpop.xlane.xlu0 %4737
    %4739 = vadd.xlane.f32.xlu0 %v4614
    %v4740 = vpop.xlane.xlu0 %4739
    %4741 = vadd.xlane.f32.xlu0 %v4615
    %v4742 = vpop.xlane.xlu0 %4741
    %4743 = vadd.xlane.f32.xlu0 %v4616
    %v4744 = vpop.xlane.xlu0 %4743
    %v4745 = vmul.f32 %v4618, 0.0625
    %v4746 = vmul.f32 %v4620, 0.0625
    %v4747 = vmul.f32 %v4622, 0.0625
    %v4748 = vmul.f32 %v4624, 0.0625
    %v4749 = vmul.f32 %v4626, 0.0625
    %v4750 = vmul.f32 %v4628, 0.0625
    %v4751 = vmul.f32 %v4630, 0.0625
    %v4752 = vmul.f32 %v4632, 0.0625
    %v4753 = vmul.f32 %v4634, 0.0625
    %v4754 = vmul.f32 %v4636, 0.0625
    %v4755 = vmul.f32 %v4638, 0.0625
    %v4756 = vmul.f32 %v4640, 0.0625
    %v4757 = vmul.f32 %v4642, 0.0625
    %v4758 = vmul.f32 %v4644, 0.0625
    %v4759 = vmul.f32 %v4646, 0.0625
    %v4760 = vmul.f32 %v4648, 0.0625
    %v4761 = vmul.f32 %v4650, 0.0625
    %v4762 = vmul.f32 %v4652, 0.0625
    %v4763 = vmul.f32 %v4654, 0.0625
    %v4764 = vmul.f32 %v4656, 0.0625
    %v4765 = vmul.f32 %v4658, 0.0625
    %v4766 = vmul.f32 %v4660, 0.0625
    %v4767 = vmul.f32 %v4662, 0.0625
    %v4768 = vmul.f32 %v4664, 0.0625
    %v4769 = vmul.f32 %v4666, 0.0625
    %v4770 = vmul.f32 %v4668, 0.0625
    %v4771 = vmul.f32 %v4670, 0.0625
    %v4772 = vmul.f32 %v4672, 0.0625
    %v4773 = vmul.f32 %v4674, 0.0625
    %v4774 = vmul.f32 %v4676, 0.0625
    %v4775 = vmul.f32 %v4678, 0.0625
    %v4776 = vmul.f32 %v4680, 0.0625
    %v4777 = vmul.f32 %v4682, 0.0625
    %v4778 = vmul.f32 %v4684, 0.0625
    %v4779 = vmul.f32 %v4686, 0.0625
    %v4780 = vmul.f32 %v4688, 0.0625
    %v4781 = vmul.f32 %v4690, 0.0625
    %v4782 = vmul.f32 %v4692, 0.0625
    %v4783 = vmul.f32 %v4694, 0.0625
    %v4784 = vmul.f32 %v4696, 0.0625
    %v4785 = vmul.f32 %v4698, 0.0625
    %v4786 = vmul.f32 %v4700, 0.0625
    %v4787 = vmul.f32 %v4702, 0.0625
    %v4788 = vmul.f32 %v4704, 0.0625
    %v4789 = vmul.f32 %v4706, 0.0625
    %v4790 = vmul.f32 %v4708, 0.0625
    %v4791 = vmul.f32 %v4710, 0.0625
    %v4792 = vmul.f32 %v4712, 0.0625
    %v4793 = vmul.f32 %v4714, 0.0625
    %v4794 = vmul.f32 %v4716, 0.0625
    %v4795 = vmul.f32 %v4718, 0.0625
    %v4796 = vmul.f32 %v4720, 0.0625
    %v4797 = vmul.f32 %v4722, 0.0625
    %v4798 = vmul.f32 %v4724, 0.0625
    %v4799 = vmul.f32 %v4726, 0.0625
    %v4800 = vmul.f32 %v4728, 0.0625
    %v4801 = vmul.f32 %v4730, 0.0625
    %v4802 = vmul.f32 %v4732, 0.0625
    %v4803 = vmul.f32 %v4734, 0.0625
    %v4804 = vmul.f32 %v4736, 0.0625
    %v4805 = vmul.f32 %v4738, 0.0625
    %v4806 = vmul.f32 %v4740, 0.0625
    %v4807 = vmul.f32 %v4742, 0.0625
    %v4808 = vmul.f32 %v4744, 0.0625
    %v4809 = vadd.f32 %v4745, 1e-05
    %v4810 = vadd.f32 %v4746, 1e-05
    %v4811 = vadd.f32 %v4747, 1e-05
    %v4812 = vadd.f32 %v4748, 1e-05
    %v4813 = vadd.f32 %v4749, 1e-05
    %v4814 = vadd.f32 %v4750, 1e-05
    %v4815 = vadd.f32 %v4751, 1e-05
    %v4816 = vadd.f32 %v4752, 1e-05
    %v4817 = vadd.f32 %v4753, 1e-05
    %v4818 = vadd.f32 %v4754, 1e-05
    %v4819 = vadd.f32 %v4755, 1e-05
    %v4820 = vadd.f32 %v4756, 1e-05
    %v4821 = vadd.f32 %v4757, 1e-05
    %v4822 = vadd.f32 %v4758, 1e-05
    %v4823 = vadd.f32 %v4759, 1e-05
    %v4824 = vadd.f32 %v4760, 1e-05
    %v4825 = vadd.f32 %v4761, 1e-05
    %v4826 = vadd.f32 %v4762, 1e-05
    %v4827 = vadd.f32 %v4763, 1e-05
    %v4828 = vadd.f32 %v4764, 1e-05
    %v4829 = vadd.f32 %v4765, 1e-05
    %v4830 = vadd.f32 %v4766, 1e-05
    %v4831 = vadd.f32 %v4767, 1e-05
    %v4832 = vadd.f32 %v4768, 1e-05
    %v4833 = vadd.f32 %v4769, 1e-05
    %v4834 = vadd.f32 %v4770, 1e-05
    %v4835 = vadd.f32 %v4771, 1e-05
    %v4836 = vadd.f32 %v4772, 1e-05
    %v4837 = vadd.f32 %v4773, 1e-05
    %v4838 = vadd.f32 %v4774, 1e-05
    %v4839 = vadd.f32 %v4775, 1e-05
    %v4840 = vadd.f32 %v4776, 1e-05
    %v4841 = vadd.f32 %v4777, 1e-05
    %v4842 = vadd.f32 %v4778, 1e-05
    %v4843 = vadd.f32 %v4779, 1e-05
    %v4844 = vadd.f32 %v4780, 1e-05
    %v4845 = vadd.f32 %v4781, 1e-05
    %v4846 = vadd.f32 %v4782, 1e-05
    %v4847 = vadd.f32 %v4783, 1e-05
    %v4848 = vadd.f32 %v4784, 1e-05
    %v4849 = vadd.f32 %v4785, 1e-05
    %v4850 = vadd.f32 %v4786, 1e-05
    %v4851 = vadd.f32 %v4787, 1e-05
    %v4852 = vadd.f32 %v4788, 1e-05
    %v4853 = vadd.f32 %v4789, 1e-05
    %v4854 = vadd.f32 %v4790, 1e-05
    %v4855 = vadd.f32 %v4791, 1e-05
    %v4856 = vadd.f32 %v4792, 1e-05
    %v4857 = vadd.f32 %v4793, 1e-05
    %v4858 = vadd.f32 %v4794, 1e-05
    %v4859 = vadd.f32 %v4795, 1e-05
    %v4860 = vadd.f32 %v4796, 1e-05
    %v4861 = vadd.f32 %v4797, 1e-05
    %v4862 = vadd.f32 %v4798, 1e-05
    %v4863 = vadd.f32 %v4799, 1e-05
    %v4864 = vadd.f32 %v4800, 1e-05
    %v4865 = vadd.f32 %v4801, 1e-05
    %v4866 = vadd.f32 %v4802, 1e-05
    %v4867 = vadd.f32 %v4803, 1e-05
    %v4868 = vadd.f32 %v4804, 1e-05
    %v4869 = vadd.f32 %v4805, 1e-05
    %v4870 = vadd.f32 %v4806, 1e-05
    %v4871 = vadd.f32 %v4807, 1e-05
    %v4872 = vadd.f32 %v4808, 1e-05
    %v4873 = vrsqrt.pop %v4809
    %v4874 = vmul.f32 %v4873, %v4809
    %v4875 = vmul.f32 %v4874, %v4873
    %v4876 = vmul.f32 0.5, %v4875
    %v4877 = vsub.f32 1.5, %v4876
    %v4878 = vmul.f32 %v4873, %v4877
    %vm4879 = vweird.f32 %v4809
    %vm4880 = vweird.f32 %v4873
    %vm4881 = vmor %vm4879, %vm4880
    %v4882 = vsel %vm4881, %v4873, %v4878
    %v4883 = vrsqrt.pop %v4810
    %v4884 = vmul.f32 %v4883, %v4810
    %v4885 = vmul.f32 %v4884, %v4883
    %v4886 = vmul.f32 0.5, %v4885
    %v4887 = vsub.f32 1.5, %v4886
    %v4888 = vmul.f32 %v4883, %v4887
    %vm4889 = vweird.f32 %v4810
    %vm4890 = vweird.f32 %v4883
    %vm4891 = vmor %vm4889, %vm4890
    %v4892 = vsel %vm4891, %v4883, %v4888
    %v4893 = vrsqrt.pop %v4811
    %v4894 = vmul.f32 %v4893, %v4811
    %v4895 = vmul.f32 %v4894, %v4893
    %v4896 = vmul.f32 0.5, %v4895
    %v4897 = vsub.f32 1.5, %v4896
    %v4898 = vmul.f32 %v4893, %v4897
    %vm4899 = vweird.f32 %v4811
    %vm4900 = vweird.f32 %v4893
    %vm4901 = vmor %vm4899, %vm4900
    %v4902 = vsel %vm4901, %v4893, %v4898
    %v4903 = vrsqrt.pop %v4812
    %v4904 = vmul.f32 %v4903, %v4812
    %v4905 = vmul.f32 %v4904, %v4903
    %v4906 = vmul.f32 0.5, %v4905
    %v4907 = vsub.f32 1.5, %v4906
    %v4908 = vmul.f32 %v4903, %v4907
    %vm4909 = vweird.f32 %v4812
    %vm4910 = vweird.f32 %v4903
    %vm4911 = vmor %vm4909, %vm4910
    %v4912 = vsel %vm4911, %v4903, %v4908
    %v4913 = vrsqrt.pop %v4813
    %v4914 = vmul.f32 %v4913, %v4813
    %v4915 = vmul.f32 %v4914, %v4913
    %v4916 = vmul.f32 0.5, %v4915
    %v4917 = vsub.f32 1.5, %v4916
    %v4918 = vmul.f32 %v4913, %v4917
    %vm4919 = vweird.f32 %v4813
    %vm4920 = vweird.f32 %v4913
    %vm4921 = vmor %vm4919, %vm4920
    %v4922 = vsel %vm4921, %v4913, %v4918
    %v4923 = vrsqrt.pop %v4814
    %v4924 = vmul.f32 %v4923, %v4814
    %v4925 = vmul.f32 %v4924, %v4923
    %v4926 = vmul.f32 0.5, %v4925
    %v4927 = vsub.f32 1.5, %v4926
    %v4928 = vmul.f32 %v4923, %v4927
    %vm4929 = vweird.f32 %v4814
    %vm4930 = vweird.f32 %v4923
    %vm4931 = vmor %vm4929, %vm4930
    %v4932 = vsel %vm4931, %v4923, %v4928
    %v4933 = vrsqrt.pop %v4815
    %v4934 = vmul.f32 %v4933, %v4815
    %v4935 = vmul.f32 %v4934, %v4933
    %v4936 = vmul.f32 0.5, %v4935
    %v4937 = vsub.f32 1.5, %v4936
    %v4938 = vmul.f32 %v4933, %v4937
    %vm4939 = vweird.f32 %v4815
    %vm4940 = vweird.f32 %v4933
    %vm4941 = vmor %vm4939, %vm4940
    %v4942 = vsel %vm4941, %v4933, %v4938
    %v4943 = vrsqrt.pop %v4816
    %v4944 = vmul.f32 %v4943, %v4816
    %v4945 = vmul.f32 %v4944, %v4943
    %v4946 = vmul.f32 0.5, %v4945
    %v4947 = vsub.f32 1.5, %v4946
    %v4948 = vmul.f32 %v4943, %v4947
    %vm4949 = vweird.f32 %v4816
    %vm4950 = vweird.f32 %v4943
    %vm4951 = vmor %vm4949, %vm4950
    %v4952 = vsel %vm4951, %v4943, %v4948
    %v4953 = vrsqrt.pop %v4817
    %v4954 = vmul.f32 %v4953, %v4817
    %v4955 = vmul.f32 %v4954, %v4953
    %v4956 = vmul.f32 0.5, %v4955
    %v4957 = vsub.f32 1.5, %v4956
    %v4958 = vmul.f32 %v4953, %v4957
    %vm4959 = vweird.f32 %v4817
    %vm4960 = vweird.f32 %v4953
    %vm4961 = vmor %vm4959, %vm4960
    %v4962 = vsel %vm4961, %v4953, %v4958
    %v4963 = vrsqrt.pop %v4818
    %v4964 = vmul.f32 %v4963, %v4818
    %v4965 = vmul.f32 %v4964, %v4963
    %v4966 = vmul.f32 0.5, %v4965
    %v4967 = vsub.f32 1.5, %v4966
    %v4968 = vmul.f32 %v4963, %v4967
    %vm4969 = vweird.f32 %v4818
    %vm4970 = vweird.f32 %v4963
    %vm4971 = vmor %vm4969, %vm4970
    %v4972 = vsel %vm4971, %v4963, %v4968
    %v4973 = vrsqrt.pop %v4819
    %v4974 = vmul.f32 %v4973, %v4819
    %v4975 = vmul.f32 %v4974, %v4973
    %v4976 = vmul.f32 0.5, %v4975
    %v4977 = vsub.f32 1.5, %v4976
    %v4978 = vmul.f32 %v4973, %v4977
    %vm4979 = vweird.f32 %v4819
    %vm4980 = vweird.f32 %v4973
    %vm4981 = vmor %vm4979, %vm4980
    %v4982 = vsel %vm4981, %v4973, %v4978
    %v4983 = vrsqrt.pop %v4820
    %v4984 = vmul.f32 %v4983, %v4820
    %v4985 = vmul.f32 %v4984, %v4983
    %v4986 = vmul.f32 0.5, %v4985
    %v4987 = vsub.f32 1.5, %v4986
    %v4988 = vmul.f32 %v4983, %v4987
    %vm4989 = vweird.f32 %v4820
    %vm4990 = vweird.f32 %v4983
    %vm4991 = vmor %vm4989, %vm4990
    %v4992 = vsel %vm4991, %v4983, %v4988
    %v4993 = vrsqrt.pop %v4821
    %v4994 = vmul.f32 %v4993, %v4821
    %v4995 = vmul.f32 %v4994, %v4993
    %v4996 = vmul.f32 0.5, %v4995
    %v4997 = vsub.f32 1.5, %v4996
    %v4998 = vmul.f32 %v4993, %v4997
    %vm4999 = vweird.f32 %v4821
    %vm5000 = vweird.f32 %v4993
    %vm5001 = vmor %vm4999, %vm5000
    %v5002 = vsel %vm5001, %v4993, %v4998
    %v5003 = vrsqrt.pop %v4822
    %v5004 = vmul.f32 %v5003, %v4822
    %v5005 = vmul.f32 %v5004, %v5003
    %v5006 = vmul.f32 0.5, %v5005
    %v5007 = vsub.f32 1.5, %v5006
    %v5008 = vmul.f32 %v5003, %v5007
    %vm5009 = vweird.f32 %v4822
    %vm5010 = vweird.f32 %v5003
    %vm5011 = vmor %vm5009, %vm5010
    %v5012 = vsel %vm5011, %v5003, %v5008
    %v5013 = vrsqrt.pop %v4823
    %v5014 = vmul.f32 %v5013, %v4823
    %v5015 = vmul.f32 %v5014, %v5013
    %v5016 = vmul.f32 0.5, %v5015
    %v5017 = vsub.f32 1.5, %v5016
    %v5018 = vmul.f32 %v5013, %v5017
    %vm5019 = vweird.f32 %v4823
    %vm5020 = vweird.f32 %v5013
    %vm5021 = vmor %vm5019, %vm5020
    %v5022 = vsel %vm5021, %v5013, %v5018
    %v5023 = vrsqrt.pop %v4824
    %v5024 = vmul.f32 %v5023, %v4824
    %v5025 = vmul.f32 %v5024, %v5023
    %v5026 = vmul.f32 0.5, %v5025
    %v5027 = vsub.f32 1.5, %v5026
    %v5028 = vmul.f32 %v5023, %v5027
    %vm5029 = vweird.f32 %v4824
    %vm5030 = vweird.f32 %v5023
    %vm5031 = vmor %vm5029, %vm5030
    %v5032 = vsel %vm5031, %v5023, %v5028
    %v5033 = vrsqrt.pop %v4825
    %v5034 = vmul.f32 %v5033, %v4825
    %v5035 = vmul.f32 %v5034, %v5033
    %v5036 = vmul.f32 0.5, %v5035
    %v5037 = vsub.f32 1.5, %v5036
    %v5038 = vmul.f32 %v5033, %v5037
    %vm5039 = vweird.f32 %v4825
    %vm5040 = vweird.f32 %v5033
    %vm5041 = vmor %vm5039, %vm5040
    %v5042 = vsel %vm5041, %v5033, %v5038
    %v5043 = vrsqrt.pop %v4826
    %v5044 = vmul.f32 %v5043, %v4826
    %v5045 = vmul.f32 %v5044, %v5043
    %v5046 = vmul.f32 0.5, %v5045
    %v5047 = vsub.f32 1.5, %v5046
    %v5048 = vmul.f32 %v5043, %v5047
    %vm5049 = vweird.f32 %v4826
    %vm5050 = vweird.f32 %v5043
    %vm5051 = vmor %vm5049, %vm5050
    %v5052 = vsel %vm5051, %v5043, %v5048
    %v5053 = vrsqrt.pop %v4827
    %v5054 = vmul.f32 %v5053, %v4827
    %v5055 = vmul.f32 %v5054, %v5053
    %v5056 = vmul.f32 0.5, %v5055
    %v5057 = vsub.f32 1.5, %v5056
    %v5058 = vmul.f32 %v5053, %v5057
    %vm5059 = vweird.f32 %v4827
    %vm5060 = vweird.f32 %v5053
    %vm5061 = vmor %vm5059, %vm5060
    %v5062 = vsel %vm5061, %v5053, %v5058
    %v5063 = vrsqrt.pop %v4828
    %v5064 = vmul.f32 %v5063, %v4828
    %v5065 = vmul.f32 %v5064, %v5063
    %v5066 = vmul.f32 0.5, %v5065
    %v5067 = vsub.f32 1.5, %v5066
    %v5068 = vmul.f32 %v5063, %v5067
    %vm5069 = vweird.f32 %v4828
    %vm5070 = vweird.f32 %v5063
    %vm5071 = vmor %vm5069, %vm5070
    %v5072 = vsel %vm5071, %v5063, %v5068
    %v5073 = vrsqrt.pop %v4829
    %v5074 = vmul.f32 %v5073, %v4829
    %v5075 = vmul.f32 %v5074, %v5073
    %v5076 = vmul.f32 0.5, %v5075
    %v5077 = vsub.f32 1.5, %v5076
    %v5078 = vmul.f32 %v5073, %v5077
    %vm5079 = vweird.f32 %v4829
    %vm5080 = vweird.f32 %v5073
    %vm5081 = vmor %vm5079, %vm5080
    %v5082 = vsel %vm5081, %v5073, %v5078
    %v5083 = vrsqrt.pop %v4830
    %v5084 = vmul.f32 %v5083, %v4830
    %v5085 = vmul.f32 %v5084, %v5083
    %v5086 = vmul.f32 0.5, %v5085
    %v5087 = vsub.f32 1.5, %v5086
    %v5088 = vmul.f32 %v5083, %v5087
    %vm5089 = vweird.f32 %v4830
    %vm5090 = vweird.f32 %v5083
    %vm5091 = vmor %vm5089, %vm5090
    %v5092 = vsel %vm5091, %v5083, %v5088
    %v5093 = vrsqrt.pop %v4831
    %v5094 = vmul.f32 %v5093, %v4831
    %v5095 = vmul.f32 %v5094, %v5093
    %v5096 = vmul.f32 0.5, %v5095
    %v5097 = vsub.f32 1.5, %v5096
    %v5098 = vmul.f32 %v5093, %v5097
    %vm5099 = vweird.f32 %v4831
    %vm5100 = vweird.f32 %v5093
    %vm5101 = vmor %vm5099, %vm5100
    %v5102 = vsel %vm5101, %v5093, %v5098
    %v5103 = vrsqrt.pop %v4832
    %v5104 = vmul.f32 %v5103, %v4832
    %v5105 = vmul.f32 %v5104, %v5103
    %v5106 = vmul.f32 0.5, %v5105
    %v5107 = vsub.f32 1.5, %v5106
    %v5108 = vmul.f32 %v5103, %v5107
    %vm5109 = vweird.f32 %v4832
    %vm5110 = vweird.f32 %v5103
    %vm5111 = vmor %vm5109, %vm5110
    %v5112 = vsel %vm5111, %v5103, %v5108
    %v5113 = vrsqrt.pop %v4833
    %v5114 = vmul.f32 %v5113, %v4833
    %v5115 = vmul.f32 %v5114, %v5113
    %v5116 = vmul.f32 0.5, %v5115
    %v5117 = vsub.f32 1.5, %v5116
    %v5118 = vmul.f32 %v5113, %v5117
    %vm5119 = vweird.f32 %v4833
    %vm5120 = vweird.f32 %v5113
    %vm5121 = vmor %vm5119, %vm5120
    %v5122 = vsel %vm5121, %v5113, %v5118
    %v5123 = vrsqrt.pop %v4834
    %v5124 = vmul.f32 %v5123, %v4834
    %v5125 = vmul.f32 %v5124, %v5123
    %v5126 = vmul.f32 0.5, %v5125
    %v5127 = vsub.f32 1.5, %v5126
    %v5128 = vmul.f32 %v5123, %v5127
    %vm5129 = vweird.f32 %v4834
    %vm5130 = vweird.f32 %v5123
    %vm5131 = vmor %vm5129, %vm5130
    %v5132 = vsel %vm5131, %v5123, %v5128
    %v5133 = vrsqrt.pop %v4835
    %v5134 = vmul.f32 %v5133, %v4835
    %v5135 = vmul.f32 %v5134, %v5133
    %v5136 = vmul.f32 0.5, %v5135
    %v5137 = vsub.f32 1.5, %v5136
    %v5138 = vmul.f32 %v5133, %v5137
    %vm5139 = vweird.f32 %v4835
    %vm5140 = vweird.f32 %v5133
    %vm5141 = vmor %vm5139, %vm5140
    %v5142 = vsel %vm5141, %v5133, %v5138
    %v5143 = vrsqrt.pop %v4836
    %v5144 = vmul.f32 %v5143, %v4836
    %v5145 = vmul.f32 %v5144, %v5143
    %v5146 = vmul.f32 0.5, %v5145
    %v5147 = vsub.f32 1.5, %v5146
    %v5148 = vmul.f32 %v5143, %v5147
    %vm5149 = vweird.f32 %v4836
    %vm5150 = vweird.f32 %v5143
    %vm5151 = vmor %vm5149, %vm5150
    %v5152 = vsel %vm5151, %v5143, %v5148
    %v5153 = vrsqrt.pop %v4837
    %v5154 = vmul.f32 %v5153, %v4837
    %v5155 = vmul.f32 %v5154, %v5153
    %v5156 = vmul.f32 0.5, %v5155
    %v5157 = vsub.f32 1.5, %v5156
    %v5158 = vmul.f32 %v5153, %v5157
    %vm5159 = vweird.f32 %v4837
    %vm5160 = vweird.f32 %v5153
    %vm5161 = vmor %vm5159, %vm5160
    %v5162 = vsel %vm5161, %v5153, %v5158
    %v5163 = vrsqrt.pop %v4838
    %v5164 = vmul.f32 %v5163, %v4838
    %v5165 = vmul.f32 %v5164, %v5163
    %v5166 = vmul.f32 0.5, %v5165
    %v5167 = vsub.f32 1.5, %v5166
    %v5168 = vmul.f32 %v5163, %v5167
    %vm5169 = vweird.f32 %v4838
    %vm5170 = vweird.f32 %v5163
    %vm5171 = vmor %vm5169, %vm5170
    %v5172 = vsel %vm5171, %v5163, %v5168
    %v5173 = vrsqrt.pop %v4839
    %v5174 = vmul.f32 %v5173, %v4839
    %v5175 = vmul.f32 %v5174, %v5173
    %v5176 = vmul.f32 0.5, %v5175
    %v5177 = vsub.f32 1.5, %v5176
    %v5178 = vmul.f32 %v5173, %v5177
    %vm5179 = vweird.f32 %v4839
    %vm5180 = vweird.f32 %v5173
    %vm5181 = vmor %vm5179, %vm5180
    %v5182 = vsel %vm5181, %v5173, %v5178
    %v5183 = vrsqrt.pop %v4840
    %v5184 = vmul.f32 %v5183, %v4840
    %v5185 = vmul.f32 %v5184, %v5183
    %v5186 = vmul.f32 0.5, %v5185
    %v5187 = vsub.f32 1.5, %v5186
    %v5188 = vmul.f32 %v5183, %v5187
    %vm5189 = vweird.f32 %v4840
    %vm5190 = vweird.f32 %v5183
    %vm5191 = vmor %vm5189, %vm5190
    %v5192 = vsel %vm5191, %v5183, %v5188
    %v5193 = vrsqrt.pop %v4841
    %v5194 = vmul.f32 %v5193, %v4841
    %v5195 = vmul.f32 %v5194, %v5193
    %v5196 = vmul.f32 0.5, %v5195
    %v5197 = vsub.f32 1.5, %v5196
    %v5198 = vmul.f32 %v5193, %v5197
    %vm5199 = vweird.f32 %v4841
    %vm5200 = vweird.f32 %v5193
    %vm5201 = vmor %vm5199, %vm5200
    %v5202 = vsel %vm5201, %v5193, %v5198
    %v5203 = vrsqrt.pop %v4842
    %v5204 = vmul.f32 %v5203, %v4842
    %v5205 = vmul.f32 %v5204, %v5203
    %v5206 = vmul.f32 0.5, %v5205
    %v5207 = vsub.f32 1.5, %v5206
    %v5208 = vmul.f32 %v5203, %v5207
    %vm5209 = vweird.f32 %v4842
    %vm5210 = vweird.f32 %v5203
    %vm5211 = vmor %vm5209, %vm5210
    %v5212 = vsel %vm5211, %v5203, %v5208
    %v5213 = vrsqrt.pop %v4843
    %v5214 = vmul.f32 %v5213, %v4843
    %v5215 = vmul.f32 %v5214, %v5213
    %v5216 = vmul.f32 0.5, %v5215
    %v5217 = vsub.f32 1.5, %v5216
    %v5218 = vmul.f32 %v5213, %v5217
    %vm5219 = vweird.f32 %v4843
    %vm5220 = vweird.f32 %v5213
    %vm5221 = vmor %vm5219, %vm5220
    %v5222 = vsel %vm5221, %v5213, %v5218
    %v5223 = vrsqrt.pop %v4844
    %v5224 = vmul.f32 %v5223, %v4844
    %v5225 = vmul.f32 %v5224, %v5223
    %v5226 = vmul.f32 0.5, %v5225
    %v5227 = vsub.f32 1.5, %v5226
    %v5228 = vmul.f32 %v5223, %v5227
    %vm5229 = vweird.f32 %v4844
    %vm5230 = vweird.f32 %v5223
    %vm5231 = vmor %vm5229, %vm5230
    %v5232 = vsel %vm5231, %v5223, %v5228
    %v5233 = vrsqrt.pop %v4845
    %v5234 = vmul.f32 %v5233, %v4845
    %v5235 = vmul.f32 %v5234, %v5233
    %v5236 = vmul.f32 0.5, %v5235
    %v5237 = vsub.f32 1.5, %v5236
    %v5238 = vmul.f32 %v5233, %v5237
    %vm5239 = vweird.f32 %v4845
    %vm5240 = vweird.f32 %v5233
    %vm5241 = vmor %vm5239, %vm5240
    %v5242 = vsel %vm5241, %v5233, %v5238
    %v5243 = vrsqrt.pop %v4846
    %v5244 = vmul.f32 %v5243, %v4846
    %v5245 = vmul.f32 %v5244, %v5243
    %v5246 = vmul.f32 0.5, %v5245
    %v5247 = vsub.f32 1.5, %v5246
    %v5248 = vmul.f32 %v5243, %v5247
    %vm5249 = vweird.f32 %v4846
    %vm5250 = vweird.f32 %v5243
    %vm5251 = vmor %vm5249, %vm5250
    %v5252 = vsel %vm5251, %v5243, %v5248
    %v5253 = vrsqrt.pop %v4847
    %v5254 = vmul.f32 %v5253, %v4847
    %v5255 = vmul.f32 %v5254, %v5253
    %v5256 = vmul.f32 0.5, %v5255
    %v5257 = vsub.f32 1.5, %v5256
    %v5258 = vmul.f32 %v5253, %v5257
    %vm5259 = vweird.f32 %v4847
    %vm5260 = vweird.f32 %v5253
    %vm5261 = vmor %vm5259, %vm5260
    %v5262 = vsel %vm5261, %v5253, %v5258
    %v5263 = vrsqrt.pop %v4848
    %v5264 = vmul.f32 %v5263, %v4848
    %v5265 = vmul.f32 %v5264, %v5263
    %v5266 = vmul.f32 0.5, %v5265
    %v5267 = vsub.f32 1.5, %v5266
    %v5268 = vmul.f32 %v5263, %v5267
    %vm5269 = vweird.f32 %v4848
    %vm5270 = vweird.f32 %v5263
    %vm5271 = vmor %vm5269, %vm5270
    %v5272 = vsel %vm5271, %v5263, %v5268
    %v5273 = vrsqrt.pop %v4849
    %v5274 = vmul.f32 %v5273, %v4849
    %v5275 = vmul.f32 %v5274, %v5273
    %v5276 = vmul.f32 0.5, %v5275
    %v5277 = vsub.f32 1.5, %v5276
    %v5278 = vmul.f32 %v5273, %v5277
    %vm5279 = vweird.f32 %v4849
    %vm5280 = vweird.f32 %v5273
    %vm5281 = vmor %vm5279, %vm5280
    %v5282 = vsel %vm5281, %v5273, %v5278
    %v5283 = vrsqrt.pop %v4850
    %v5284 = vmul.f32 %v5283, %v4850
    %v5285 = vmul.f32 %v5284, %v5283
    %v5286 = vmul.f32 0.5, %v5285
    %v5287 = vsub.f32 1.5, %v5286
    %v5288 = vmul.f32 %v5283, %v5287
    %vm5289 = vweird.f32 %v4850
    %vm5290 = vweird.f32 %v5283
    %vm5291 = vmor %vm5289, %vm5290
    %v5292 = vsel %vm5291, %v5283, %v5288
    %v5293 = vrsqrt.pop %v4851
    %v5294 = vmul.f32 %v5293, %v4851
    %v5295 = vmul.f32 %v5294, %v5293
    %v5296 = vmul.f32 0.5, %v5295
    %v5297 = vsub.f32 1.5, %v5296
    %v5298 = vmul.f32 %v5293, %v5297
    %vm5299 = vweird.f32 %v4851
    %vm5300 = vweird.f32 %v5293
    %vm5301 = vmor %vm5299, %vm5300
    %v5302 = vsel %vm5301, %v5293, %v5298
    %v5303 = vrsqrt.pop %v4852
    %v5304 = vmul.f32 %v5303, %v4852
    %v5305 = vmul.f32 %v5304, %v5303
    %v5306 = vmul.f32 0.5, %v5305
    %v5307 = vsub.f32 1.5, %v5306
    %v5308 = vmul.f32 %v5303, %v5307
    %vm5309 = vweird.f32 %v4852
    %vm5310 = vweird.f32 %v5303
    %vm5311 = vmor %vm5309, %vm5310
    %v5312 = vsel %vm5311, %v5303, %v5308
    %v5313 = vrsqrt.pop %v4853
    %v5314 = vmul.f32 %v5313, %v4853
    %v5315 = vmul.f32 %v5314, %v5313
    %v5316 = vmul.f32 0.5, %v5315
    %v5317 = vsub.f32 1.5, %v5316
    %v5318 = vmul.f32 %v5313, %v5317
    %vm5319 = vweird.f32 %v4853
    %vm5320 = vweird.f32 %v5313
    %vm5321 = vmor %vm5319, %vm5320
    %v5322 = vsel %vm5321, %v5313, %v5318
    %v5323 = vrsqrt.pop %v4854
    %v5324 = vmul.f32 %v5323, %v4854
    %v5325 = vmul.f32 %v5324, %v5323
    %v5326 = vmul.f32 0.5, %v5325
    %v5327 = vsub.f32 1.5, %v5326
    %v5328 = vmul.f32 %v5323, %v5327
    %vm5329 = vweird.f32 %v4854
    %vm5330 = vweird.f32 %v5323
    %vm5331 = vmor %vm5329, %vm5330
    %v5332 = vsel %vm5331, %v5323, %v5328
    %v5333 = vrsqrt.pop %v4855
    %v5334 = vmul.f32 %v5333, %v4855
    %v5335 = vmul.f32 %v5334, %v5333
    %v5336 = vmul.f32 0.5, %v5335
    %v5337 = vsub.f32 1.5, %v5336
    %v5338 = vmul.f32 %v5333, %v5337
    %vm5339 = vweird.f32 %v4855
    %vm5340 = vweird.f32 %v5333
    %vm5341 = vmor %vm5339, %vm5340
    %v5342 = vsel %vm5341, %v5333, %v5338
    %v5343 = vrsqrt.pop %v4856
    %v5344 = vmul.f32 %v5343, %v4856
    %v5345 = vmul.f32 %v5344, %v5343
    %v5346 = vmul.f32 0.5, %v5345
    %v5347 = vsub.f32 1.5, %v5346
    %v5348 = vmul.f32 %v5343, %v5347
    %vm5349 = vweird.f32 %v4856
    %vm5350 = vweird.f32 %v5343
    %vm5351 = vmor %vm5349, %vm5350
    %v5352 = vsel %vm5351, %v5343, %v5348
    %v5353 = vrsqrt.pop %v4857
    %v5354 = vmul.f32 %v5353, %v4857
    %v5355 = vmul.f32 %v5354, %v5353
    %v5356 = vmul.f32 0.5, %v5355
    %v5357 = vsub.f32 1.5, %v5356
    %v5358 = vmul.f32 %v5353, %v5357
    %vm5359 = vweird.f32 %v4857
    %vm5360 = vweird.f32 %v5353
    %vm5361 = vmor %vm5359, %vm5360
    %v5362 = vsel %vm5361, %v5353, %v5358
    %v5363 = vrsqrt.pop %v4858
    %v5364 = vmul.f32 %v5363, %v4858
    %v5365 = vmul.f32 %v5364, %v5363
    %v5366 = vmul.f32 0.5, %v5365
    %v5367 = vsub.f32 1.5, %v5366
    %v5368 = vmul.f32 %v5363, %v5367
    %vm5369 = vweird.f32 %v4858
    %vm5370 = vweird.f32 %v5363
    %vm5371 = vmor %vm5369, %vm5370
    %v5372 = vsel %vm5371, %v5363, %v5368
    %v5373 = vrsqrt.pop %v4859
    %v5374 = vmul.f32 %v5373, %v4859
    %v5375 = vmul.f32 %v5374, %v5373
    %v5376 = vmul.f32 0.5, %v5375
    %v5377 = vsub.f32 1.5, %v5376
    %v5378 = vmul.f32 %v5373, %v5377
    %vm5379 = vweird.f32 %v4859
    %vm5380 = vweird.f32 %v5373
    %vm5381 = vmor %vm5379, %vm5380
    %v5382 = vsel %vm5381, %v5373, %v5378
    %v5383 = vrsqrt.pop %v4860
    %v5384 = vmul.f32 %v5383, %v4860
    %v5385 = vmul.f32 %v5384, %v5383
    %v5386 = vmul.f32 0.5, %v5385
    %v5387 = vsub.f32 1.5, %v5386
    %v5388 = vmul.f32 %v5383, %v5387
    %vm5389 = vweird.f32 %v4860
    %vm5390 = vweird.f32 %v5383
    %vm5391 = vmor %vm5389, %vm5390
    %v5392 = vsel %vm5391, %v5383, %v5388
    %v5393 = vrsqrt.pop %v4861
    %v5394 = vmul.f32 %v5393, %v4861
    %v5395 = vmul.f32 %v5394, %v5393
    %v5396 = vmul.f32 0.5, %v5395
    %v5397 = vsub.f32 1.5, %v5396
    %v5398 = vmul.f32 %v5393, %v5397
    %vm5399 = vweird.f32 %v4861
    %vm5400 = vweird.f32 %v5393
    %vm5401 = vmor %vm5399, %vm5400
    %v5402 = vsel %vm5401, %v5393, %v5398
    %v5403 = vrsqrt.pop %v4862
    %v5404 = vmul.f32 %v5403, %v4862
    %v5405 = vmul.f32 %v5404, %v5403
    %v5406 = vmul.f32 0.5, %v5405
    %v5407 = vsub.f32 1.5, %v5406
    %v5408 = vmul.f32 %v5403, %v5407
    %vm5409 = vweird.f32 %v4862
    %vm5410 = vweird.f32 %v5403
    %vm5411 = vmor %vm5409, %vm5410
    %v5412 = vsel %vm5411, %v5403, %v5408
    %v5413 = vrsqrt.pop %v4863
    %v5414 = vmul.f32 %v5413, %v4863
    %v5415 = vmul.f32 %v5414, %v5413
    %v5416 = vmul.f32 0.5, %v5415
    %v5417 = vsub.f32 1.5, %v5416
    %v5418 = vmul.f32 %v5413, %v5417
    %vm5419 = vweird.f32 %v4863
    %vm5420 = vweird.f32 %v5413
    %vm5421 = vmor %vm5419, %vm5420
    %v5422 = vsel %vm5421, %v5413, %v5418
    %v5423 = vrsqrt.pop %v4864
    %v5424 = vmul.f32 %v5423, %v4864
    %v5425 = vmul.f32 %v5424, %v5423
    %v5426 = vmul.f32 0.5, %v5425
    %v5427 = vsub.f32 1.5, %v5426
    %v5428 = vmul.f32 %v5423, %v5427
    %vm5429 = vweird.f32 %v4864
    %vm5430 = vweird.f32 %v5423
    %vm5431 = vmor %vm5429, %vm5430
    %v5432 = vsel %vm5431, %v5423, %v5428
    %v5433 = vrsqrt.pop %v4865
    %v5434 = vmul.f32 %v5433, %v4865
    %v5435 = vmul.f32 %v5434, %v5433
    %v5436 = vmul.f32 0.5, %v5435
    %v5437 = vsub.f32 1.5, %v5436
    %v5438 = vmul.f32 %v5433, %v5437
    %vm5439 = vweird.f32 %v4865
    %vm5440 = vweird.f32 %v5433
    %vm5441 = vmor %vm5439, %vm5440
    %v5442 = vsel %vm5441, %v5433, %v5438
    %v5443 = vrsqrt.pop %v4866
    %v5444 = vmul.f32 %v5443, %v4866
    %v5445 = vmul.f32 %v5444, %v5443
    %v5446 = vmul.f32 0.5, %v5445
    %v5447 = vsub.f32 1.5, %v5446
    %v5448 = vmul.f32 %v5443, %v5447
    %vm5449 = vweird.f32 %v4866
    %vm5450 = vweird.f32 %v5443
    %vm5451 = vmor %vm5449, %vm5450
    %v5452 = vsel %vm5451, %v5443, %v5448
    %v5453 = vrsqrt.pop %v4867
    %v5454 = vmul.f32 %v5453, %v4867
    %v5455 = vmul.f32 %v5454, %v5453
    %v5456 = vmul.f32 0.5, %v5455
    %v5457 = vsub.f32 1.5, %v5456
    %v5458 = vmul.f32 %v5453, %v5457
    %vm5459 = vweird.f32 %v4867
    %vm5460 = vweird.f32 %v5453
    %vm5461 = vmor %vm5459, %vm5460
    %v5462 = vsel %vm5461, %v5453, %v5458
    %v5463 = vrsqrt.pop %v4868
    %v5464 = vmul.f32 %v5463, %v4868
    %v5465 = vmul.f32 %v5464, %v5463
    %v5466 = vmul.f32 0.5, %v5465
    %v5467 = vsub.f32 1.5, %v5466
    %v5468 = vmul.f32 %v5463, %v5467
    %vm5469 = vweird.f32 %v4868
    %vm5470 = vweird.f32 %v5463
    %vm5471 = vmor %vm5469, %vm5470
    %v5472 = vsel %vm5471, %v5463, %v5468
    %v5473 = vrsqrt.pop %v4869
    %v5474 = vmul.f32 %v5473, %v4869
    %v5475 = vmul.f32 %v5474, %v5473
    %v5476 = vmul.f32 0.5, %v5475
    %v5477 = vsub.f32 1.5, %v5476
    %v5478 = vmul.f32 %v5473, %v5477
    %vm5479 = vweird.f32 %v4869
    %vm5480 = vweird.f32 %v5473
    %vm5481 = vmor %vm5479, %vm5480
    %v5482 = vsel %vm5481, %v5473, %v5478
    %v5483 = vrsqrt.pop %v4870
    %v5484 = vmul.f32 %v5483, %v4870
    %v5485 = vmul.f32 %v5484, %v5483
    %v5486 = vmul.f32 0.5, %v5485
    %v5487 = vsub.f32 1.5, %v5486
    %v5488 = vmul.f32 %v5483, %v5487
    %vm5489 = vweird.f32 %v4870
    %vm5490 = vweird.f32 %v5483
    %vm5491 = vmor %vm5489, %vm5490
    %v5492 = vsel %vm5491, %v5483, %v5488
    %v5493 = vrsqrt.pop %v4871
    %v5494 = vmul.f32 %v5493, %v4871
    %v5495 = vmul.f32 %v5494, %v5493
    %v5496 = vmul.f32 0.5, %v5495
    %v5497 = vsub.f32 1.5, %v5496
    %v5498 = vmul.f32 %v5493, %v5497
    %vm5499 = vweird.f32 %v4871
    %vm5500 = vweird.f32 %v5493
    %vm5501 = vmor %vm5499, %vm5500
    %v5502 = vsel %vm5501, %v5493, %v5498
    %v5503 = vrsqrt.pop %v4872
    %v5504 = vmul.f32 %v5503, %v4872
    %v5505 = vmul.f32 %v5504, %v5503
    %v5506 = vmul.f32 0.5, %v5505
    %v5507 = vsub.f32 1.5, %v5506
    %v5508 = vmul.f32 %v5503, %v5507
    %vm5509 = vweird.f32 %v4872
    %vm5510 = vweird.f32 %v5503
    %vm5511 = vmor %vm5509, %vm5510
    %v5512 = vsel %vm5511, %v5503, %v5508
    %v5513 = vmul.f32 %v4489, %v4882
    %v5514 = vmul.f32 %v4490, %v4892
    %v5515 = vmul.f32 %v4491, %v4902
    %v5516 = vmul.f32 %v4492, %v4912
    %v5517 = vmul.f32 %v4493, %v4922
    %v5518 = vmul.f32 %v4494, %v4932
    %v5519 = vmul.f32 %v4495, %v4942
    %v5520 = vmul.f32 %v4496, %v4952
    %v5521 = vmul.f32 %v4497, %v4962
    %v5522 = vmul.f32 %v4498, %v4972
    %v5523 = vmul.f32 %v4499, %v4982
    %v5524 = vmul.f32 %v4500, %v4992
    %v5525 = vmul.f32 %v4501, %v5002
    %v5526 = vmul.f32 %v4502, %v5012
    %v5527 = vmul.f32 %v4503, %v5022
    %v5528 = vmul.f32 %v4504, %v5032
    %v5529 = vmul.f32 %v4505, %v5042
    %v5530 = vmul.f32 %v4506, %v5052
    %v5531 = vmul.f32 %v4507, %v5062
    %v5532 = vmul.f32 %v4508, %v5072
    %v5533 = vmul.f32 %v4509, %v5082
    %v5534 = vmul.f32 %v4510, %v5092
    %v5535 = vmul.f32 %v4511, %v5102
    %v5536 = vmul.f32 %v4512, %v5112
    %v5537 = vmul.f32 %v4513, %v5122
    %v5538 = vmul.f32 %v4514, %v5132
    %v5539 = vmul.f32 %v4515, %v5142
    %v5540 = vmul.f32 %v4516, %v5152
    %v5541 = vmul.f32 %v4517, %v5162
    %v5542 = vmul.f32 %v4518, %v5172
    %v5543 = vmul.f32 %v4519, %v5182
    %v5544 = vmul.f32 %v4520, %v5192
    %v5545 = vmul.f32 %v4521, %v5202
    %v5546 = vmul.f32 %v4522, %v5212
    %v5547 = vmul.f32 %v4523, %v5222
    %v5548 = vmul.f32 %v4524, %v5232
    %v5549 = vmul.f32 %v4525, %v5242
    %v5550 = vmul.f32 %v4526, %v5252
    %v5551 = vmul.f32 %v4527, %v5262
    %v5552 = vmul.f32 %v4528, %v5272
    %v5553 = vmul.f32 %v4529, %v5282
    %v5554 = vmul.f32 %v4530, %v5292
    %v5555 = vmul.f32 %v4531, %v5302
    %v5556 = vmul.f32 %v4532, %v5312
    %v5557 = vmul.f32 %v4533, %v5322
    %v5558 = vmul.f32 %v4534, %v5332
    %v5559 = vmul.f32 %v4535, %v5342
    %v5560 = vmul.f32 %v4536, %v5352
    %v5561 = vmul.f32 %v4537, %v5362
    %v5562 = vmul.f32 %v4538, %v5372
    %v5563 = vmul.f32 %v4539, %v5382
    %v5564 = vmul.f32 %v4540, %v5392
    %v5565 = vmul.f32 %v4541, %v5402
    %v5566 = vmul.f32 %v4542, %v5412
    %v5567 = vmul.f32 %v4543, %v5422
    %v5568 = vmul.f32 %v4544, %v5432
    %v5569 = vmul.f32 %v4545, %v5442
    %v5570 = vmul.f32 %v4546, %v5452
    %v5571 = vmul.f32 %v4547, %v5462
    %v5572 = vmul.f32 %v4548, %v5472
    %v5573 = vmul.f32 %v4549, %v5482
    %v5574 = vmul.f32 %v4550, %v5492
    %v5575 = vmul.f32 %v4551, %v5502
    %v5576 = vmul.f32 %v4552, %v5512
    %v5578 = vperm.slane %v4164, 0
    %v5580 = vmul.f32 %v5513, %v5578
    %v5581 = vmul.f32 %v5514, %v5578
    %v5582 = vmul.f32 %v5515, %v5578
    %v5583 = vmul.f32 %v5516, %v5578
    %v5584 = vmul.f32 %v5517, %v5578
    %v5585 = vmul.f32 %v5518, %v5578
    %v5586 = vmul.f32 %v5519, %v5578
    %v5587 = vmul.f32 %v5520, %v5578
    %v5588 = vmul.f32 %v5521, %v5578
    %v5589 = vmul.f32 %v5522, %v5578
    %v5590 = vmul.f32 %v5523, %v5578
    %v5591 = vmul.f32 %v5524, %v5578
    %v5592 = vmul.f32 %v5525, %v5578
    %v5593 = vmul.f32 %v5526, %v5578
    %v5594 = vmul.f32 %v5527, %v5578
    %v5595 = vmul.f32 %v5528, %v5578
    %v5596 = vmul.f32 %v5529, %v5578
    %v5597 = vmul.f32 %v5530, %v5578
    %v5598 = vmul.f32 %v5531, %v5578
    %v5599 = vmul.f32 %v5532, %v5578
    %v5600 = vmul.f32 %v5533, %v5578
    %v5601 = vmul.f32 %v5534, %v5578
    %v5602 = vmul.f32 %v5535, %v5578
    %v5603 = vmul.f32 %v5536, %v5578
    %v5604 = vmul.f32 %v5537, %v5578
    %v5605 = vmul.f32 %v5538, %v5578
    %v5606 = vmul.f32 %v5539, %v5578
    %v5607 = vmul.f32 %v5540, %v5578
    %v5608 = vmul.f32 %v5541, %v5578
    %v5609 = vmul.f32 %v5542, %v5578
    %v5610 = vmul.f32 %v5543, %v5578
    %v5611 = vmul.f32 %v5544, %v5578
    %v5612 = vmul.f32 %v5545, %v5578
    %v5613 = vmul.f32 %v5546, %v5578
    %v5614 = vmul.f32 %v5547, %v5578
    %v5615 = vmul.f32 %v5548, %v5578
    %v5616 = vmul.f32 %v5549, %v5578
    %v5617 = vmul.f32 %v5550, %v5578
    %v5618 = vmul.f32 %v5551, %v5578
    %v5619 = vmul.f32 %v5552, %v5578
    %v5620 = vmul.f32 %v5553, %v5578
    %v5621 = vmul.f32 %v5554, %v5578
    %v5622 = vmul.f32 %v5555, %v5578
    %v5623 = vmul.f32 %v5556, %v5578
    %v5624 = vmul.f32 %v5557, %v5578
    %v5625 = vmul.f32 %v5558, %v5578
    %v5626 = vmul.f32 %v5559, %v5578
    %v5627 = vmul.f32 %v5560, %v5578
    %v5628 = vmul.f32 %v5561, %v5578
    %v5629 = vmul.f32 %v5562, %v5578
    %v5630 = vmul.f32 %v5563, %v5578
    %v5631 = vmul.f32 %v5564, %v5578
    %v5632 = vmul.f32 %v5565, %v5578
    %v5633 = vmul.f32 %v5566, %v5578
    %v5634 = vmul.f32 %v5567, %v5578
    %v5635 = vmul.f32 %v5568, %v5578
    %v5636 = vmul.f32 %v5569, %v5578
    %v5637 = vmul.f32 %v5570, %v5578
    %v5638 = vmul.f32 %v5571, %v5578
    %v5639 = vmul.f32 %v5572, %v5578
    %v5640 = vmul.f32 %v5573, %v5578
    %v5641 = vmul.f32 %v5574, %v5578
    %v5642 = vmul.f32 %v5575, %v5578
    %v5643 = vmul.f32 %v5576, %v5578
    %v5645 = vperm.slane %v4165, 0
    %v5647 = vadd.f32 %v5580, %v5645
    %v5648 = vadd.f32 %v5581, %v5645
    %v5649 = vadd.f32 %v5582, %v5645
    %v5650 = vadd.f32 %v5583, %v5645
    %v5651 = vadd.f32 %v5584, %v5645
    %v5652 = vadd.f32 %v5585, %v5645
    %v5653 = vadd.f32 %v5586, %v5645
    %v5654 = vadd.f32 %v5587, %v5645
    %v5655 = vadd.f32 %v5588, %v5645
    %v5656 = vadd.f32 %v5589, %v5645
    %v5657 = vadd.f32 %v5590, %v5645
    %v5658 = vadd.f32 %v5591, %v5645
    %v5659 = vadd.f32 %v5592, %v5645
    %v5660 = vadd.f32 %v5593, %v5645
    %v5661 = vadd.f32 %v5594, %v5645
    %v5662 = vadd.f32 %v5595, %v5645
    %v5663 = vadd.f32 %v5596, %v5645
    %v5664 = vadd.f32 %v5597, %v5645
    %v5665 = vadd.f32 %v5598, %v5645
    %v5666 = vadd.f32 %v5599, %v5645
    %v5667 = vadd.f32 %v5600, %v5645
    %v5668 = vadd.f32 %v5601, %v5645
    %v5669 = vadd.f32 %v5602, %v5645
    %v5670 = vadd.f32 %v5603, %v5645
    %v5671 = vadd.f32 %v5604, %v5645
    %v5672 = vadd.f32 %v5605, %v5645
    %v5673 = vadd.f32 %v5606, %v5645
    %v5674 = vadd.f32 %v5607, %v5645
    %v5675 = vadd.f32 %v5608, %v5645
    %v5676 = vadd.f32 %v5609, %v5645
    %v5677 = vadd.f32 %v5610, %v5645
    %v5678 = vadd.f32 %v5611, %v5645
    %v5679 = vadd.f32 %v5612, %v5645
    %v5680 = vadd.f32 %v5613, %v5645
    %v5681 = vadd.f32 %v5614, %v5645
    %v5682 = vadd.f32 %v5615, %v5645
    %v5683 = vadd.f32 %v5616, %v5645
    %v5684 = vadd.f32 %v5617, %v5645
    %v5685 = vadd.f32 %v5618, %v5645
    %v5686 = vadd.f32 %v5619, %v5645
    %v5687 = vadd.f32 %v5620, %v5645
    %v5688 = vadd.f32 %v5621, %v5645
    %v5689 = vadd.f32 %v5622, %v5645
    %v5690 = vadd.f32 %v5623, %v5645
    %v5691 = vadd.f32 %v5624, %v5645
    %v5692 = vadd.f32 %v5625, %v5645
    %v5693 = vadd.f32 %v5626, %v5645
    %v5694 = vadd.f32 %v5627, %v5645
    %v5695 = vadd.f32 %v5628, %v5645
    %v5696 = vadd.f32 %v5629, %v5645
    %v5697 = vadd.f32 %v5630, %v5645
    %v5698 = vadd.f32 %v5631, %v5645
    %v5699 = vadd.f32 %v5632, %v5645
    %v5700 = vadd.f32 %v5633, %v5645
    %v5701 = vadd.f32 %v5634, %v5645
    %v5702 = vadd.f32 %v5635, %v5645
    %v5703 = vadd.f32 %v5636, %v5645
    %v5704 = vadd.f32 %v5637, %v5645
    %v5705 = vadd.f32 %v5638, %v5645
    %v5706 = vadd.f32 %v5639, %v5645
    %v5707 = vadd.f32 %v5640, %v5645
    %v5708 = vadd.f32 %v5641, %v5645
    %v5709 = vadd.f32 %v5642, %v5645
    %v5710 = vadd.f32 %v5643, %v5645
    %5711 = vst [vmem:[%s10] sm:$0xff] %v5647
    %5712 = vst [vmem:[%s10 + $0x8] sm:$0xff] %v5648
    %5713 = vst [vmem:[%s10 + $0x10] sm:$0xff] %v5649
    %5714 = vst [vmem:[%s10 + $0x18] sm:$0xff] %v5650
    %5715 = vst [vmem:[%s10 + $0x20] sm:$0xff] %v5651
    %5716 = vst [vmem:[%s10 + $0x28] sm:$0xff] %v5652
    %5717 = vst [vmem:[%s10 + $0x30] sm:$0xff] %v5653
    %5718 = vst [vmem:[%s10 + $0x38] sm:$0xff] %v5654
    %5719 = vst [vmem:[%s10 + $0x40] sm:$0xff] %v5655
    %5720 = vst [vmem:[%s10 + $0x48] sm:$0xff] %v5656
    %5721 = vst [vmem:[%s10 + $0x50] sm:$0xff] %v5657
    %5722 = vst [vmem:[%s10 + $0x58] sm:$0xff] %v5658
    %5723 = vst [vmem:[%s10 + $0x60] sm:$0xff] %v5659
    %5724 = vst [vmem:[%s10 + $0x68] sm:$0xff] %v5660
    %5725 = vst [vmem:[%s10 + $0x70] sm:$0xff] %v5661
    %5726 = vst [vmem:[%s10 + $0x78] sm:$0xff] %v5662
    %5727 = vst [vmem:[%s10 + $0x80] sm:$0xff] %v5663
    %5728 = vst [vmem:[%s10 + $0x88] sm:$0xff] %v5664
    %5729 = vst [vmem:[%s10 + $0x90] sm:$0xff] %v5665
    %5730 = vst [vmem:[%s10 + $0x98] sm:$0xff] %v5666
    %5731 = vst [vmem:[%s10 + $0xa0] sm:$0xff] %v5667
    %5732 = vst [vmem:[%s10 + $0xa8] sm:$0xff] %v5668
    %5733 = vst [vmem:[%s10 + $0xb0] sm:$0xff] %v5669
    %5734 = vst [vmem:[%s10 + $0xb8] sm:$0xff] %v5670
    %5735 = vst [vmem:[%s10 + $0xc0] sm:$0xff] %v5671
    %5736 = vst [vmem:[%s10 + $0xc8] sm:$0xff] %v5672
    %5737 = vst [vmem:[%s10 + $0xd0] sm:$0xff] %v5673
    %5738 = vst [vmem:[%s10 + $0xd8] sm:$0xff] %v5674
    %5739 = vst [vmem:[%s10 + $0xe0] sm:$0xff] %v5675
    %5740 = vst [vmem:[%s10 + $0xe8] sm:$0xff] %v5676
    %5741 = vst [vmem:[%s10 + $0xf0] sm:$0xff] %v5677
    %5742 = vst [vmem:[%s10 + $0xf8] sm:$0xff] %v5678
    %5743 = vst [vmem:[%s10 + $0x100] sm:$0xff] %v5679
    %5744 = vst [vmem:[%s10 + $0x108] sm:$0xff] %v5680
    %5745 = vst [vmem:[%s10 + $0x110] sm:$0xff] %v5681
    %5746 = vst [vmem:[%s10 + $0x118] sm:$0xff] %v5682
    %5747 = vst [vmem:[%s10 + $0x120] sm:$0xff] %v5683
    %5748 = vst [vmem:[%s10 + $0x128] sm:$0xff] %v5684
    %5749 = vst [vmem:[%s10 + $0x130] sm:$0xff] %v5685
    %5750 = vst [vmem:[%s10 + $0x138] sm:$0xff] %v5686
    %5751 = vst [vmem:[%s10 + $0x140] sm:$0xff] %v5687
    %5752 = vst [vmem:[%s10 + $0x148] sm:$0xff] %v5688
    %5753 = vst [vmem:[%s10 + $0x150] sm:$0xff] %v5689
    %5754 = vst [vmem:[%s10 + $0x158] sm:$0xff] %v5690
    %5755 = vst [vmem:[%s10 + $0x160] sm:$0xff] %v5691
    %5756 = vst [vmem:[%s10 + $0x168] sm:$0xff] %v5692
    %5757 = vst [vmem:[%s10 + $0x170] sm:$0xff] %v5693
    %5758 = vst [vmem:[%s10 + $0x178] sm:$0xff] %v5694
    %5759 = vst [vmem:[%s10 + $0x180] sm:$0xff] %v5695
    %5760 = vst [vmem:[%s10 + $0x188] sm:$0xff] %v5696
    %5761 = vst [vmem:[%s10 + $0x190] sm:$0xff] %v5697
    %5762 = vst [vmem:[%s10 + $0x198] sm:$0xff] %v5698
    %5763 = vst [vmem:[%s10 + $0x1a0] sm:$0xff] %v5699
    %5764 = vst [vmem:[%s10 + $0x1a8] sm:$0xff] %v5700
    %5765 = vst [vmem:[%s10 + $0x1b0] sm:$0xff] %v5701
    %5766 = vst [vmem:[%s10 + $0x1b8] sm:$0xff] %v5702
    %5767 = vst [vmem:[%s10 + $0x1c0] sm:$0xff] %v5703
    %5768 = vst [vmem:[%s10 + $0x1c8] sm:$0xff] %v5704
    %5769 = vst [vmem:[%s10 + $0x1d0] sm:$0xff] %v5705
    %5770 = vst [vmem:[%s10 + $0x1d8] sm:$0xff] %v5706
    %5771 = vst [vmem:[%s10 + $0x1e0] sm:$0xff] %v5707
    %5772 = vst [vmem:[%s10 + $0x1e8] sm:$0xff] %v5708
    %5773 = vst [vmem:[%s10 + $0x1f0] sm:$0xff] %v5709
    %5774 = vst [vmem:[%s10 + $0x1f8] sm:$0xff] %v5710
    // Predicated region
    $region62: #{gcn_forward.1} parent=1 // pred_check
      _
    $region63: #{gcn_forward.1} parent=1 // pred_check_branch
      %5776 = sbr.rel (0) target = $region65
    $region64: #{gcn_forward.1} parent=1 // pred_region
      _
    $region65: #{gcn_forward.1} parent=1 // pred_fallthru
      _
    // Predicated region
    $region66: #{gcn_forward.1} parent=1 // pred_check
      _
    $region67: #{gcn_forward.1} parent=1 // pred_check_branch
      %5778 = sbr.rel (0) target = $region69
    $region68: #{gcn_forward.1} parent=1 // pred_region
      _
    $region69: #{gcn_forward.1} parent=1 // pred_fallthru
      _
    %5779 = vsyncpa [#allocation3], 1
    %5780 = vsyncpa [#allocation5], 1
    %5781 = vsyncpa [#allocation8], 1

</llo_original>
